<compile_context>
chip_gen: v7x
topology: tpu7x:2x2x1
jax: 0.10.0
libtpu: 0.0.40
codegen_flags: <defaults>
</compile_context>

<pallas_src>
import functools
import math

import jax
import jax.numpy as jnp
from jax.experimental import pallas as pl
from jax.experimental.pallas import tpu as pltpu


_VMEM_LIMIT = 64 * 1024 * 1024


# ----------------------------- helpers ------------------------------

def _pick_tile(n, cap=1024):
    """Largest tile from {1024..8} that divides n and is <= cap, else n."""
    for t in (1024, 512, 256, 128, 64, 32, 16, 8):
        if t <= cap and n % t == 0:
            return t
    return n


# --- fused: {QKV proj + relative MHA + out-proj + residual + LayerNorm1} -----

def _attn_block_kernel(x_ref, mcol_ref, mrow_ref,
                       wq_ref, bq_ref, wk_ref, bk_ref, wv_ref, bv_ref,
                       rk_ref, rv_ref, wo_ref, bo_ref, g_ref, beta_ref,
                       o_ref, *, n_heads, head_dim, window, eps, q_chunk):
    T = x_ref.shape[1]
    H = x_ref.shape[2]
    W = 2 * window + 1
    scale = 1.0 / math.sqrt(head_dim)

    x_bf = x_ref[0]                                  # (T, H) bf16
    mcol = mcol_ref[0]                               # (T, 1) f32
    mrow = mrow_ref[0]                               # (1, T) f32

    rk_bf = rk_ref[...].astype(jnp.bfloat16)         # (W, d)
    rv_bf = rv_ref[...].astype(jnp.bfloat16)         # (W, d)

    # K / V projections computed once per head (head-major weights -> free
    # leading-axis slices), kept in bf16.
    ks, vs = [], []
    for h in range(n_heads):
        k_h = jnp.dot(x_bf, wk_ref[h], preferred_element_type=jnp.float32) + bk_ref[h]
        v_h = jnp.dot(x_bf, wv_ref[h], preferred_element_type=jnp.float32) + bv_ref[h]
        ks.append(k_h.astype(jnp.bfloat16))
        vs.append(v_h.astype(jnp.bfloat16))

    n_chunks = T // q_chunk
    for c in range(n_chunks):
        c0 = c * q_chunk
        c1 = c0 + q_chunk
        # relative-position band of this q-chunk: columns [b0, b1)
        b0 = max(0, c0 - window)
        b1 = min(T, c1 + window)
        bw = b1 - b0

        # head-invariant, chunk-local quantities (hoisted out of the head loop)
        rows_g = c0 + jax.lax.broadcasted_iota(jnp.int32, (q_chunk, bw), 0)
        cols_g = b0 + jax.lax.broadcasted_iota(jnp.int32, (q_chunk, bw), 1)
        delta = cols_g - rows_g
        onehots = [(delta == (m - window)).astype(jnp.float32) for m in range(W)]
        pad_pos = (mcol[c0:c1, :] * mrow) == 0.0     # (q_chunk, T) bool
        x_chunk_bf = x_bf[c0:c1, :]                  # (q_chunk, H)

        y_c = jnp.zeros((q_chunk, H), jnp.float32)
        for h in range(n_heads):
            q_c = (jnp.dot(x_chunk_bf, wq_ref[h],
                           preferred_element_type=jnp.float32)
                   + bq_ref[h]) * scale
            q_bf = q_c.astype(jnp.bfloat16)

            # content scores (q_chunk, T) on MXU
            scores = jax.lax.dot_general(
                q_bf, ks[h], (((1,), (1,)), ((), ())),
                preferred_element_type=jnp.float32)

            # relative-key bias, restricted to the +-window band of this chunk
            rel_logits = jax.lax.dot_general(
                q_bf, rk_bf, (((1,), (1,)), ((), ())),
                preferred_element_type=jnp.float32)           # (q_chunk, W)
            bias_win = jnp.zeros((q_chunk, bw), jnp.float32)
            for m in range(W):
                bias_win = bias_win + rel_logits[:, m:m + 1] * onehots[m]
            pieces = []
            if b0 > 0:
                pieces.append(jnp.zeros((q_chunk, b0), jnp.float32))
            pieces.append(bias_win)
            if b1 < T:
                pieces.append(jnp.zeros((q_chunk, T - b1), jnp.float32))
            bias_full = pieces[0] if len(pieces) == 1 else jnp.concatenate(pieces, axis=1)
            scores = scores + bias_full

            scores = jnp.where(pad_pos, -1e4, scores)

            # softmax (f32 stats, EUP reciprocal)
            smax = jnp.max(scores, axis=-1, keepdims=True)
            e = jnp.exp(scores - smax)
            denom = jnp.sum(e, axis=-1, keepdims=True)
            p = e * pl.reciprocal(denom, approx=True)

            out_h = jnp.dot(p.astype(jnp.bfloat16), vs[h],
                            preferred_element_type=jnp.float32)  # (q_chunk, d)

            # relative-value contribution: band extraction only on the window,
            # then one tiny (q_chunk, W)@(W, d) MXU matmul.
            p_win = p[:, b0:b1]
            band = jnp.concatenate(
                [jnp.sum(p_win * onehots[m], axis=-1, keepdims=True)
                 for m in range(W)], axis=1)                     # (q_chunk, W)
            out_h = out_h + jnp.dot(band.astype(jnp.bfloat16), rv_bf,
                                    preferred_element_type=jnp.float32)

            # per-head output projection accumulated in registers (lane-dense)
            y_c = y_c + jnp.dot(out_h.astype(jnp.bfloat16), wo_ref[h],
                                preferred_element_type=jnp.float32)

        # residual + LayerNorm1 for this q-chunk
        hres = x_chunk_bf.astype(jnp.float32) + y_c + bo_ref[...]
        mu = jnp.mean(hres, axis=-1, keepdims=True)
        var = jnp.mean((hres - mu) ** 2, axis=-1, keepdims=True)
        o_ref[0, c0:c1, :] = ((hres - mu) * jax.lax.rsqrt(var + eps)
                              * g_ref[...] + beta_ref[...]).astype(o_ref.dtype)


def attn_block(x, mask_col, mask_row, layer, *, n_heads, window, eps=1e-5):
    B, T, H = x.shape
    d = H // n_heads
    W = 2 * window + 1
    q_chunk = _pick_tile(T, cap=256)
    kern = functools.partial(_attn_block_kernel, n_heads=n_heads, head_dim=d,
                             window=window, eps=eps, q_chunk=q_chunk)
    return pl.pallas_call(
        kern,
        out_shape=jax.ShapeDtypeStruct((B, T, H), jnp.bfloat16),
        grid=(B,),
        in_specs=[pl.BlockSpec((1, T, H), lambda b: (b, 0, 0)),
                  pl.BlockSpec((1, T, 1), lambda b: (b, 0, 0)),
                  pl.BlockSpec((1, 1, T), lambda b: (b, 0, 0)),
                  pl.BlockSpec((n_heads, H, d), lambda b: (0, 0, 0)),
                  pl.BlockSpec((n_heads, 1, d), lambda b: (0, 0, 0)),
                  pl.BlockSpec((n_heads, H, d), lambda b: (0, 0, 0)),
                  pl.BlockSpec((n_heads, 1, d), lambda b: (0, 0, 0)),
                  pl.BlockSpec((n_heads, H, d), lambda b: (0, 0, 0)),
                  pl.BlockSpec((n_heads, 1, d), lambda b: (0, 0, 0)),
                  pl.BlockSpec((W, d), lambda b: (0, 0)),
                  pl.BlockSpec((W, d), lambda b: (0, 0)),
                  pl.BlockSpec((n_heads, d, H), lambda b: (0, 0, 0)),
                  pl.BlockSpec((1, H), lambda b: (0, 0)),
                  pl.BlockSpec((1, H), lambda b: (0, 0)),
                  pl.BlockSpec((1, H), lambda b: (0, 0))],
        out_specs=pl.BlockSpec((1, T, H), lambda b: (b, 0, 0)),
        compiler_params=pltpu.CompilerParams(
            dimension_semantics=("parallel",),
            vmem_limit_bytes=_VMEM_LIMIT),
    )(x, mask_col, mask_row,
      layer['wq'], layer['bq'], layer['wk'], layer['bk'],
      layer['wv'], layer['bv'], layer['rel_k'], layer['rel_v'],
      layer['wo'], layer['bo'], layer['ln1_g'], layer['ln1_b'])


# ------ fused FFN: conv1 + relu + mask + conv2 + mask + residual + LN2 -------

def _ffn_block_kernel(x_ref, m_ref, w1_ref, b1_ref, w2_ref, b2_ref,
                      g_ref, beta_ref, o_ref, *, K, eps):
    T = x_ref.shape[1]
    H = x_ref.shape[2]
    Fc = w1_ref.shape[2]
    pad_l = (K - 1) // 2

    x_bf = x_ref[0]                                  # (T, H) bf16
    x_f32 = x_bf.astype(jnp.float32)
    mask = m_ref[0]                                  # (T, 1)
    xin = (x_f32 * mask).astype(jnp.bfloat16)

    def shift_rows(v, s):
        # result[t] = v[t + s], zero padded (static row shift, no VMEM scratch)
        if s == 0:
            return v
        z = jnp.zeros((abs(s), v.shape[1]), v.dtype)
        if s > 0:
            return jnp.concatenate([v[s:, :], z], axis=0)
        return jnp.concatenate([z, v[:s, :]], axis=0)

    # conv1 (same padding) + bias + relu: shift the narrow bf16 input per tap
    acc1 = jnp.zeros((T, Fc), jnp.float32)
    for j in range(K):
        acc1 = acc1 + jnp.dot(shift_rows(xin, j - pad_l), w1_ref[j],
                              preferred_element_type=jnp.float32)
    h1 = jnp.maximum(acc1 + b1_ref[...], 0.0)
    hin = (h1 * mask).astype(jnp.bfloat16)

    # conv2 (same padding): shift the narrow f32 per-tap outputs
    acc2 = jnp.zeros((T, H), jnp.float32)
    for j in range(K):
        acc2 = acc2 + shift_rows(
            jnp.dot(hin, w2_ref[j], preferred_element_type=jnp.float32),
            j - pad_l)
    y = (acc2 + b2_ref[...]) * mask

    # residual + LayerNorm2
    hres = x_f32 + y
    mu = jnp.mean(hres, axis=-1, keepdims=True)
    var = jnp.mean((hres - mu) ** 2, axis=-1, keepdims=True)
    o_ref[0] = ((hres - mu) * jax.lax.rsqrt(var + eps) * g_ref[...]
                + beta_ref[...]).astype(o_ref.dtype)


def ffn_block(x, mask_col, layer, *, eps=1e-5):
    B, T, H = x.shape
    K = layer['ffn_w1'].shape[0]
    Fc = layer['ffn_w1'].shape[2]
    kern = functools.partial(_ffn_block_kernel, K=K, eps=eps)
    return pl.pallas_call(
        kern,
        out_shape=jax.ShapeDtypeStruct((B, T, H), jnp.bfloat16),
        grid=(B,),
        in_specs=[pl.BlockSpec((1, T, H), lambda b: (b, 0, 0)),
                  pl.BlockSpec((1, T, 1), lambda b: (b, 0, 0)),
                  pl.BlockSpec((K, H, Fc), lambda b: (0, 0, 0)),
                  pl.BlockSpec((1, Fc), lambda b: (0, 0)),
                  pl.BlockSpec((K, Fc, H), lambda b: (0, 0, 0)),
                  pl.BlockSpec((1, H), lambda b: (0, 0)),
                  pl.BlockSpec((1, H), lambda b: (0, 0)),
                  pl.BlockSpec((1, H), lambda b: (0, 0))],
        out_specs=pl.BlockSpec((1, T, H), lambda b: (b, 0, 0)),
        compiler_params=pltpu.CompilerParams(
            dimension_semantics=("parallel",),
            vmem_limit_bytes=_VMEM_LIMIT),
    )(x, mask_col, layer['ffn_w1'], layer['ffn_b1'],
      layer['ffn_w2'], layer['ffn_b2'], layer['ln2_g'], layer['ln2_b'])


# --------- fused: proj (1x1 conv) + mask + reparameterization ----------------

def _proj_reparam_kernel(x_ref, w_ref, b_ref, m_ref, n_ref,
                         z_ref, stats_ref, *, out_ch, scale):
    x = x_ref[...]                                   # (tm, H) bf16
    stats = (jnp.dot(x, w_ref[...], preferred_element_type=jnp.float32)
             + b_ref[...]) * m_ref[...]
    stats_ref[...] = stats                           # lane-dense (tm, 2*out_ch)
    m = stats[:, :out_ch]
    logs = stats[:, out_ch:]
    z_ref[...] = (m + n_ref[...] * jnp.exp(logs) * scale) * m_ref[...]


def proj_reparam(x, w_bf16, b, mask_flat, noise, noise_scale, out_ch):
    N, Cin = x.shape
    C2 = w_bf16.shape[1]
    tm = _pick_tile(N, cap=1024)
    kern = functools.partial(_proj_reparam_kernel, out_ch=out_ch,
                             scale=float(noise_scale))
    return pl.pallas_call(
        kern,
        out_shape=(jax.ShapeDtypeStruct((N, out_ch), jnp.float32),
                   jax.ShapeDtypeStruct((N, C2), jnp.float32)),
        grid=(N // tm,),
        in_specs=[pl.BlockSpec((tm, Cin), lambda i: (i, 0)),
                  pl.BlockSpec((Cin, C2), lambda i: (0, 0)),
                  pl.BlockSpec((1, C2), lambda i: (0, 0)),
                  pl.BlockSpec((tm, 1), lambda i: (i, 0)),
                  pl.BlockSpec((tm, out_ch), lambda i: (i, 0))],
        out_specs=(pl.BlockSpec((tm, out_ch), lambda i: (i, 0)),
                   pl.BlockSpec((tm, C2), lambda i: (i, 0))),
        compiler_params=pltpu.CompilerParams(
            dimension_semantics=("parallel",),
            vmem_limit_bytes=_VMEM_LIMIT),
    )(x, w_bf16, b.reshape(1, C2), mask_flat, noise)


# ------------------------------- params / glue -------------------------------

def init_params(key, *, hidden, filter_ch, out_ch, n_heads, n_layers,
                kernel_size, window):
    d = hidden // n_heads
    keys = jax.random.split(key, 3 + n_layers)

    def nrm(k, shape, scale=0.02):
        return scale * jax.random.normal(k, shape, jnp.float32)

    params = {
        'f0_emb': nrm(keys[0], (256, hidden), 1.0),            # nn.Embedding(256, H)
        'proj_w': nrm(keys[1], (hidden, 2 * out_ch)),          # Conv1d(H, 2*out, 1)
        'proj_b': nrm(keys[2], (2 * out_ch,)),
        'layers': [],
    }
    for li in range(n_layers):
        lk = jax.random.split(keys[3 + li], 14)
        params['layers'].append({
            'wq': nrm(lk[0], (hidden, hidden)), 'bq': nrm(lk[1], (hidden,)),
            'wk': nrm(lk[2], (hidden, hidden)), 'bk': jnp.zeros((hidden,), jnp.float32),
            'wv': nrm(lk[3], (hidden, hidden)), 'bv': nrm(lk[4], (hidden,)),
            'wo': nrm(lk[5], (hidden, hidden)), 'bo': nrm(lk[6], (hidden,)),
            'emb_rel_k': nrm(lk[7], (2 * window + 1, d), d ** -0.5),
            'emb_rel_v': nrm(lk[8], (2 * window + 1, d), d ** -0.5),
            'ln1_g': jnp.ones((hidden,), jnp.float32), 'ln1_b': jnp.zeros((hidden,), jnp.float32),
            'ffn_w1': nrm(lk[9], (kernel_size, hidden, filter_ch)),
            'ffn_b1': nrm(lk[10], (filter_ch,)),
            'ffn_w2': nrm(lk[11], (kernel_size, filter_ch, hidden)),
            'ffn_b2': nrm(lk[12], (hidden,)),
            'ln2_g': jnp.ones((hidden,), jnp.float32), 'ln2_b': jnp.zeros((hidden,), jnp.float32),
        })
    return params


def prepare_inference_params(params, *, n_heads):
    """Hoisted once: head-major weight layout, bf16 casts, bias reshapes."""
    H = params['layers'][0]['wq'].shape[0]
    d = H // n_heads

    def head_major_in(w):      # (H, H) -> (n_heads, H, d), bf16
        return jnp.transpose(w.reshape(H, n_heads, d), (1, 0, 2)).astype(jnp.bfloat16)

    def head_major_bias(b):    # (H,) -> (n_heads, 1, d)
        return b.reshape(n_heads, 1, d)

    prep = {
        'f0_emb': params['f0_emb'],
        'proj_w': params['proj_w'].astype(jnp.bfloat16),
        'proj_b': params['proj_b'],
        'layers': [],
    }
    for L in params['layers']:
        prep['layers'].append({
            'wq': head_major_in(L['wq']), 'bq': head_major_bias(L['bq']),
            'wk': head_major_in(L['wk']), 'bk': head_major_bias(L['bk']),
            'wv': head_major_in(L['wv']), 'bv': head_major_bias(L['bv']),
            'wo': L['wo'].reshape(n_heads, d, H).astype(jnp.bfloat16),
            'bo': L['bo'].reshape(1, H),
            'rel_k': L['emb_rel_k'], 'rel_v': L['emb_rel_v'],
            'ln1_g': L['ln1_g'].reshape(1, H), 'ln1_b': L['ln1_b'].reshape(1, H),
            'ffn_w1': L['ffn_w1'].astype(jnp.bfloat16),
            'ffn_b1': L['ffn_b1'].reshape(1, -1),
            'ffn_w2': L['ffn_w2'].astype(jnp.bfloat16),
            'ffn_b2': L['ffn_b2'].reshape(1, H),
            'ln2_g': L['ln2_g'].reshape(1, H), 'ln2_b': L['ln2_b'].reshape(1, H),
        })
    return prep


def text_encoder_forward(prep, x_nct, x_mask, f0, *, n_heads, window,
                         noise_scale, noise_key):
    B, H, T = x_nct.shape

    mask_col = jnp.transpose(x_mask, (0, 2, 1))      # (B, T, 1)
    # x = x + f0_emb(f0).transpose(1, 2)   (embedding gather stays in glue)
    x = jnp.transpose(x_nct, (0, 2, 1)) + prep['f0_emb'][f0]
    x = (x * mask_col).astype(jnp.bfloat16)          # encoder entry mask, bf16 activations

    for L in prep['layers']:
        x = attn_block(x, mask_col, x_mask, L, n_heads=n_heads, window=window)
        x = ffn_block(x, mask_col, L)

    # encoder exit mask (returned hidden). Since proj(x)*mask == proj(x*mask)*mask,
    # the projection kernel consumes the unmasked bf16 activations directly.
    x_out = x.astype(jnp.float32) * mask_col         # (B, T, H)

    out_ch = prep['proj_w'].shape[1] // 2
    N = B * T
    Np = ((N + 7) // 8) * 8
    xf = x.reshape(N, H)
    mf = mask_col.reshape(N, 1)
    if Np != N:
        xf = jnp.concatenate([xf, jnp.zeros((Np - N, H), xf.dtype)], axis=0)
        mf = jnp.concatenate([mf, jnp.zeros((Np - N, 1), mf.dtype)], axis=0)
    noise = jax.random.normal(noise_key, (Np, out_ch), jnp.float32)

    z, stats = proj_reparam(xf, prep['proj_w'], prep['proj_b'], mf, noise,
                            noise_scale, out_ch)
    z = z[:N]
    stats = stats[:N]
    m = stats[:, :out_ch]
    logs = stats[:, out_ch:]

    def to_nct(a, c):
        return a.reshape(B, T, c).transpose(0, 2, 1)

    return (to_nct(z, out_ch), to_nct(m, out_ch), to_nct(logs, out_ch),
            x_mask, x_out.transpose(0, 2, 1))


# ----------------------------------- main ------------------------------------

if __name__ == "__main__":
    B, T = 2, 16
    hidden, filter_ch, out_ch = 32, 64, 8
    n_heads, n_layers, kernel_size, window = 2, 2, 3, 4

    key = jax.random.PRNGKey(0)
    kp, kx, kf, kn = jax.random.split(key, 4)
    params = init_params(kp, hidden=hidden, filter_ch=filter_ch, out_ch=out_ch,
                         n_heads=n_heads, n_layers=n_layers,
                         kernel_size=kernel_size, window=window)
    prep = prepare_inference_params(params, n_heads=n_heads)

    x = jax.random.normal(kx, (B, hidden, T), jnp.float32)        # NCT, like PyTorch
    lengths = jnp.array([T, T - 4])
    x_mask = (jnp.arange(T)[None, :] < lengths[:, None]).astype(jnp.float32)[:, None, :]
    f0 = jax.random.randint(kf, (B, T), 0, 256)

    outs = text_encoder_forward(prep, x, x_mask, f0, n_heads=n_heads,
                                window=window, noise_scale=1.0, noise_key=kn)
    outs = jax.block_until_ready(outs)
    z, m, logs, xm, xh = outs
    assert z.shape == (B, out_ch, T)
    assert m.shape == (B, out_ch, T)
    assert logs.shape == (B, out_ch, T)
    assert xm.shape == (B, 1, T)
    assert xh.shape == (B, hidden, T)
    assert bool(jnp.all(jnp.isfinite(z))) and bool(jnp.all(jnp.isfinite(xh)))
    print("KERNEL_OK")
</pallas_src>

<mosaic_0001>
module attributes {stable_mosaic.version = 11 : i64} {
  func.func @_attn_block_kernel(%arg0: i32, %arg1: memref<1x16x32xbf16, #tpu.memory_space<vmem>>, %arg2: memref<1x16x1xf32, #tpu.memory_space<vmem>>, %arg3: memref<1x1x16xf32, #tpu.memory_space<vmem>>, %arg4: memref<2x32x16xbf16, #tpu.memory_space<vmem>>, %arg5: memref<2x1x16xf32, #tpu.memory_space<vmem>>, %arg6: memref<2x32x16xbf16, #tpu.memory_space<vmem>>, %arg7: memref<2x1x16xf32, #tpu.memory_space<vmem>>, %arg8: memref<2x32x16xbf16, #tpu.memory_space<vmem>>, %arg9: memref<2x1x16xf32, #tpu.memory_space<vmem>>, %arg10: memref<9x16xf32, #tpu.memory_space<vmem>>, %arg11: memref<9x16xf32, #tpu.memory_space<vmem>>, %arg12: memref<2x16x32xbf16, #tpu.memory_space<vmem>>, %arg13: memref<1x32xf32, #tpu.memory_space<vmem>>, %arg14: memref<1x32xf32, #tpu.memory_space<vmem>>, %arg15: memref<1x32xf32, #tpu.memory_space<vmem>>, %arg16: memref<1x16x32xbf16, #tpu.memory_space<vmem>>) attributes {dimension_semantics = [#tpu.dimension_semantics<parallel>], iteration_bounds = array<i64: 2>, scalar_prefetch = 0 : i64, scratch_operands = 0 : i64, tpu.core_type = #tpu.core_type<tc>, window_params = [{transform_indices = @transform_0, window_bounds = array<i64: 1, 16, 32>}, {transform_indices = @transform_1, window_bounds = array<i64: 1, 16, 1>}, {transform_indices = @transform_2, window_bounds = array<i64: 1, 1, 16>}, {pipeline_mode = #tpu.pipeline_mode<synchronous>, transform_indices = @transform_3, window_bounds = array<i64: 2, 32, 16>}, {pipeline_mode = #tpu.pipeline_mode<synchronous>, transform_indices = @transform_4, window_bounds = array<i64: 2, 1, 16>}, {pipeline_mode = #tpu.pipeline_mode<synchronous>, transform_indices = @transform_5, window_bounds = array<i64: 2, 32, 16>}, {pipeline_mode = #tpu.pipeline_mode<synchronous>, transform_indices = @transform_6, window_bounds = array<i64: 2, 1, 16>}, {pipeline_mode = #tpu.pipeline_mode<synchronous>, transform_indices = @transform_7, window_bounds = array<i64: 2, 32, 16>}, {pipeline_mode = #tpu.pipeline_mode<synchronous>, transform_indices = @transform_8, window_bounds = array<i64: 2, 1, 16>}, {pipeline_mode = #tpu.pipeline_mode<synchronous>, transform_indices = @transform_9, window_bounds = array<i64: 9, 16>}, {pipeline_mode = #tpu.pipeline_mode<synchronous>, transform_indices = @transform_10, window_bounds = array<i64: 9, 16>}, {pipeline_mode = #tpu.pipeline_mode<synchronous>, transform_indices = @transform_11, window_bounds = array<i64: 2, 16, 32>}, {pipeline_mode = #tpu.pipeline_mode<synchronous>, transform_indices = @transform_12, window_bounds = array<i64: 1, 32>}, {pipeline_mode = #tpu.pipeline_mode<synchronous>, transform_indices = @transform_13, window_bounds = array<i64: 1, 32>}, {pipeline_mode = #tpu.pipeline_mode<synchronous>, transform_indices = @transform_14, window_bounds = array<i64: 1, 32>}, {transform_indices = @transform_15, window_bounds = array<i64: 1, 16, 32>}]} {
    %c0 = arith.constant 0 : index
    %c0_0 = arith.constant 0 : index
    %c0_1 = arith.constant 0 : index
    %0 = vector.load %arg1[%c0, %c0_0, %c0_1] : memref<1x16x32xbf16, #tpu.memory_space<vmem>>, vector<1x16x32xbf16>
    %1 = vector.shape_cast %0 : vector<1x16x32xbf16> to vector<16x32xbf16>
    %c0_2 = arith.constant 0 : index
    %c0_3 = arith.constant 0 : index
    %c0_4 = arith.constant 0 : index
    %2 = vector.load %arg2[%c0_2, %c0_3, %c0_4] : memref<1x16x1xf32, #tpu.memory_space<vmem>>, vector<1x16x1xf32>
    %3 = vector.shape_cast %2 : vector<1x16x1xf32> to vector<16x1xf32>
    %c0_5 = arith.constant 0 : index
    %c0_6 = arith.constant 0 : index
    %c0_7 = arith.constant 0 : index
    %4 = vector.load %arg3[%c0_5, %c0_6, %c0_7] : memref<1x1x16xf32, #tpu.memory_space<vmem>>, vector<1x1x16xf32>
    %5 = vector.shape_cast %4 : vector<1x1x16xf32> to vector<1x16xf32>
    %c0_8 = arith.constant 0 : index
    %c0_9 = arith.constant 0 : index
    %6 = vector.load %arg10[%c0_8, %c0_9] : memref<9x16xf32, #tpu.memory_space<vmem>>, vector<9x16xf32>
    %7 = arith.truncf %6 : vector<9x16xf32> to vector<9x16xbf16>
    %c0_10 = arith.constant 0 : index
    %c0_11 = arith.constant 0 : index
    %8 = vector.load %arg11[%c0_10, %c0_11] : memref<9x16xf32, #tpu.memory_space<vmem>>, vector<9x16xf32>
    %9 = arith.truncf %8 : vector<9x16xf32> to vector<9x16xbf16>
    %c0_12 = arith.constant 0 : index
    %c0_13 = arith.constant 0 : index
    %c0_14 = arith.constant 0 : index
    %10 = vector.load %arg6[%c0_12, %c0_13, %c0_14] : memref<2x32x16xbf16, #tpu.memory_space<vmem>>, vector<1x32x16xbf16>
    %11 = vector.shape_cast %10 : vector<1x32x16xbf16> to vector<32x16xbf16>
    %cst = arith.constant dense<0.000000e+00> : vector<16x16xf32>
    %12 = tpu.matmul %1, %11, %cst {dimension_numbers = #tpu.dot_dimension_numbers<[1], [0], [0], [1], [0, 0, 1, 1], [], []>} : vector<16x32xbf16>, vector<32x16xbf16>, vector<16x16xf32> -> vector<16x16xf32>
    %c0_15 = arith.constant 0 : index
    %c0_16 = arith.constant 0 : index
    %c0_17 = arith.constant 0 : index
    %13 = vector.load %arg7[%c0_15, %c0_16, %c0_17] : memref<2x1x16xf32, #tpu.memory_space<vmem>>, vector<1x1x16xf32>
    %14 = vector.shape_cast %13 : vector<1x1x16xf32> to vector<1x16xf32>
    %15 = vector.broadcast %14 : vector<1x16xf32> to vector<16x16xf32>
    %16 = arith.addf %12, %15 : vector<16x16xf32>
    %c0_18 = arith.constant 0 : index
    %c0_19 = arith.constant 0 : index
    %c0_20 = arith.constant 0 : index
    %17 = vector.load %arg8[%c0_18, %c0_19, %c0_20] : memref<2x32x16xbf16, #tpu.memory_space<vmem>>, vector<1x32x16xbf16>
    %18 = vector.shape_cast %17 : vector<1x32x16xbf16> to vector<32x16xbf16>
    %cst_21 = arith.constant dense<0.000000e+00> : vector<16x16xf32>
    %19 = tpu.matmul %1, %18, %cst_21 {dimension_numbers = #tpu.dot_dimension_numbers<[1], [0], [0], [1], [0, 0, 1, 1], [], []>} : vector<16x32xbf16>, vector<32x16xbf16>, vector<16x16xf32> -> vector<16x16xf32>
    %c0_22 = arith.constant 0 : index
    %c0_23 = arith.constant 0 : index
    %c0_24 = arith.constant 0 : index
    %20 = vector.load %arg9[%c0_22, %c0_23, %c0_24] : memref<2x1x16xf32, #tpu.memory_space<vmem>>, vector<1x1x16xf32>
    %21 = vector.shape_cast %20 : vector<1x1x16xf32> to vector<1x16xf32>
    %22 = vector.broadcast %21 : vector<1x16xf32> to vector<16x16xf32>
    %23 = arith.addf %19, %22 : vector<16x16xf32>
    %24 = arith.truncf %16 : vector<16x16xf32> to vector<16x16xbf16>
    %25 = arith.truncf %23 : vector<16x16xf32> to vector<16x16xbf16>
    %c1 = arith.constant 1 : index
    %c0_25 = arith.constant 0 : index
    %c0_26 = arith.constant 0 : index
    %26 = vector.load %arg6[%c1, %c0_25, %c0_26] : memref<2x32x16xbf16, #tpu.memory_space<vmem>>, vector<1x32x16xbf16>
    %27 = vector.shape_cast %26 : vector<1x32x16xbf16> to vector<32x16xbf16>
    %cst_27 = arith.constant dense<0.000000e+00> : vector<16x16xf32>
    %28 = tpu.matmul %1, %27, %cst_27 {dimension_numbers = #tpu.dot_dimension_numbers<[1], [0], [0], [1], [0, 0, 1, 1], [], []>} : vector<16x32xbf16>, vector<32x16xbf16>, vector<16x16xf32> -> vector<16x16xf32>
    %c1_28 = arith.constant 1 : index
    %c0_29 = arith.constant 0 : index
    %c0_30 = arith.constant 0 : index
    %29 = vector.load %arg7[%c1_28, %c0_29, %c0_30] : memref<2x1x16xf32, #tpu.memory_space<vmem>>, vector<1x1x16xf32>
    %30 = vector.shape_cast %29 : vector<1x1x16xf32> to vector<1x16xf32>
    %31 = vector.broadcast %30 : vector<1x16xf32> to vector<16x16xf32>
    %32 = arith.addf %28, %31 : vector<16x16xf32>
    %c1_31 = arith.constant 1 : index
    %c0_32 = arith.constant 0 : index
    %c0_33 = arith.constant 0 : index
    %33 = vector.load %arg8[%c1_31, %c0_32, %c0_33] : memref<2x32x16xbf16, #tpu.memory_space<vmem>>, vector<1x32x16xbf16>
    %34 = vector.shape_cast %33 : vector<1x32x16xbf16> to vector<32x16xbf16>
    %cst_34 = arith.constant dense<0.000000e+00> : vector<16x16xf32>
    %35 = tpu.matmul %1, %34, %cst_34 {dimension_numbers = #tpu.dot_dimension_numbers<[1], [0], [0], [1], [0, 0, 1, 1], [], []>} : vector<16x32xbf16>, vector<32x16xbf16>, vector<16x16xf32> -> vector<16x16xf32>
    %c1_35 = arith.constant 1 : index
    %c0_36 = arith.constant 0 : index
    %c0_37 = arith.constant 0 : index
    %36 = vector.load %arg9[%c1_35, %c0_36, %c0_37] : memref<2x1x16xf32, #tpu.memory_space<vmem>>, vector<1x1x16xf32>
    %37 = vector.shape_cast %36 : vector<1x1x16xf32> to vector<1x16xf32>
    %38 = vector.broadcast %37 : vector<1x16xf32> to vector<16x16xf32>
    %39 = arith.addf %35, %38 : vector<16x16xf32>
    %40 = arith.truncf %32 : vector<16x16xf32> to vector<16x16xbf16>
    %41 = arith.truncf %39 : vector<16x16xf32> to vector<16x16xbf16>
    %42 = tpu.iota {dimensions = array<i32: 0>} : vector<16x16xi32>
    %c0_i32 = arith.constant 0 : i32
    %43 = vector.broadcast %c0_i32 : i32 to vector<16x16xi32>
    %44 = arith.addi %43, %42 : vector<16x16xi32>
    %45 = tpu.iota {dimensions = array<i32: 1>} : vector<16x16xi32>
    %c0_i32_38 = arith.constant 0 : i32
    %46 = vector.broadcast %c0_i32_38 : i32 to vector<16x16xi32>
    %47 = arith.addi %46, %45 : vector<16x16xi32>
    %48 = arith.subi %47, %44 : vector<16x16xi32>
    %c-4_i32 = arith.constant -4 : i32
    %49 = vector.broadcast %c-4_i32 : i32 to vector<16x16xi32>
    %50 = arith.cmpi eq, %48, %49 : vector<16x16xi32>
    %51 = arith.extui %50 : vector<16x16xi1> to vector<16x16xi32>
    %52 = arith.sitofp %51 : vector<16x16xi32> to vector<16x16xf32>
    %c-3_i32 = arith.constant -3 : i32
    %53 = vector.broadcast %c-3_i32 : i32 to vector<16x16xi32>
    %54 = arith.cmpi eq, %48, %53 : vector<16x16xi32>
    %55 = arith.extui %54 : vector<16x16xi1> to vector<16x16xi32>
    %56 = arith.sitofp %55 : vector<16x16xi32> to vector<16x16xf32>
    %c-2_i32 = arith.constant -2 : i32
    %57 = vector.broadcast %c-2_i32 : i32 to vector<16x16xi32>
    %58 = arith.cmpi eq, %48, %57 : vector<16x16xi32>
    %59 = arith.extui %58 : vector<16x16xi1> to vector<16x16xi32>
    %60 = arith.sitofp %59 : vector<16x16xi32> to vector<16x16xf32>
    %c-1_i32 = arith.constant -1 : i32
    %61 = vector.broadcast %c-1_i32 : i32 to vector<16x16xi32>
    %62 = arith.cmpi eq, %48, %61 : vector<16x16xi32>
    %63 = arith.extui %62 : vector<16x16xi1> to vector<16x16xi32>
    %64 = arith.sitofp %63 : vector<16x16xi32> to vector<16x16xf32>
    %c0_i32_39 = arith.constant 0 : i32
    %65 = vector.broadcast %c0_i32_39 : i32 to vector<16x16xi32>
    %66 = arith.cmpi eq, %48, %65 : vector<16x16xi32>
    %67 = arith.extui %66 : vector<16x16xi1> to vector<16x16xi32>
    %68 = arith.sitofp %67 : vector<16x16xi32> to vector<16x16xf32>
    %c1_i32 = arith.constant 1 : i32
    %69 = vector.broadcast %c1_i32 : i32 to vector<16x16xi32>
    %70 = arith.cmpi eq, %48, %69 : vector<16x16xi32>
    %71 = arith.extui %70 : vector<16x16xi1> to vector<16x16xi32>
    %72 = arith.sitofp %71 : vector<16x16xi32> to vector<16x16xf32>
    %c2_i32 = arith.constant 2 : i32
    %73 = vector.broadcast %c2_i32 : i32 to vector<16x16xi32>
    %74 = arith.cmpi eq, %48, %73 : vector<16x16xi32>
    %75 = arith.extui %74 : vector<16x16xi1> to vector<16x16xi32>
    %76 = arith.sitofp %75 : vector<16x16xi32> to vector<16x16xf32>
    %c3_i32 = arith.constant 3 : i32
    %77 = vector.broadcast %c3_i32 : i32 to vector<16x16xi32>
    %78 = arith.cmpi eq, %48, %77 : vector<16x16xi32>
    %79 = arith.extui %78 : vector<16x16xi1> to vector<16x16xi32>
    %80 = arith.sitofp %79 : vector<16x16xi32> to vector<16x16xf32>
    %c4_i32 = arith.constant 4 : i32
    %81 = vector.broadcast %c4_i32 : i32 to vector<16x16xi32>
    %82 = arith.cmpi eq, %48, %81 : vector<16x16xi32>
    %83 = arith.extui %82 : vector<16x16xi1> to vector<16x16xi32>
    %84 = arith.sitofp %83 : vector<16x16xi32> to vector<16x16xf32>
    %85 = vector.broadcast %3 : vector<16x1xf32> to vector<16x16xf32>
    %86 = vector.broadcast %5 : vector<1x16xf32> to vector<16x16xf32>
    %87 = arith.mulf %85, %86 : vector<16x16xf32>
    %cst_40 = arith.constant 0.000000e+00 : f32
    %88 = vector.broadcast %cst_40 : f32 to vector<16x16xf32>
    %89 = arith.cmpf oeq, %87, %88 : vector<16x16xf32>
    %cst_41 = arith.constant 0.000000e+00 : f32
    %90 = vector.broadcast %cst_41 : f32 to vector<16x32xf32>
    %c0_42 = arith.constant 0 : index
    %c0_43 = arith.constant 0 : index
    %c0_44 = arith.constant 0 : index
    %91 = vector.load %arg4[%c0_42, %c0_43, %c0_44] : memref<2x32x16xbf16, #tpu.memory_space<vmem>>, vector<1x32x16xbf16>
    %92 = vector.shape_cast %91 : vector<1x32x16xbf16> to vector<32x16xbf16>
    %cst_45 = arith.constant dense<0.000000e+00> : vector<16x16xf32>
    %93 = tpu.matmul %1, %92, %cst_45 {dimension_numbers = #tpu.dot_dimension_numbers<[1], [0], [0], [1], [0, 0, 1, 1], [], []>} : vector<16x32xbf16>, vector<32x16xbf16>, vector<16x16xf32> -> vector<16x16xf32>
    %c0_46 = arith.constant 0 : index
    %c0_47 = arith.constant 0 : index
    %c0_48 = arith.constant 0 : index
    %94 = vector.load %arg5[%c0_46, %c0_47, %c0_48] : memref<2x1x16xf32, #tpu.memory_space<vmem>>, vector<1x1x16xf32>
    %95 = vector.shape_cast %94 : vector<1x1x16xf32> to vector<1x16xf32>
    %96 = vector.broadcast %95 : vector<1x16xf32> to vector<16x16xf32>
    %97 = arith.addf %93, %96 : vector<16x16xf32>
    %cst_49 = arith.constant 2.500000e-01 : f32
    %98 = vector.broadcast %cst_49 : f32 to vector<16x16xf32>
    %99 = arith.mulf %97, %98 : vector<16x16xf32>
    %100 = arith.truncf %99 : vector<16x16xf32> to vector<16x16xbf16>
    %cst_50 = arith.constant dense<0.000000e+00> : vector<16x16xf32>
    %101 = tpu.matmul %100, %24, %cst_50 {dimension_numbers = #tpu.dot_dimension_numbers<[1], [1], [0], [0], [0, 0, 1, 0], [], []>} : vector<16x16xbf16>, vector<16x16xbf16>, vector<16x16xf32> -> vector<16x16xf32>
    %cst_51 = arith.constant dense<0.000000e+00> : vector<16x9xf32>
    %102 = tpu.matmul %100, %7, %cst_51 {dimension_numbers = #tpu.dot_dimension_numbers<[1], [1], [0], [0], [0, 0, 1, 0], [], []>} : vector<16x16xbf16>, vector<9x16xbf16>, vector<16x9xf32> -> vector<16x9xf32>
    %cst_52 = arith.constant 0.000000e+00 : f32
    %103 = vector.broadcast %cst_52 : f32 to vector<16x16xf32>
    %104 = vector.extract_strided_slice %102 {offsets = [0, 0], sizes = [16, 1], strides = [1, 1]} : vector<16x9xf32> to vector<16x1xf32>
    %105 = vector.broadcast %104 : vector<16x1xf32> to vector<16x16xf32>
    %106 = arith.mulf %105, %52 : vector<16x16xf32>
    %107 = arith.addf %103, %106 : vector<16x16xf32>
    %108 = vector.extract_strided_slice %102 {offsets = [0, 1], sizes = [16, 1], strides = [1, 1]} : vector<16x9xf32> to vector<16x1xf32>
    %109 = vector.broadcast %108 : vector<16x1xf32> to vector<16x16xf32>
    %110 = arith.mulf %109, %56 : vector<16x16xf32>
    %111 = arith.addf %107, %110 : vector<16x16xf32>
    %112 = vector.extract_strided_slice %102 {offsets = [0, 2], sizes = [16, 1], strides = [1, 1]} : vector<16x9xf32> to vector<16x1xf32>
    %113 = vector.broadcast %112 : vector<16x1xf32> to vector<16x16xf32>
    %114 = arith.mulf %113, %60 : vector<16x16xf32>
    %115 = arith.addf %111, %114 : vector<16x16xf32>
    %116 = vector.extract_strided_slice %102 {offsets = [0, 3], sizes = [16, 1], strides = [1, 1]} : vector<16x9xf32> to vector<16x1xf32>
    %117 = vector.broadcast %116 : vector<16x1xf32> to vector<16x16xf32>
    %118 = arith.mulf %117, %64 : vector<16x16xf32>
    %119 = arith.addf %115, %118 : vector<16x16xf32>
    %120 = vector.extract_strided_slice %102 {offsets = [0, 4], sizes = [16, 1], strides = [1, 1]} : vector<16x9xf32> to vector<16x1xf32>
    %121 = vector.broadcast %120 : vector<16x1xf32> to vector<16x16xf32>
    %122 = arith.mulf %121, %68 : vector<16x16xf32>
    %123 = arith.addf %119, %122 : vector<16x16xf32>
    %124 = vector.extract_strided_slice %102 {offsets = [0, 5], sizes = [16, 1], strides = [1, 1]} : vector<16x9xf32> to vector<16x1xf32>
    %125 = vector.broadcast %124 : vector<16x1xf32> to vector<16x16xf32>
    %126 = arith.mulf %125, %72 : vector<16x16xf32>
    %127 = arith.addf %123, %126 : vector<16x16xf32>
    %128 = vector.extract_strided_slice %102 {offsets = [0, 6], sizes = [16, 1], strides = [1, 1]} : vector<16x9xf32> to vector<16x1xf32>
    %129 = vector.broadcast %128 : vector<16x1xf32> to vector<16x16xf32>
    %130 = arith.mulf %129, %76 : vector<16x16xf32>
    %131 = arith.addf %127, %130 : vector<16x16xf32>
    %132 = vector.extract_strided_slice %102 {offsets = [0, 7], sizes = [16, 1], strides = [1, 1]} : vector<16x9xf32> to vector<16x1xf32>
    %133 = vector.broadcast %132 : vector<16x1xf32> to vector<16x16xf32>
    %134 = arith.mulf %133, %80 : vector<16x16xf32>
    %135 = arith.addf %131, %134 : vector<16x16xf32>
    %136 = vector.extract_strided_slice %102 {offsets = [0, 8], sizes = [16, 1], strides = [1, 1]} : vector<16x9xf32> to vector<16x1xf32>
    %137 = vector.broadcast %136 : vector<16x1xf32> to vector<16x16xf32>
    %138 = arith.mulf %137, %84 : vector<16x16xf32>
    %139 = arith.addf %135, %138 : vector<16x16xf32>
    %140 = arith.addf %101, %139 : vector<16x16xf32>
    %cst_53 = arith.constant -1.000000e+04 : f32
    %141 = vector.broadcast %cst_53 : f32 to vector<16x16xf32>
    %142 = arith.select %89, %141, %140 : vector<16x16xi1>, vector<16x16xf32>
    %cst_54 = arith.constant dense<0xFF800000> : vector<16xf32>
    %143 = vector.multi_reduction <maximumf>, %142, %cst_54 [1] : vector<16x16xf32> to vector<16xf32>
    %144 = vector.shape_cast %143 : vector<16xf32> to vector<16x1xf32>
    %145 = vector.broadcast %144 : vector<16x1xf32> to vector<16x16xf32>
    %146 = arith.subf %142, %145 : vector<16x16xf32>
    %147 = math.exp %146 : vector<16x16xf32>
    %cst_55 = arith.constant dense<0.000000e+00> : vector<16xf32>
    %148 = vector.multi_reduction <add>, %147, %cst_55 [1] : vector<16x16xf32> to vector<16xf32>
    %149 = vector.shape_cast %148 : vector<16xf32> to vector<16x1xf32>
    %150 = tpu.reciprocal %149 {approx = true} : vector<16x1xf32> -> vector<16x1xf32>
    %151 = vector.broadcast %150 : vector<16x1xf32> to vector<16x16xf32>
    %152 = arith.mulf %147, %151 : vector<16x16xf32>
    %153 = arith.truncf %152 : vector<16x16xf32> to vector<16x16xbf16>
    %cst_56 = arith.constant dense<0.000000e+00> : vector<16x16xf32>
    %154 = tpu.matmul %153, %25, %cst_56 {dimension_numbers = #tpu.dot_dimension_numbers<[1], [0], [0], [1], [0, 0, 1, 1], [], []>} : vector<16x16xbf16>, vector<16x16xbf16>, vector<16x16xf32> -> vector<16x16xf32>
    %155 = arith.mulf %152, %52 : vector<16x16xf32>
    %cst_57 = arith.constant dense<0.000000e+00> : vector<16xf32>
    %156 = vector.multi_reduction <add>, %155, %cst_57 [1] : vector<16x16xf32> to vector<16xf32>
    %157 = vector.shape_cast %156 : vector<16xf32> to vector<16x1xf32>
    %158 = arith.mulf %152, %56 : vector<16x16xf32>
    %cst_58 = arith.constant dense<0.000000e+00> : vector<16xf32>
    %159 = vector.multi_reduction <add>, %158, %cst_58 [1] : vector<16x16xf32> to vector<16xf32>
    %160 = vector.shape_cast %159 : vector<16xf32> to vector<16x1xf32>
    %161 = arith.mulf %152, %60 : vector<16x16xf32>
    %cst_59 = arith.constant dense<0.000000e+00> : vector<16xf32>
    %162 = vector.multi_reduction <add>, %161, %cst_59 [1] : vector<16x16xf32> to vector<16xf32>
    %163 = vector.shape_cast %162 : vector<16xf32> to vector<16x1xf32>
    %164 = arith.mulf %152, %64 : vector<16x16xf32>
    %cst_60 = arith.constant dense<0.000000e+00> : vector<16xf32>
    %165 = vector.multi_reduction <add>, %164, %cst_60 [1] : vector<16x16xf32> to vector<16xf32>
    %166 = vector.shape_cast %165 : vector<16xf32> to vector<16x1xf32>
    %167 = arith.mulf %152, %68 : vector<16x16xf32>
    %cst_61 = arith.constant dense<0.000000e+00> : vector<16xf32>
    %168 = vector.multi_reduction <add>, %167, %cst_61 [1] : vector<16x16xf32> to vector<16xf32>
    %169 = vector.shape_cast %168 : vector<16xf32> to vector<16x1xf32>
    %170 = arith.mulf %152, %72 : vector<16x16xf32>
    %cst_62 = arith.constant dense<0.000000e+00> : vector<16xf32>
    %171 = vector.multi_reduction <add>, %170, %cst_62 [1] : vector<16x16xf32> to vector<16xf32>
    %172 = vector.shape_cast %171 : vector<16xf32> to vector<16x1xf32>
    %173 = arith.mulf %152, %76 : vector<16x16xf32>
    %cst_63 = arith.constant dense<0.000000e+00> : vector<16xf32>
    %174 = vector.multi_reduction <add>, %173, %cst_63 [1] : vector<16x16xf32> to vector<16xf32>
    %175 = vector.shape_cast %174 : vector<16xf32> to vector<16x1xf32>
    %176 = arith.mulf %152, %80 : vector<16x16xf32>
    %cst_64 = arith.constant dense<0.000000e+00> : vector<16xf32>
    %177 = vector.multi_reduction <add>, %176, %cst_64 [1] : vector<16x16xf32> to vector<16xf32>
    %178 = vector.shape_cast %177 : vector<16xf32> to vector<16x1xf32>
    %179 = arith.mulf %152, %84 : vector<16x16xf32>
    %cst_65 = arith.constant dense<0.000000e+00> : vector<16xf32>
    %180 = vector.multi_reduction <add>, %179, %cst_65 [1] : vector<16x16xf32> to vector<16xf32>
    %181 = vector.shape_cast %180 : vector<16xf32> to vector<16x1xf32>
    %182 = tpu.concatenate %157, %160, %163, %166, %169, %172, %175, %178, %181 in 1 : vector<16x1xf32>, vector<16x1xf32>, vector<16x1xf32>, vector<16x1xf32>, vector<16x1xf32>, vector<16x1xf32>, vector<16x1xf32>, vector<16x1xf32>, vector<16x1xf32> -> vector<16x9xf32>
    %183 = arith.truncf %182 : vector<16x9xf32> to vector<16x9xbf16>
    %cst_66 = arith.constant dense<0.000000e+00> : vector<16x16xf32>
    %184 = tpu.matmul %183, %9, %cst_66 {dimension_numbers = #tpu.dot_dimension_numbers<[1], [0], [0], [1], [0, 0, 1, 1], [], []>} : vector<16x9xbf16>, vector<9x16xbf16>, vector<16x16xf32> -> vector<16x16xf32>
    %185 = arith.addf %154, %184 : vector<16x16xf32>
    %186 = arith.truncf %185 : vector<16x16xf32> to vector<16x16xbf16>
    %c0_67 = arith.constant 0 : index
    %c0_68 = arith.constant 0 : index
    %c0_69 = arith.constant 0 : index
    %187 = vector.load %arg12[%c0_67, %c0_68, %c0_69] : memref<2x16x32xbf16, #tpu.memory_space<vmem>>, vector<1x16x32xbf16>
    %188 = vector.shape_cast %187 : vector<1x16x32xbf16> to vector<16x32xbf16>
    %cst_70 = arith.constant dense<0.000000e+00> : vector<16x32xf32>
    %189 = tpu.matmul %186, %188, %cst_70 {dimension_numbers = #tpu.dot_dimension_numbers<[1], [0], [0], [1], [0, 0, 1, 1], [], []>} : vector<16x16xbf16>, vector<16x32xbf16>, vector<16x32xf32> -> vector<16x32xf32>
    %190 = arith.addf %90, %189 : vector<16x32xf32>
    %c1_71 = arith.constant 1 : index
    %c0_72 = arith.constant 0 : index
    %c0_73 = arith.constant 0 : index
    %191 = vector.load %arg4[%c1_71, %c0_72, %c0_73] : memref<2x32x16xbf16, #tpu.memory_space<vmem>>, vector<1x32x16xbf16>
    %192 = vector.shape_cast %191 : vector<1x32x16xbf16> to vector<32x16xbf16>
    %cst_74 = arith.constant dense<0.000000e+00> : vector<16x16xf32>
    %193 = tpu.matmul %1, %192, %cst_74 {dimension_numbers = #tpu.dot_dimension_numbers<[1], [0], [0], [1], [0, 0, 1, 1], [], []>} : vector<16x32xbf16>, vector<32x16xbf16>, vector<16x16xf32> -> vector<16x16xf32>
    %c1_75 = arith.constant 1 : index
    %c0_76 = arith.constant 0 : index
    %c0_77 = arith.constant 0 : index
    %194 = vector.load %arg5[%c1_75, %c0_76, %c0_77] : memref<2x1x16xf32, #tpu.memory_space<vmem>>, vector<1x1x16xf32>
    %195 = vector.shape_cast %194 : vector<1x1x16xf32> to vector<1x16xf32>
    %196 = vector.broadcast %195 : vector<1x16xf32> to vector<16x16xf32>
    %197 = arith.addf %193, %196 : vector<16x16xf32>
    %cst_78 = arith.constant 2.500000e-01 : f32
    %198 = vector.broadcast %cst_78 : f32 to vector<16x16xf32>
    %199 = arith.mulf %197, %198 : vector<16x16xf32>
    %200 = arith.truncf %199 : vector<16x16xf32> to vector<16x16xbf16>
    %cst_79 = arith.constant dense<0.000000e+00> : vector<16x16xf32>
    %201 = tpu.matmul %200, %40, %cst_79 {dimension_numbers = #tpu.dot_dimension_numbers<[1], [1], [0], [0], [0, 0, 1, 0], [], []>} : vector<16x16xbf16>, vector<16x16xbf16>, vector<16x16xf32> -> vector<16x16xf32>
    %cst_80 = arith.constant dense<0.000000e+00> : vector<16x9xf32>
    %202 = tpu.matmul %200, %7, %cst_80 {dimension_numbers = #tpu.dot_dimension_numbers<[1], [1], [0], [0], [0, 0, 1, 0], [], []>} : vector<16x16xbf16>, vector<9x16xbf16>, vector<16x9xf32> -> vector<16x9xf32>
    %cst_81 = arith.constant 0.000000e+00 : f32
    %203 = vector.broadcast %cst_81 : f32 to vector<16x16xf32>
    %204 = vector.extract_strided_slice %202 {offsets = [0, 0], sizes = [16, 1], strides = [1, 1]} : vector<16x9xf32> to vector<16x1xf32>
    %205 = vector.broadcast %204 : vector<16x1xf32> to vector<16x16xf32>
    %206 = arith.mulf %205, %52 : vector<16x16xf32>
    %207 = arith.addf %203, %206 : vector<16x16xf32>
    %208 = vector.extract_strided_slice %202 {offsets = [0, 1], sizes = [16, 1], strides = [1, 1]} : vector<16x9xf32> to vector<16x1xf32>
    %209 = vector.broadcast %208 : vector<16x1xf32> to vector<16x16xf32>
    %210 = arith.mulf %209, %56 : vector<16x16xf32>
    %211 = arith.addf %207, %210 : vector<16x16xf32>
    %212 = vector.extract_strided_slice %202 {offsets = [0, 2], sizes = [16, 1], strides = [1, 1]} : vector<16x9xf32> to vector<16x1xf32>
    %213 = vector.broadcast %212 : vector<16x1xf32> to vector<16x16xf32>
    %214 = arith.mulf %213, %60 : vector<16x16xf32>
    %215 = arith.addf %211, %214 : vector<16x16xf32>
    %216 = vector.extract_strided_slice %202 {offsets = [0, 3], sizes = [16, 1], strides = [1, 1]} : vector<16x9xf32> to vector<16x1xf32>
    %217 = vector.broadcast %216 : vector<16x1xf32> to vector<16x16xf32>
    %218 = arith.mulf %217, %64 : vector<16x16xf32>
    %219 = arith.addf %215, %218 : vector<16x16xf32>
    %220 = vector.extract_strided_slice %202 {offsets = [0, 4], sizes = [16, 1], strides = [1, 1]} : vector<16x9xf32> to vector<16x1xf32>
    %221 = vector.broadcast %220 : vector<16x1xf32> to vector<16x16xf32>
    %222 = arith.mulf %221, %68 : vector<16x16xf32>
    %223 = arith.addf %219, %222 : vector<16x16xf32>
    %224 = vector.extract_strided_slice %202 {offsets = [0, 5], sizes = [16, 1], strides = [1, 1]} : vector<16x9xf32> to vector<16x1xf32>
    %225 = vector.broadcast %224 : vector<16x1xf32> to vector<16x16xf32>
    %226 = arith.mulf %225, %72 : vector<16x16xf32>
    %227 = arith.addf %223, %226 : vector<16x16xf32>
    %228 = vector.extract_strided_slice %202 {offsets = [0, 6], sizes = [16, 1], strides = [1, 1]} : vector<16x9xf32> to vector<16x1xf32>
    %229 = vector.broadcast %228 : vector<16x1xf32> to vector<16x16xf32>
    %230 = arith.mulf %229, %76 : vector<16x16xf32>
    %231 = arith.addf %227, %230 : vector<16x16xf32>
    %232 = vector.extract_strided_slice %202 {offsets = [0, 7], sizes = [16, 1], strides = [1, 1]} : vector<16x9xf32> to vector<16x1xf32>
    %233 = vector.broadcast %232 : vector<16x1xf32> to vector<16x16xf32>
    %234 = arith.mulf %233, %80 : vector<16x16xf32>
    %235 = arith.addf %231, %234 : vector<16x16xf32>
    %236 = vector.extract_strided_slice %202 {offsets = [0, 8], sizes = [16, 1], strides = [1, 1]} : vector<16x9xf32> to vector<16x1xf32>
    %237 = vector.broadcast %236 : vector<16x1xf32> to vector<16x16xf32>
    %238 = arith.mulf %237, %84 : vector<16x16xf32>
    %239 = arith.addf %235, %238 : vector<16x16xf32>
    %240 = arith.addf %201, %239 : vector<16x16xf32>
    %cst_82 = arith.constant -1.000000e+04 : f32
    %241 = vector.broadcast %cst_82 : f32 to vector<16x16xf32>
    %242 = arith.select %89, %241, %240 : vector<16x16xi1>, vector<16x16xf32>
    %cst_83 = arith.constant dense<0xFF800000> : vector<16xf32>
    %243 = vector.multi_reduction <maximumf>, %242, %cst_83 [1] : vector<16x16xf32> to vector<16xf32>
    %244 = vector.shape_cast %243 : vector<16xf32> to vector<16x1xf32>
    %245 = vector.broadcast %244 : vector<16x1xf32> to vector<16x16xf32>
    %246 = arith.subf %242, %245 : vector<16x16xf32>
    %247 = math.exp %246 : vector<16x16xf32>
    %cst_84 = arith.constant dense<0.000000e+00> : vector<16xf32>
    %248 = vector.multi_reduction <add>, %247, %cst_84 [1] : vector<16x16xf32> to vector<16xf32>
    %249 = vector.shape_cast %248 : vector<16xf32> to vector<16x1xf32>
    %250 = tpu.reciprocal %249 {approx = true} : vector<16x1xf32> -> vector<16x1xf32>
    %251 = vector.broadcast %250 : vector<16x1xf32> to vector<16x16xf32>
    %252 = arith.mulf %247, %251 : vector<16x16xf32>
    %253 = arith.truncf %252 : vector<16x16xf32> to vector<16x16xbf16>
    %cst_85 = arith.constant dense<0.000000e+00> : vector<16x16xf32>
    %254 = tpu.matmul %253, %41, %cst_85 {dimension_numbers = #tpu.dot_dimension_numbers<[1], [0], [0], [1], [0, 0, 1, 1], [], []>} : vector<16x16xbf16>, vector<16x16xbf16>, vector<16x16xf32> -> vector<16x16xf32>
    %255 = arith.mulf %252, %52 : vector<16x16xf32>
    %cst_86 = arith.constant dense<0.000000e+00> : vector<16xf32>
    %256 = vector.multi_reduction <add>, %255, %cst_86 [1] : vector<16x16xf32> to vector<16xf32>
    %257 = vector.shape_cast %256 : vector<16xf32> to vector<16x1xf32>
    %258 = arith.mulf %252, %56 : vector<16x16xf32>
    %cst_87 = arith.constant dense<0.000000e+00> : vector<16xf32>
    %259 = vector.multi_reduction <add>, %258, %cst_87 [1] : vector<16x16xf32> to vector<16xf32>
    %260 = vector.shape_cast %259 : vector<16xf32> to vector<16x1xf32>
    %261 = arith.mulf %252, %60 : vector<16x16xf32>
    %cst_88 = arith.constant dense<0.000000e+00> : vector<16xf32>
    %262 = vector.multi_reduction <add>, %261, %cst_88 [1] : vector<16x16xf32> to vector<16xf32>
    %263 = vector.shape_cast %262 : vector<16xf32> to vector<16x1xf32>
    %264 = arith.mulf %252, %64 : vector<16x16xf32>
    %cst_89 = arith.constant dense<0.000000e+00> : vector<16xf32>
    %265 = vector.multi_reduction <add>, %264, %cst_89 [1] : vector<16x16xf32> to vector<16xf32>
    %266 = vector.shape_cast %265 : vector<16xf32> to vector<16x1xf32>
    %267 = arith.mulf %252, %68 : vector<16x16xf32>
    %cst_90 = arith.constant dense<0.000000e+00> : vector<16xf32>
    %268 = vector.multi_reduction <add>, %267, %cst_90 [1] : vector<16x16xf32> to vector<16xf32>
    %269 = vector.shape_cast %268 : vector<16xf32> to vector<16x1xf32>
    %270 = arith.mulf %252, %72 : vector<16x16xf32>
    %cst_91 = arith.constant dense<0.000000e+00> : vector<16xf32>
    %271 = vector.multi_reduction <add>, %270, %cst_91 [1] : vector<16x16xf32> to vector<16xf32>
    %272 = vector.shape_cast %271 : vector<16xf32> to vector<16x1xf32>
    %273 = arith.mulf %252, %76 : vector<16x16xf32>
    %cst_92 = arith.constant dense<0.000000e+00> : vector<16xf32>
    %274 = vector.multi_reduction <add>, %273, %cst_92 [1] : vector<16x16xf32> to vector<16xf32>
    %275 = vector.shape_cast %274 : vector<16xf32> to vector<16x1xf32>
    %276 = arith.mulf %252, %80 : vector<16x16xf32>
    %cst_93 = arith.constant dense<0.000000e+00> : vector<16xf32>
    %277 = vector.multi_reduction <add>, %276, %cst_93 [1] : vector<16x16xf32> to vector<16xf32>
    %278 = vector.shape_cast %277 : vector<16xf32> to vector<16x1xf32>
    %279 = arith.mulf %252, %84 : vector<16x16xf32>
    %cst_94 = arith.constant dense<0.000000e+00> : vector<16xf32>
    %280 = vector.multi_reduction <add>, %279, %cst_94 [1] : vector<16x16xf32> to vector<16xf32>
    %281 = vector.shape_cast %280 : vector<16xf32> to vector<16x1xf32>
    %282 = tpu.concatenate %257, %260, %263, %266, %269, %272, %275, %278, %281 in 1 : vector<16x1xf32>, vector<16x1xf32>, vector<16x1xf32>, vector<16x1xf32>, vector<16x1xf32>, vector<16x1xf32>, vector<16x1xf32>, vector<16x1xf32>, vector<16x1xf32> -> vector<16x9xf32>
    %283 = arith.truncf %282 : vector<16x9xf32> to vector<16x9xbf16>
    %cst_95 = arith.constant dense<0.000000e+00> : vector<16x16xf32>
    %284 = tpu.matmul %283, %9, %cst_95 {dimension_numbers = #tpu.dot_dimension_numbers<[1], [0], [0], [1], [0, 0, 1, 1], [], []>} : vector<16x9xbf16>, vector<9x16xbf16>, vector<16x16xf32> -> vector<16x16xf32>
    %285 = arith.addf %254, %284 : vector<16x16xf32>
    %286 = arith.truncf %285 : vector<16x16xf32> to vector<16x16xbf16>
    %c1_96 = arith.constant 1 : index
    %c0_97 = arith.constant 0 : index
    %c0_98 = arith.constant 0 : index
    %287 = vector.load %arg12[%c1_96, %c0_97, %c0_98] : memref<2x16x32xbf16, #tpu.memory_space<vmem>>, vector<1x16x32xbf16>
    %288 = vector.shape_cast %287 : vector<1x16x32xbf16> to vector<16x32xbf16>
    %cst_99 = arith.constant dense<0.000000e+00> : vector<16x32xf32>
    %289 = tpu.matmul %286, %288, %cst_99 {dimension_numbers = #tpu.dot_dimension_numbers<[1], [0], [0], [1], [0, 0, 1, 1], [], []>} : vector<16x16xbf16>, vector<16x32xbf16>, vector<16x32xf32> -> vector<16x32xf32>
    %290 = arith.addf %190, %289 : vector<16x32xf32>
    %291 = arith.extf %1 : vector<16x32xbf16> to vector<16x32xf32>
    %292 = arith.addf %291, %290 : vector<16x32xf32>
    %c0_100 = arith.constant 0 : index
    %c0_101 = arith.constant 0 : index
    %293 = vector.load %arg13[%c0_100, %c0_101] : memref<1x32xf32, #tpu.memory_space<vmem>>, vector<1x32xf32>
    %294 = vector.broadcast %293 : vector<1x32xf32> to vector<16x32xf32>
    %295 = arith.addf %292, %294 : vector<16x32xf32>
    %cst_102 = arith.constant dense<0.000000e+00> : vector<16xf32>
    %296 = vector.multi_reduction <add>, %295, %cst_102 [1] : vector<16x32xf32> to vector<16xf32>
    %297 = vector.shape_cast %296 : vector<16xf32> to vector<16x1xf32>
    %cst_103 = arith.constant 3.200000e+01 : f32
    %298 = vector.broadcast %cst_103 : f32 to vector<16x1xf32>
    %299 = arith.divf %297, %298 : vector<16x1xf32>
    %300 = vector.broadcast %299 : vector<16x1xf32> to vector<16x32xf32>
    %301 = arith.subf %295, %300 : vector<16x32xf32>
    %302 = arith.mulf %301, %301 : vector<16x32xf32>
    %cst_104 = arith.constant dense<0.000000e+00> : vector<16xf32>
    %303 = vector.multi_reduction <add>, %302, %cst_104 [1] : vector<16x32xf32> to vector<16xf32>
    %304 = vector.shape_cast %303 : vector<16xf32> to vector<16x1xf32>
    %cst_105 = arith.constant 3.200000e+01 : f32
    %305 = vector.broadcast %cst_105 : f32 to vector<16x1xf32>
    %306 = arith.divf %304, %305 : vector<16x1xf32>
    %307 = vector.broadcast %299 : vector<16x1xf32> to vector<16x32xf32>
    %308 = arith.subf %295, %307 : vector<16x32xf32>
    %cst_106 = arith.constant 9.99999974E-6 : f32
    %309 = vector.broadcast %cst_106 : f32 to vector<16x1xf32>
    %310 = arith.addf %306, %309 : vector<16x1xf32>
    %311 = math.rsqrt %310 : vector<16x1xf32>
    %312 = vector.broadcast %311 : vector<16x1xf32> to vector<16x32xf32>
    %313 = arith.mulf %308, %312 : vector<16x32xf32>
    %c0_107 = arith.constant 0 : index
    %c0_108 = arith.constant 0 : index
    %314 = vector.load %arg14[%c0_107, %c0_108] : memref<1x32xf32, #tpu.memory_space<vmem>>, vector<1x32xf32>
    %315 = vector.broadcast %314 : vector<1x32xf32> to vector<16x32xf32>
    %316 = arith.mulf %313, %315 : vector<16x32xf32>
    %c0_109 = arith.constant 0 : index
    %c0_110 = arith.constant 0 : index
    %317 = vector.load %arg15[%c0_109, %c0_110] : memref<1x32xf32, #tpu.memory_space<vmem>>, vector<1x32xf32>
    %318 = vector.broadcast %317 : vector<1x32xf32> to vector<16x32xf32>
    %319 = arith.addf %316, %318 : vector<16x32xf32>
    %320 = arith.truncf %319 : vector<16x32xf32> to vector<16x32xbf16>
    %c0_111 = arith.constant 0 : index
    %c0_112 = arith.constant 0 : index
    %c0_113 = arith.constant 0 : index
    %321 = vector.load %arg16[%c0_111, %c0_112, %c0_113] : memref<1x16x32xbf16, #tpu.memory_space<vmem>>, vector<1x16x32xbf16>
    %322 = vector.shape_cast %321 : vector<1x16x32xbf16> to vector<16x32xbf16>
    %323 = vector.shape_cast %320 : vector<16x32xbf16> to vector<1x16x32xbf16>
    tpu.vector_store %arg16[%c0_111, %c0_112, %c0_113], %323 {strides = array<i32>} : memref<1x16x32xbf16, #tpu.memory_space<vmem>>, vector<1x16x32xbf16>,
    return
  }
  func.func @transform_0(%arg0: i32) -> (i32, i32, i32) {
    %c0_i32 = arith.constant 0 : i32
    %c0_i32_0 = arith.constant 0 : i32
    %c0_i32_1 = arith.constant 0 : i32
    return %arg0, %c0_i32, %c0_i32_0 : i32, i32, i32
  }
  func.func @transform_1(%arg0: i32) -> (i32, i32, i32) {
    %c0_i32 = arith.constant 0 : i32
    %c0_i32_0 = arith.constant 0 : i32
    %c0_i32_1 = arith.constant 0 : i32
    return %arg0, %c0_i32, %c0_i32_0 : i32, i32, i32
  }
  func.func @transform_2(%arg0: i32) -> (i32, i32, i32) {
    %c0_i32 = arith.constant 0 : i32
    %c0_i32_0 = arith.constant 0 : i32
    %c0_i32_1 = arith.constant 0 : i32
    return %arg0, %c0_i32, %c0_i32_0 : i32, i32, i32
  }
  func.func @transform_3(%arg0: i32) -> (i32, i32, i32) {
    %c0_i32 = arith.constant 0 : i32
    %c0_i32_0 = arith.constant 0 : i32
    %c0_i32_1 = arith.constant 0 : i32
    %c0_i32_2 = arith.constant 0 : i32
    return %c0_i32, %c0_i32_0, %c0_i32_1 : i32, i32, i32
  }
  func.func @transform_4(%arg0: i32) -> (i32, i32, i32) {
    %c0_i32 = arith.constant 0 : i32
    %c0_i32_0 = arith.constant 0 : i32
    %c0_i32_1 = arith.constant 0 : i32
    %c0_i32_2 = arith.constant 0 : i32
    return %c0_i32, %c0_i32_0, %c0_i32_1 : i32, i32, i32
  }
  func.func @transform_5(%arg0: i32) -> (i32, i32, i32) {
    %c0_i32 = arith.constant 0 : i32
    %c0_i32_0 = arith.constant 0 : i32
    %c0_i32_1 = arith.constant 0 : i32
    %c0_i32_2 = arith.constant 0 : i32
    return %c0_i32, %c0_i32_0, %c0_i32_1 : i32, i32, i32
  }
  func.func @transform_6(%arg0: i32) -> (i32, i32, i32) {
    %c0_i32 = arith.constant 0 : i32
    %c0_i32_0 = arith.constant 0 : i32
    %c0_i32_1 = arith.constant 0 : i32
    %c0_i32_2 = arith.constant 0 : i32
    return %c0_i32, %c0_i32_0, %c0_i32_1 : i32, i32, i32
  }
  func.func @transform_7(%arg0: i32) -> (i32, i32, i32) {
    %c0_i32 = arith.constant 0 : i32
    %c0_i32_0 = arith.constant 0 : i32
    %c0_i32_1 = arith.constant 0 : i32
    %c0_i32_2 = arith.constant 0 : i32
    return %c0_i32, %c0_i32_0, %c0_i32_1 : i32, i32, i32
  }
  func.func @transform_8(%arg0: i32) -> (i32, i32, i32) {
    %c0_i32 = arith.constant 0 : i32
    %c0_i32_0 = arith.constant 0 : i32
    %c0_i32_1 = arith.constant 0 : i32
    %c0_i32_2 = arith.constant 0 : i32
    return %c0_i32, %c0_i32_0, %c0_i32_1 : i32, i32, i32
  }
  func.func @transform_9(%arg0: i32) -> (i32, i32) {
    %c0_i32 = arith.constant 0 : i32
    %c0_i32_0 = arith.constant 0 : i32
    %c0_i32_1 = arith.constant 0 : i32
    return %c0_i32, %c0_i32_0 : i32, i32
  }
  func.func @transform_10(%arg0: i32) -> (i32, i32) {
    %c0_i32 = arith.constant 0 : i32
    %c0_i32_0 = arith.constant 0 : i32
    %c0_i32_1 = arith.constant 0 : i32
    return %c0_i32, %c0_i32_0 : i32, i32
  }
  func.func @transform_11(%arg0: i32) -> (i32, i32, i32) {
    %c0_i32 = arith.constant 0 : i32
    %c0_i32_0 = arith.constant 0 : i32
    %c0_i32_1 = arith.constant 0 : i32
    %c0_i32_2 = arith.constant 0 : i32
    return %c0_i32, %c0_i32_0, %c0_i32_1 : i32, i32, i32
  }
  func.func @transform_12(%arg0: i32) -> (i32, i32) {
    %c0_i32 = arith.constant 0 : i32
    %c0_i32_0 = arith.constant 0 : i32
    %c0_i32_1 = arith.constant 0 : i32
    return %c0_i32, %c0_i32_0 : i32, i32
  }
  func.func @transform_13(%arg0: i32) -> (i32, i32) {
    %c0_i32 = arith.constant 0 : i32
    %c0_i32_0 = arith.constant 0 : i32
    %c0_i32_1 = arith.constant 0 : i32
    return %c0_i32, %c0_i32_0 : i32, i32
  }
  func.func @transform_14(%arg0: i32) -> (i32, i32) {
    %c0_i32 = arith.constant 0 : i32
    %c0_i32_0 = arith.constant 0 : i32
    %c0_i32_1 = arith.constant 0 : i32
    return %c0_i32, %c0_i32_0 : i32, i32
  }
  func.func @transform_15(%arg0: i32) -> (i32, i32, i32) {
    %c0_i32 = arith.constant 0 : i32
    %c0_i32_0 = arith.constant 0 : i32
    %c0_i32_1 = arith.constant 0 : i32
    return %arg0, %c0_i32, %c0_i32_0 : i32, i32, i32
  }
}

</mosaic_0001>

<llo_original>
// kernel: tpu_custom_call.1
$region0: #{tpu_custom_call.1}
  #allocation0 [shape = 'u32[]', space=smem, size = 0x4, offset = 0x4, fixed_abs, tag = 'smem constant byte address 0x4 - core index']
  #allocation1 [shape = 'u32[144,128]{1,0:T(1,128)}', space=vmem, size = 0x12000, scoped, tag = 'internal scratch']
  %s0 = inlined_call_operand.hbm [shape: bf16[2,16,32], index: 0, kind: input, shape index: {}]
  %s1 = inlined_call_operand.hbm [shape: f32[2,16,1], index: 1, kind: input, shape index: {}]
  %s2 = inlined_call_operand.hbm [shape: f32[2,1,16], index: 2, kind: input, shape index: {}]
  %s3 = inlined_call_operand.hbm [shape: bf16[2,32,16], index: 3, kind: input, shape index: {}]
  %s4 = inlined_call_operand.hbm [shape: f32[2,1,16], index: 4, kind: input, shape index: {}]
  %s5 = inlined_call_operand.hbm [shape: bf16[2,32,16], index: 5, kind: input, shape index: {}]
  %s6 = inlined_call_operand.hbm [shape: f32[2,1,16], index: 6, kind: input, shape index: {}]
  %s7 = inlined_call_operand.hbm [shape: bf16[2,32,16], index: 7, kind: input, shape index: {}]
  %s8 = inlined_call_operand.hbm [shape: f32[2,1,16], index: 8, kind: input, shape index: {}]
  %s9 = inlined_call_operand.hbm [shape: f32[9,16], index: 9, kind: input, shape index: {}]
  %s10 = inlined_call_operand.hbm [shape: f32[9,16], index: 10, kind: input, shape index: {}]
  %s11 = inlined_call_operand.hbm [shape: bf16[2,16,32], index: 11, kind: input, shape index: {}]
  %s12 = inlined_call_operand.hbm [shape: f32[1,32], index: 12, kind: input, shape index: {}]
  %s13 = inlined_call_operand.hbm [shape: f32[1,32], index: 13, kind: input, shape index: {}]
  %s14 = inlined_call_operand.hbm [shape: f32[1,32], index: 14, kind: input, shape index: {}]
  %s15 = inlined_call_operand.hbm [shape: bf16[2,16,32], index: 15, kind: output, shape index: {}]
  %s16 = sld [smem:[#allocation0]]
  $region153: #{tpu_custom_call.1} parent=0
    _
  %s18 = ssub.s32 1, %s16
  %s19 = scalar_select 0, %s18, %s16
  $region1: #{tpu_custom_call.1} parent=0
    #allocation2 [shape = 'u8[8192]{0}', space=vmem, size = 0x2000, scoped, tag = 'input window, operand 0']
    #allocation3 [shape = 's32[2]{0}', space=sflag, size = 0x8, scoped, tag = 'scoped memory for tpu_custom_call.1']
    #allocation4 [shape = 's32[2]{0}', space=sflag, size = 0x8, scoped, tag = 'scoped memory for tpu_custom_call.1']
    #allocation5 [shape = 'u8[16384]{0}', space=vmem, size = 0x4000, scoped, tag = 'input window, operand 1']
    #allocation6 [shape = 's32[2]{0}', space=sflag, size = 0x8, scoped, tag = 'scoped memory for tpu_custom_call.1']
    #allocation7 [shape = 'u8[1024]{0}', space=vmem, size = 0x400, scoped, tag = 'input window, operand 2']
    #allocation8 [shape = 'u8[16384]{0}', space=vmem, size = 0x4000, scoped, tag = 'input window, operand 3, single buffered']
    #allocation9 [shape = 's32[1]{0}', space=sflag, size = 0x4, scoped, tag = 'scoped memory for tpu_custom_call.1']
    #allocation10 [shape = 'u8[1024]{0}', space=vmem, size = 0x400, scoped, tag = 'input window, operand 4, single buffered']
    #allocation11 [shape = 'u8[16384]{0}', space=vmem, size = 0x4000, scoped, tag = 'input window, operand 5, single buffered']
    #allocation12 [shape = 's32[1]{0}', space=sflag, size = 0x4, scoped, tag = 'scoped memory for tpu_custom_call.1']
    #allocation13 [shape = 'u8[1024]{0}', space=vmem, size = 0x400, scoped, tag = 'input window, operand 6, single buffered']
    #allocation14 [shape = 'u8[16384]{0}', space=vmem, size = 0x4000, scoped, tag = 'input window, operand 7, single buffered']
    #allocation15 [shape = 's32[1]{0}', space=sflag, size = 0x4, scoped, tag = 'scoped memory for tpu_custom_call.1']
    #allocation16 [shape = 'u8[1024]{0}', space=vmem, size = 0x400, scoped, tag = 'input window, operand 8, single buffered']
    #allocation17 [shape = 'u8[8192]{0}', space=vmem, size = 0x2000, scoped, tag = 'input window, operand 9, single buffered']
    #allocation18 [shape = 's32[1]{0}', space=sflag, size = 0x4, scoped, tag = 'scoped memory for tpu_custom_call.1']
    #allocation19 [shape = 'u8[8192]{0}', space=vmem, size = 0x2000, scoped, tag = 'input window, operand 10, single buffered']
    #allocation20 [shape = 'u8[8192]{0}', space=vmem, size = 0x2000, scoped, tag = 'input window, operand 11, single buffered']
    #allocation21 [shape = 's32[1]{0}', space=sflag, size = 0x4, scoped, tag = 'scoped memory for tpu_custom_call.1']
    #allocation22 [shape = 'u8[512]{0}', space=vmem, size = 0x400, scoped, tag = 'input window, operand 12, single buffered']
    #allocation23 [shape = 'u8[512]{0}', space=vmem, size = 0x400, scoped, tag = 'input window, operand 13, single buffered']
    #allocation24 [shape = 's32[1]{0}', space=sflag, size = 0x4, scoped, tag = 'scoped memory for tpu_custom_call.1']
    #allocation25 [shape = 'u8[512]{0}', space=vmem, size = 0x400, scoped, tag = 'input window, operand 14, single buffered']
    #allocation26 [shape = 'u8[8192]{0}', space=vmem, size = 0x2000, scoped, tag = 'output window, operand 0']
    %20 = vsyncpa [#allocation3], 0
    %s21 = scalar_lea.sflag [#allocation3], 1
    %22 = vsyncpa %s21, 0
    %23 = vsyncpa [#allocation6], 0
    %s24 = scalar_lea.sflag [#allocation6], 1
    %25 = vsyncpa %s24, 0
    %26 = vsyncpa [#allocation9], 0
    %27 = vsyncpa [#allocation12], 0
    %28 = vsyncpa [#allocation15], 0
    %29 = vsyncpa [#allocation18], 0
    %30 = vsyncpa [#allocation21], 0
    %31 = vsyncpa [#allocation24], 0
    %32 = vsyncpa [#allocation4], 0
    %s33 = scalar_lea.sflag [#allocation4], 1
    %34 = vsyncpa %s33, 0
    loop: start=0, step=1, limit=4
    $region2: #{tpu_custom_call.1} parent=1 // loop_pre_header
      _
    $region3: #{tpu_custom_call.1} parent=1 // loop_header
      %s36 = sphi 0, %s40
      %p37 = scmp.ge.s32.totalorder %s36, 4
      %s46 = sphi 0, %s48
      %s49 = sphi 0, %s46
      %s50 = sphi 0, %s49
      %s66 = sphi 0, %s50
      %s72 = sphi 0, %s74
      %s75 = sphi 0, %s72
      %s76 = sphi 0, %s75
      %s92 = sphi 0, %s76
      %s98 = sphi 0, %s100
      %s101 = sphi 0, %s98
      %s102 = sphi 0, %s101
      %s118 = sphi 0, %s102
      %s122 = sphi 0, %s122
      %s124 = sphi 0, %s122
      %s125 = sphi 0, %s124
      %s139 = sphi 0, %s125
      %s143 = sphi 0, %s143
      %s145 = sphi 0, %s143
      %s146 = sphi 0, %s145
      %s160 = sphi 0, %s146
      %s164 = sphi 0, %s164
      %s166 = sphi 0, %s164
      %s167 = sphi 0, %s166
      %s181 = sphi 0, %s167
      %s185 = sphi 0, %s185
      %s187 = sphi 0, %s185
      %s188 = sphi 0, %s187
      %s202 = sphi 0, %s188
      %s206 = sphi 0, %s206
      %s208 = sphi 0, %s206
      %s209 = sphi 0, %s208
      %s223 = sphi 0, %s209
      %s227 = sphi 0, %s227
      %s229 = sphi 0, %s227
      %s230 = sphi 0, %s229
      %s244 = sphi 0, %s230
      %s248 = sphi 0, %s248
      %s250 = sphi 0, %s248
      %s251 = sphi 0, %s250
      %s265 = sphi 0, %s251
      %s269 = sphi 0, %s269
      %s271 = sphi 0, %s269
      %s272 = sphi 0, %s271
      %s286 = sphi 0, %s272
      %s290 = sphi 0, %s290
      %s292 = sphi 0, %s290
      %s293 = sphi 0, %s292
      %s307 = sphi 0, %s293
      %s311 = sphi 0, %s311
      %s313 = sphi 0, %s311
      %s314 = sphi 0, %s313
      %s328 = sphi 0, %s314
      %s332 = sphi 0, %s332
      %s334 = sphi 0, %s332
      %s335 = sphi 0, %s334
      %s349 = sphi 0, %s335
      %s353 = sphi 0, %s353
      %s355 = sphi 0, %s353
      %s356 = sphi 0, %s355
      %s370 = sphi 0, %s356
      %s376 = sphi 0, %s378
      %s379 = sphi 0, %s376
      %s380 = sphi 0, %s379
      %s396 = sphi 0, %s380
    $region4: #{tpu_custom_call.1} parent=1 // loop_header_branch
      %39 = sbr.rel (%p37) target = $region8
    $region5: #{tpu_custom_call.1} parent=1 // loop_body
      %s41 = ssub.s32 %s36, 1
      %s42 = ssub.s32 %s36, 2
      %s43 = sadd.s32 %s36, 1
      %s44 = ssub.s32 %s36, %s43
      %p45 = scmp.eq.s32.totalorder %s44, 0
      %s47 = sadd.s32 %s46, 1
      %s48 = scalar_select %p45, %s46, %s47
      %p51 = pneg %p45
      %p52 = scmp.eq.s32.totalorder %s36, 1
      %p53 = por %p51, %p52
      %p54 = scmp.ne.s32.totalorder %s46, %s49
      %p55 = scmp.eq.s32.totalorder %s36, 0
      %p56 = por %p54, %p55
      %p57 = scmp.ne.s32.totalorder %s46, %s49
      %p58 = scmp.eq.s32.totalorder %s41, 1
      %p59 = por %p57, %p58
      %p60 = scmp.ne.s32.totalorder %s49, %s50
      %p61 = scmp.eq.s32.totalorder %s41, 0
      %p62 = por %p60, %p61
      %p63 = scmp.ne.s32.totalorder %s49, %s50
      %p64 = scmp.eq.s32.totalorder %s42, 1
      %p65 = por %p63, %p64
      %p67 = scmp.ne.s32.totalorder %s50, %s66
      %p68 = scmp.eq.s32.totalorder %s42, 0
      %p69 = por %p67, %p68
      %s70 = ssub.s32 %s36, %s43
      %p71 = scmp.eq.s32.totalorder %s70, 0
      %s73 = sadd.s32 %s72, 1
      %s74 = scalar_select %p71, %s72, %s73
      %p77 = pneg %p71
      %p78 = scmp.eq.s32.totalorder %s36, 1
      %p79 = por %p77, %p78
      %p80 = scmp.ne.s32.totalorder %s72, %s75
      %p81 = scmp.eq.s32.totalorder %s36, 0
      %p82 = por %p80, %p81
      %p83 = scmp.ne.s32.totalorder %s72, %s75
      %p84 = scmp.eq.s32.totalorder %s41, 1
      %p85 = por %p83, %p84
      %p86 = scmp.ne.s32.totalorder %s75, %s76
      %p87 = scmp.eq.s32.totalorder %s41, 0
      %p88 = por %p86, %p87
      %p89 = scmp.ne.s32.totalorder %s75, %s76
      %p90 = scmp.eq.s32.totalorder %s42, 1
      %p91 = por %p89, %p90
      %p93 = scmp.ne.s32.totalorder %s76, %s92
      %p94 = scmp.eq.s32.totalorder %s42, 0
      %p95 = por %p93, %p94
      %s96 = ssub.s32 %s36, %s43
      %p97 = scmp.eq.s32.totalorder %s96, 0
      %s99 = sadd.s32 %s98, 1
      %s100 = scalar_select %p97, %s98, %s99
      %p103 = pneg %p97
      %p104 = scmp.eq.s32.totalorder %s36, 1
      %p105 = por %p103, %p104
      %p106 = scmp.ne.s32.totalorder %s98, %s101
      %p107 = scmp.eq.s32.totalorder %s36, 0
      %p108 = por %p106, %p107
      %p109 = scmp.ne.s32.totalorder %s98, %s101
      %p110 = scmp.eq.s32.totalorder %s41, 1
      %p111 = por %p109, %p110
      %p112 = scmp.ne.s32.totalorder %s101, %s102
      %p113 = scmp.eq.s32.totalorder %s41, 0
      %p114 = por %p112, %p113
      %p115 = scmp.ne.s32.totalorder %s101, %s102
      %p116 = scmp.eq.s32.totalorder %s42, 1
      %p117 = por %p115, %p116
      %p119 = scmp.ne.s32.totalorder %s102, %s118
      %p120 = scmp.eq.s32.totalorder %s42, 0
      %p121 = por %p119, %p120
      %s123 = sadd.s32 %s122, 1
      %p126 = scmp.eq.s32.totalorder %s36, 1
      %p127 = scmp.ne.s32.totalorder %s122, %s124
      %p128 = scmp.eq.s32.totalorder %s36, 0
      %p129 = por %p127, %p128
      %p130 = scmp.ne.s32.totalorder %s122, %s124
      %p131 = scmp.eq.s32.totalorder %s41, 1
      %p132 = por %p130, %p131
      %p133 = scmp.ne.s32.totalorder %s124, %s125
      %p134 = scmp.eq.s32.totalorder %s41, 0
      %p135 = por %p133, %p134
      %p136 = scmp.ne.s32.totalorder %s124, %s125
      %p137 = scmp.eq.s32.totalorder %s42, 1
      %p138 = por %p136, %p137
      %p140 = scmp.ne.s32.totalorder %s125, %s139
      %p141 = scmp.eq.s32.totalorder %s42, 0
      %p142 = por %p140, %p141
      %s144 = sadd.s32 %s143, 1
      %p147 = scmp.eq.s32.totalorder %s36, 1
      %p148 = scmp.ne.s32.totalorder %s143, %s145
      %p149 = scmp.eq.s32.totalorder %s36, 0
      %p150 = por %p148, %p149
      %p151 = scmp.ne.s32.totalorder %s143, %s145
      %p152 = scmp.eq.s32.totalorder %s41, 1
      %p153 = por %p151, %p152
      %p154 = scmp.ne.s32.totalorder %s145, %s146
      %p155 = scmp.eq.s32.totalorder %s41, 0
      %p156 = por %p154, %p155
      %p157 = scmp.ne.s32.totalorder %s145, %s146
      %p158 = scmp.eq.s32.totalorder %s42, 1
      %p159 = por %p157, %p158
      %p161 = scmp.ne.s32.totalorder %s146, %s160
      %p162 = scmp.eq.s32.totalorder %s42, 0
      %p163 = por %p161, %p162
      %s165 = sadd.s32 %s164, 1
      %p168 = scmp.eq.s32.totalorder %s36, 1
      %p169 = scmp.ne.s32.totalorder %s164, %s166
      %p170 = scmp.eq.s32.totalorder %s36, 0
      %p171 = por %p169, %p170
      %p172 = scmp.ne.s32.totalorder %s164, %s166
      %p173 = scmp.eq.s32.totalorder %s41, 1
      %p174 = por %p172, %p173
      %p175 = scmp.ne.s32.totalorder %s166, %s167
      %p176 = scmp.eq.s32.totalorder %s41, 0
      %p177 = por %p175, %p176
      %p178 = scmp.ne.s32.totalorder %s166, %s167
      %p179 = scmp.eq.s32.totalorder %s42, 1
      %p180 = por %p178, %p179
      %p182 = scmp.ne.s32.totalorder %s167, %s181
      %p183 = scmp.eq.s32.totalorder %s42, 0
      %p184 = por %p182, %p183
      %s186 = sadd.s32 %s185, 1
      %p189 = scmp.eq.s32.totalorder %s36, 1
      %p190 = scmp.ne.s32.totalorder %s185, %s187
      %p191 = scmp.eq.s32.totalorder %s36, 0
      %p192 = por %p190, %p191
      %p193 = scmp.ne.s32.totalorder %s185, %s187
      %p194 = scmp.eq.s32.totalorder %s41, 1
      %p195 = por %p193, %p194
      %p196 = scmp.ne.s32.totalorder %s187, %s188
      %p197 = scmp.eq.s32.totalorder %s41, 0
      %p198 = por %p196, %p197
      %p199 = scmp.ne.s32.totalorder %s187, %s188
      %p200 = scmp.eq.s32.totalorder %s42, 1
      %p201 = por %p199, %p200
      %p203 = scmp.ne.s32.totalorder %s188, %s202
      %p204 = scmp.eq.s32.totalorder %s42, 0
      %p205 = por %p203, %p204
      %s207 = sadd.s32 %s206, 1
      %p210 = scmp.eq.s32.totalorder %s36, 1
      %p211 = scmp.ne.s32.totalorder %s206, %s208
      %p212 = scmp.eq.s32.totalorder %s36, 0
      %p213 = por %p211, %p212
      %p214 = scmp.ne.s32.totalorder %s206, %s208
      %p215 = scmp.eq.s32.totalorder %s41, 1
      %p216 = por %p214, %p215
      %p217 = scmp.ne.s32.totalorder %s208, %s209
      %p218 = scmp.eq.s32.totalorder %s41, 0
      %p219 = por %p217, %p218
      %p220 = scmp.ne.s32.totalorder %s208, %s209
      %p221 = scmp.eq.s32.totalorder %s42, 1
      %p222 = por %p220, %p221
      %p224 = scmp.ne.s32.totalorder %s209, %s223
      %p225 = scmp.eq.s32.totalorder %s42, 0
      %p226 = por %p224, %p225
      %s228 = sadd.s32 %s227, 1
      %p231 = scmp.eq.s32.totalorder %s36, 1
      %p232 = scmp.ne.s32.totalorder %s227, %s229
      %p233 = scmp.eq.s32.totalorder %s36, 0
      %p234 = por %p232, %p233
      %p235 = scmp.ne.s32.totalorder %s227, %s229
      %p236 = scmp.eq.s32.totalorder %s41, 1
      %p237 = por %p235, %p236
      %p238 = scmp.ne.s32.totalorder %s229, %s230
      %p239 = scmp.eq.s32.totalorder %s41, 0
      %p240 = por %p238, %p239
      %p241 = scmp.ne.s32.totalorder %s229, %s230
      %p242 = scmp.eq.s32.totalorder %s42, 1
      %p243 = por %p241, %p242
      %p245 = scmp.ne.s32.totalorder %s230, %s244
      %p246 = scmp.eq.s32.totalorder %s42, 0
      %p247 = por %p245, %p246
      %s249 = sadd.s32 %s248, 1
      %p252 = scmp.eq.s32.totalorder %s36, 1
      %p253 = scmp.ne.s32.totalorder %s248, %s250
      %p254 = scmp.eq.s32.totalorder %s36, 0
      %p255 = por %p253, %p254
      %p256 = scmp.ne.s32.totalorder %s248, %s250
      %p257 = scmp.eq.s32.totalorder %s41, 1
      %p258 = por %p256, %p257
      %p259 = scmp.ne.s32.totalorder %s250, %s251
      %p260 = scmp.eq.s32.totalorder %s41, 0
      %p261 = por %p259, %p260
      %p262 = scmp.ne.s32.totalorder %s250, %s251
      %p263 = scmp.eq.s32.totalorder %s42, 1
      %p264 = por %p262, %p263
      %p266 = scmp.ne.s32.totalorder %s251, %s265
      %p267 = scmp.eq.s32.totalorder %s42, 0
      %p268 = por %p266, %p267
      %s270 = sadd.s32 %s269, 1
      %p273 = scmp.eq.s32.totalorder %s36, 1
      %p274 = scmp.ne.s32.totalorder %s269, %s271
      %p275 = scmp.eq.s32.totalorder %s36, 0
      %p276 = por %p274, %p275
      %p277 = scmp.ne.s32.totalorder %s269, %s271
      %p278 = scmp.eq.s32.totalorder %s41, 1
      %p279 = por %p277, %p278
      %p280 = scmp.ne.s32.totalorder %s271, %s272
      %p281 = scmp.eq.s32.totalorder %s41, 0
      %p282 = por %p280, %p281
      %p283 = scmp.ne.s32.totalorder %s271, %s272
      %p284 = scmp.eq.s32.totalorder %s42, 1
      %p285 = por %p283, %p284
      %p287 = scmp.ne.s32.totalorder %s272, %s286
      %p288 = scmp.eq.s32.totalorder %s42, 0
      %p289 = por %p287, %p288
      %s291 = sadd.s32 %s290, 1
      %p294 = scmp.eq.s32.totalorder %s36, 1
      %p295 = scmp.ne.s32.totalorder %s290, %s292
      %p296 = scmp.eq.s32.totalorder %s36, 0
      %p297 = por %p295, %p296
      %p298 = scmp.ne.s32.totalorder %s290, %s292
      %p299 = scmp.eq.s32.totalorder %s41, 1
      %p300 = por %p298, %p299
      %p301 = scmp.ne.s32.totalorder %s292, %s293
      %p302 = scmp.eq.s32.totalorder %s41, 0
      %p303 = por %p301, %p302
      %p304 = scmp.ne.s32.totalorder %s292, %s293
      %p305 = scmp.eq.s32.totalorder %s42, 1
      %p306 = por %p304, %p305
      %p308 = scmp.ne.s32.totalorder %s293, %s307
      %p309 = scmp.eq.s32.totalorder %s42, 0
      %p310 = por %p308, %p309
      %s312 = sadd.s32 %s311, 1
      %p315 = scmp.eq.s32.totalorder %s36, 1
      %p316 = scmp.ne.s32.totalorder %s311, %s313
      %p317 = scmp.eq.s32.totalorder %s36, 0
      %p318 = por %p316, %p317
      %p319 = scmp.ne.s32.totalorder %s311, %s313
      %p320 = scmp.eq.s32.totalorder %s41, 1
      %p321 = por %p319, %p320
      %p322 = scmp.ne.s32.totalorder %s313, %s314
      %p323 = scmp.eq.s32.totalorder %s41, 0
      %p324 = por %p322, %p323
      %p325 = scmp.ne.s32.totalorder %s313, %s314
      %p326 = scmp.eq.s32.totalorder %s42, 1
      %p327 = por %p325, %p326
      %p329 = scmp.ne.s32.totalorder %s314, %s328
      %p330 = scmp.eq.s32.totalorder %s42, 0
      %p331 = por %p329, %p330
      %s333 = sadd.s32 %s332, 1
      %p336 = scmp.eq.s32.totalorder %s36, 1
      %p337 = scmp.ne.s32.totalorder %s332, %s334
      %p338 = scmp.eq.s32.totalorder %s36, 0
      %p339 = por %p337, %p338
      %p340 = scmp.ne.s32.totalorder %s332, %s334
      %p341 = scmp.eq.s32.totalorder %s41, 1
      %p342 = por %p340, %p341
      %p343 = scmp.ne.s32.totalorder %s334, %s335
      %p344 = scmp.eq.s32.totalorder %s41, 0
      %p345 = por %p343, %p344
      %p346 = scmp.ne.s32.totalorder %s334, %s335
      %p347 = scmp.eq.s32.totalorder %s42, 1
      %p348 = por %p346, %p347
      %p350 = scmp.ne.s32.totalorder %s335, %s349
      %p351 = scmp.eq.s32.totalorder %s42, 0
      %p352 = por %p350, %p351
      %s354 = sadd.s32 %s353, 1
      %p357 = scmp.eq.s32.totalorder %s36, 1
      %p358 = scmp.ne.s32.totalorder %s353, %s355
      %p359 = scmp.eq.s32.totalorder %s36, 0
      %p360 = por %p358, %p359
      %p361 = scmp.ne.s32.totalorder %s353, %s355
      %p362 = scmp.eq.s32.totalorder %s41, 1
      %p363 = por %p361, %p362
      %p364 = scmp.ne.s32.totalorder %s355, %s356
      %p365 = scmp.eq.s32.totalorder %s41, 0
      %p366 = por %p364, %p365
      %p367 = scmp.ne.s32.totalorder %s355, %s356
      %p368 = scmp.eq.s32.totalorder %s42, 1
      %p369 = por %p367, %p368
      %p371 = scmp.ne.s32.totalorder %s356, %s370
      %p372 = scmp.eq.s32.totalorder %s42, 0
      %p373 = por %p371, %p372
      %s374 = ssub.s32 %s36, %s43
      %p375 = scmp.eq.s32.totalorder %s374, 0
      %s377 = sadd.s32 %s376, 1
      %s378 = scalar_select %p375, %s376, %s377
      %p381 = pneg %p375
      %p382 = scmp.eq.s32.totalorder %s36, 1
      %p383 = por %p381, %p382
      %p384 = scmp.ne.s32.totalorder %s376, %s379
      %p385 = scmp.eq.s32.totalorder %s36, 0
      %p386 = por %p384, %p385
      %p387 = scmp.ne.s32.totalorder %s376, %s379
      %p388 = scmp.eq.s32.totalorder %s41, 1
      %p389 = por %p387, %p388
      %p390 = scmp.ne.s32.totalorder %s379, %s380
      %p391 = scmp.eq.s32.totalorder %s41, 0
      %p392 = por %p390, %p391
      %p393 = scmp.ne.s32.totalorder %s379, %s380
      %p394 = scmp.eq.s32.totalorder %s42, 1
      %p395 = por %p393, %p394
      %p397 = scmp.ne.s32.totalorder %s380, %s396
      %p398 = scmp.eq.s32.totalorder %s42, 0
      %p399 = por %p397, %p398
      %p400 = scmp.le.s32.totalorder 1, %s36
      %p401 = scmp.lt.s32.totalorder %s36, 3
      %p402 = pnand %p400, %p401
      %p403 = pneg %p402
      // Predicated region
      $region9: #{tpu_custom_call.1} parent=5 // pred_check
        _
      $region10: #{tpu_custom_call.1} parent=5 // pred_check_branch
        %405 = sbr.rel (%p402) target = $region12
      $region11: #{tpu_custom_call.1} parent=5 // pred_region
        %s406 = ssub.s32 %s36, 1
        // Predicated region
        $region13: #{tpu_custom_call.1} parent=11 // pred_check
          %p407 = pneg %p135
        $region14: #{tpu_custom_call.1} parent=11 // pred_check_branch
          %409 = sbr.rel (%p407) target = $region16
        $region15: #{tpu_custom_call.1} parent=11 // pred_region
          %s411 = ssub.s32 512, 512
          %412 = vsyncadd [#allocation9], %s411
          %s413 = sshll.u32 [#allocation8], 4
          %s414 = int_to_ptr.vmem [resolvable:$true] %s413
          %419 = dma.hbm_to_vmem [thread:$0]  %s3, 512, %s414, [#allocation9], 64, 64, 4
        $region16: #{tpu_custom_call.1} parent=11 // pred_fallthru
          _
        // Predicated region
        $region17: #{tpu_custom_call.1} parent=11 // pred_check
          %p420 = pneg %p156
        $region18: #{tpu_custom_call.1} parent=11 // pred_check_branch
          %422 = sbr.rel (%p420) target = $region20
        $region19: #{tpu_custom_call.1} parent=11 // pred_region
          %s424 = ssub.s32 32, 32
          %425 = vsyncadd [#allocation9], %s424
          %s426 = sshll.u32 [#allocation10], 4
          %s427 = int_to_ptr.vmem [resolvable:$true] %s426
          %432 = dma.hbm_to_vmem [thread:$0]  %s4, 32, %s427, [#allocation9], 16, 16, 1
        $region20: #{tpu_custom_call.1} parent=11 // pred_fallthru
          _
        // Predicated region
        $region21: #{tpu_custom_call.1} parent=11 // pred_check
          %p433 = pneg %p177
        $region22: #{tpu_custom_call.1} parent=11 // pred_check_branch
          %435 = sbr.rel (%p433) target = $region24
        $region23: #{tpu_custom_call.1} parent=11 // pred_region
          %s437 = ssub.s32 512, 512
          %438 = vsyncadd [#allocation12], %s437
          %s439 = sshll.u32 [#allocation11], 4
          %s440 = int_to_ptr.vmem [resolvable:$true] %s439
          %445 = dma.hbm_to_vmem [thread:$0]  %s5, 512, %s440, [#allocation12], 64, 64, 4
        $region24: #{tpu_custom_call.1} parent=11 // pred_fallthru
          _
        // Predicated region
        $region25: #{tpu_custom_call.1} parent=11 // pred_check
          %p446 = pneg %p198
        $region26: #{tpu_custom_call.1} parent=11 // pred_check_branch
          %448 = sbr.rel (%p446) target = $region28
        $region27: #{tpu_custom_call.1} parent=11 // pred_region
          %s450 = ssub.s32 32, 32
          %451 = vsyncadd [#allocation12], %s450
          %s452 = sshll.u32 [#allocation13], 4
          %s453 = int_to_ptr.vmem [resolvable:$true] %s452
          %458 = dma.hbm_to_vmem [thread:$0]  %s6, 32, %s453, [#allocation12], 16, 16, 1
        $region28: #{tpu_custom_call.1} parent=11 // pred_fallthru
          _
        // Predicated region
        $region29: #{tpu_custom_call.1} parent=11 // pred_check
          %p459 = pneg %p219
        $region30: #{tpu_custom_call.1} parent=11 // pred_check_branch
          %461 = sbr.rel (%p459) target = $region32
        $region31: #{tpu_custom_call.1} parent=11 // pred_region
          %s463 = ssub.s32 512, 512
          %464 = vsyncadd [#allocation15], %s463
          %s465 = sshll.u32 [#allocation14], 4
          %s466 = int_to_ptr.vmem [resolvable:$true] %s465
          %471 = dma.hbm_to_vmem [thread:$0]  %s7, 512, %s466, [#allocation15], 64, 64, 4
        $region32: #{tpu_custom_call.1} parent=11 // pred_fallthru
          _
        // Predicated region
        $region33: #{tpu_custom_call.1} parent=11 // pred_check
          %p472 = pneg %p240
        $region34: #{tpu_custom_call.1} parent=11 // pred_check_branch
          %474 = sbr.rel (%p472) target = $region36
        $region35: #{tpu_custom_call.1} parent=11 // pred_region
          %s476 = ssub.s32 32, 32
          %477 = vsyncadd [#allocation15], %s476
          %s478 = sshll.u32 [#allocation16], 4
          %s479 = int_to_ptr.vmem [resolvable:$true] %s478
          %484 = dma.hbm_to_vmem [thread:$0]  %s8, 32, %s479, [#allocation15], 16, 16, 1
        $region36: #{tpu_custom_call.1} parent=11 // pred_fallthru
          _
        // Predicated region
        $region37: #{tpu_custom_call.1} parent=11 // pred_check
          %p485 = pneg %p261
        $region38: #{tpu_custom_call.1} parent=11 // pred_check_branch
          %487 = sbr.rel (%p485) target = $region40
        $region39: #{tpu_custom_call.1} parent=11 // pred_region
          %s489 = ssub.s32 256, 256
          %490 = vsyncadd [#allocation18], %s489
          %s491 = sshll.u32 [#allocation17], 4
          %s492 = int_to_ptr.vmem [resolvable:$true] %s491
          %497 = dma.hbm_to_vmem [thread:$0]  %s9, 256, %s492, [#allocation18], 128, 128, 8
        $region40: #{tpu_custom_call.1} parent=11 // pred_fallthru
          _
        // Predicated region
        $region41: #{tpu_custom_call.1} parent=11 // pred_check
          %p498 = pneg %p282
        $region42: #{tpu_custom_call.1} parent=11 // pred_check_branch
          %500 = sbr.rel (%p498) target = $region44
        $region43: #{tpu_custom_call.1} parent=11 // pred_region
          %s502 = ssub.s32 256, 256
          %503 = vsyncadd [#allocation18], %s502
          %s504 = sshll.u32 [#allocation19], 4
          %s505 = int_to_ptr.vmem [resolvable:$true] %s504
          %510 = dma.hbm_to_vmem [thread:$0]  %s10, 256, %s505, [#allocation18], 128, 128, 8
        $region44: #{tpu_custom_call.1} parent=11 // pred_fallthru
          _
        // Predicated region
        $region45: #{tpu_custom_call.1} parent=11 // pred_check
          %p511 = pneg %p303
        $region46: #{tpu_custom_call.1} parent=11 // pred_check_branch
          %513 = sbr.rel (%p511) target = $region48
        $region47: #{tpu_custom_call.1} parent=11 // pred_region
          %s515 = ssub.s32 256, 256
          %516 = vsyncadd [#allocation21], %s515
          %s517 = sshll.u32 [#allocation20], 4
          %s518 = int_to_ptr.vmem [resolvable:$true] %s517
          %523 = dma.hbm_to_vmem [thread:$0]  %s11, 256, %s518, [#allocation21], 64, 64, 4
        $region48: #{tpu_custom_call.1} parent=11 // pred_fallthru
          _
        // Predicated region
        $region49: #{tpu_custom_call.1} parent=11 // pred_check
          %p524 = pneg %p324
        $region50: #{tpu_custom_call.1} parent=11 // pred_check_branch
          %526 = sbr.rel (%p524) target = $region52
        $region51: #{tpu_custom_call.1} parent=11 // pred_region
          %s528 = ssub.s32 16, 16
          %529 = vsyncadd [#allocation21], %s528
          %s531 = sshll.u32 [#allocation22], 4
          %s532 = int_to_ptr.vmem [resolvable:$true] %s531
          %534 = dma.hbm_to_vmem [thread:$0]  %s12, 16, %s532, [#allocation21]
        $region52: #{tpu_custom_call.1} parent=11 // pred_fallthru
          _
        // Predicated region
        $region53: #{tpu_custom_call.1} parent=11 // pred_check
          %p535 = pneg %p345
        $region54: #{tpu_custom_call.1} parent=11 // pred_check_branch
          %537 = sbr.rel (%p535) target = $region56
        $region55: #{tpu_custom_call.1} parent=11 // pred_region
          %s539 = ssub.s32 16, 16
          %540 = vsyncadd [#allocation24], %s539
          %s542 = sshll.u32 [#allocation23], 4
          %s543 = int_to_ptr.vmem [resolvable:$true] %s542
          %545 = dma.hbm_to_vmem [thread:$0]  %s13, 16, %s543, [#allocation24]
        $region56: #{tpu_custom_call.1} parent=11 // pred_fallthru
          _
        // Predicated region
        $region57: #{tpu_custom_call.1} parent=11 // pred_check
          %p546 = pneg %p366
        $region58: #{tpu_custom_call.1} parent=11 // pred_check_branch
          %548 = sbr.rel (%p546) target = $region60
        $region59: #{tpu_custom_call.1} parent=11 // pred_region
          %s550 = ssub.s32 16, 16
          %551 = vsyncadd [#allocation24], %s550
          %s553 = sshll.u32 [#allocation25], 4
          %s554 = int_to_ptr.vmem [resolvable:$true] %s553
          %556 = dma.hbm_to_vmem [thread:$0]  %s14, 16, %s554, [#allocation24]
        $region60: #{tpu_custom_call.1} parent=11 // pred_fallthru
          _
      $region12: #{tpu_custom_call.1} parent=5 // pred_fallthru
        _
      %p557 = scmp.lt.s32.totalorder %s36, 2
      // Predicated region
      $region61: #{tpu_custom_call.1} parent=5 // pred_check
        %p558 = pneg %p557
      $region62: #{tpu_custom_call.1} parent=5 // pred_check_branch
        %560 = sbr.rel (%p558) target = $region64
      $region63: #{tpu_custom_call.1} parent=5 // pred_region
        // Predicated region
        $region65: #{tpu_custom_call.1} parent=63 // pred_check
          %p561 = pneg %p56
        $region66: #{tpu_custom_call.1} parent=63 // pred_check_branch
          %563 = sbr.rel (%p561) target = $region68
        $region67: #{tpu_custom_call.1} parent=63 // pred_region
          %s564 = sand.u32 %s46, 1
          %s565 = scalar_lea.sflag [#allocation3], %s564
          %s566 = sand.u32 %s46, 1
          %s567 = smul.addr %s566, 8
          %s568 = scalar_lea.vmem [#allocation2], %s567
          %s570 = ssub.s32 128, 128
          %571 = vsyncadd %s565, %s570
          %s572 = smul.addr %s36, 2
          %s573 = smul.addr %s572, 64
          %s574 = scalar_lea.hbm %s0, %s573
          %s575 = sshll.u32 %s568, 4
          %s576 = int_to_ptr.vmem [resolvable:$true] %s575
          %581 = dma.hbm_to_vmem [thread:$0]  %s574, 128, %s576, %s565, 64, 64, 4
        $region68: #{tpu_custom_call.1} parent=63 // pred_fallthru
          _
        // Predicated region
        $region69: #{tpu_custom_call.1} parent=63 // pred_check
          %p582 = pneg %p82
        $region70: #{tpu_custom_call.1} parent=63 // pred_check_branch
          %584 = sbr.rel (%p582) target = $region72
        $region71: #{tpu_custom_call.1} parent=63 // pred_region
          %s585 = sand.u32 %s36, 1
          %s586 = scalar_lea.sflag [#allocation6], %s585
          %s587 = sand.u32 %s72, 1
          %s588 = smul.addr %s587, 16
          %s589 = scalar_lea.vmem [#allocation5], %s588
          %s591 = ssub.s32 256, 256
          %592 = vsyncadd %s586, %s591
          %s593 = smul.addr %s36, 2
          %s594 = smul.addr %s593, 128
          %s595 = scalar_lea.hbm %s1, %s594
          %s596 = sshll.u32 %s589, 4
          %s597 = int_to_ptr.vmem [resolvable:$true] %s596
          %602 = dma.hbm_to_vmem [thread:$0]  %s595, 256, %s597, %s586, 128, 128, 8
        $region72: #{tpu_custom_call.1} parent=63 // pred_fallthru
          _
        // Predicated region
        $region73: #{tpu_custom_call.1} parent=63 // pred_check
          %p603 = pneg %p108
        $region74: #{tpu_custom_call.1} parent=63 // pred_check_branch
          %605 = sbr.rel (%p603) target = $region76
        $region75: #{tpu_custom_call.1} parent=63 // pred_region
          %s606 = sand.u32 %s36, 1
          %s607 = scalar_lea.sflag [#allocation6], %s606
          %s608 = sand.u32 %s98, 1
          %s609 = scalar_lea.vmem [#allocation7], %s608
          %s611 = ssub.s32 16, 16
          %612 = vsyncadd %s607, %s611
          %s613 = smul.addr %s36, 16
          %s614 = scalar_lea.hbm %s2, %s613
          %s616 = sshll.u32 %s609, 4
          %s617 = int_to_ptr.vmem [resolvable:$true] %s616
          %619 = dma.hbm_to_vmem [thread:$0]  %s614, 16, %s617, %s607
        $region76: #{tpu_custom_call.1} parent=63 // pred_fallthru
          _
      $region64: #{tpu_custom_call.1} parent=5 // pred_fallthru
        _
      %p620 = scmp.le.s32.totalorder 1, %s36
      %p621 = scmp.lt.s32.totalorder %s36, 3
      %p622 = pnand %p620, %p621
      %p623 = pneg %p622
      // Predicated region
      $region77: #{tpu_custom_call.1} parent=5 // pred_check
        _
      $region78: #{tpu_custom_call.1} parent=5 // pred_check_branch
        %625 = sbr.rel (%p622) target = $region80
      $region79: #{tpu_custom_call.1} parent=5 // pred_region
        %s626 = ssub.s32 %s36, 1
        %s627 = sand.u32 %s49, 1
        %s628 = scalar_lea.sflag [#allocation3], %s627
        %s629 = sand.u32 %s49, 1
        %s630 = smul.addr %s629, 8
        %s631 = scalar_lea.vmem [#allocation2], %s630
        // Predicated region
        $region81: #{tpu_custom_call.1} parent=79 // pred_check
          %p632 = pneg %p62
        $region82: #{tpu_custom_call.1} parent=79 // pred_check_branch
          %634 = sbr.rel (%p632) target = $region84
        $region83: #{tpu_custom_call.1} parent=79 // pred_region
          %635 = dma.done %s628, 128
        $region84: #{tpu_custom_call.1} parent=79 // pred_fallthru
          _
        %s636 = sand.u32 %s41, 1
        %s637 = scalar_lea.sflag [#allocation6], %s636
        %s638 = sand.u32 %s75, 1
        %s639 = smul.addr %s638, 16
        %s640 = scalar_lea.vmem [#allocation5], %s639
        // Predicated region
        $region85: #{tpu_custom_call.1} parent=79 // pred_check
          %p641 = pneg %p88
        $region86: #{tpu_custom_call.1} parent=79 // pred_check_branch
          %643 = sbr.rel (%p641) target = $region88
        $region87: #{tpu_custom_call.1} parent=79 // pred_region
          %644 = dma.done %s637, 256
        $region88: #{tpu_custom_call.1} parent=79 // pred_fallthru
          _
        %s645 = sand.u32 %s41, 1
        %s646 = scalar_lea.sflag [#allocation6], %s645
        %s647 = sand.u32 %s101, 1
        %s648 = scalar_lea.vmem [#allocation7], %s647
        // Predicated region
        $region89: #{tpu_custom_call.1} parent=79 // pred_check
          %p649 = pneg %p114
        $region90: #{tpu_custom_call.1} parent=79 // pred_check_branch
          %651 = sbr.rel (%p649) target = $region92
        $region91: #{tpu_custom_call.1} parent=79 // pred_region
          %652 = dma.done %s646, 16
        $region92: #{tpu_custom_call.1} parent=79 // pred_fallthru
          _
        // Predicated region
        $region93: #{tpu_custom_call.1} parent=79 // pred_check
          %p653 = pneg %p135
        $region94: #{tpu_custom_call.1} parent=79 // pred_check_branch
          %655 = sbr.rel (%p653) target = $region96
        $region95: #{tpu_custom_call.1} parent=79 // pred_region
          %656 = dma.done [#allocation9], 512
        $region96: #{tpu_custom_call.1} parent=79 // pred_fallthru
          _
        // Predicated region
        $region97: #{tpu_custom_call.1} parent=79 // pred_check
          %p657 = pneg %p156
        $region98: #{tpu_custom_call.1} parent=79 // pred_check_branch
          %659 = sbr.rel (%p657) target = $region100
        $region99: #{tpu_custom_call.1} parent=79 // pred_region
          %660 = dma.done [#allocation9], 32
        $region100: #{tpu_custom_call.1} parent=79 // pred_fallthru
          _
        // Predicated region
        $region101: #{tpu_custom_call.1} parent=79 // pred_check
          %p661 = pneg %p177
        $region102: #{tpu_custom_call.1} parent=79 // pred_check_branch
          %663 = sbr.rel (%p661) target = $region104
        $region103: #{tpu_custom_call.1} parent=79 // pred_region
          %664 = dma.done [#allocation12], 512
        $region104: #{tpu_custom_call.1} parent=79 // pred_fallthru
          _
        // Predicated region
        $region105: #{tpu_custom_call.1} parent=79 // pred_check
          %p665 = pneg %p198
        $region106: #{tpu_custom_call.1} parent=79 // pred_check_branch
          %667 = sbr.rel (%p665) target = $region108
        $region107: #{tpu_custom_call.1} parent=79 // pred_region
          %668 = dma.done [#allocation12], 32
        $region108: #{tpu_custom_call.1} parent=79 // pred_fallthru
          _
        // Predicated region
        $region109: #{tpu_custom_call.1} parent=79 // pred_check
          %p669 = pneg %p219
        $region110: #{tpu_custom_call.1} parent=79 // pred_check_branch
          %671 = sbr.rel (%p669) target = $region112
        $region111: #{tpu_custom_call.1} parent=79 // pred_region
          %672 = dma.done [#allocation15], 512
        $region112: #{tpu_custom_call.1} parent=79 // pred_fallthru
          _
        // Predicated region
        $region113: #{tpu_custom_call.1} parent=79 // pred_check
          %p673 = pneg %p240
        $region114: #{tpu_custom_call.1} parent=79 // pred_check_branch
          %675 = sbr.rel (%p673) target = $region116
        $region115: #{tpu_custom_call.1} parent=79 // pred_region
          %676 = dma.done [#allocation15], 32
        $region116: #{tpu_custom_call.1} parent=79 // pred_fallthru
          _
        // Predicated region
        $region117: #{tpu_custom_call.1} parent=79 // pred_check
          %p677 = pneg %p261
        $region118: #{tpu_custom_call.1} parent=79 // pred_check_branch
          %679 = sbr.rel (%p677) target = $region120
        $region119: #{tpu_custom_call.1} parent=79 // pred_region
          %680 = dma.done [#allocation18], 256
        $region120: #{tpu_custom_call.1} parent=79 // pred_fallthru
          _
        // Predicated region
        $region121: #{tpu_custom_call.1} parent=79 // pred_check
          %p681 = pneg %p282
        $region122: #{tpu_custom_call.1} parent=79 // pred_check_branch
          %683 = sbr.rel (%p681) target = $region124
        $region123: #{tpu_custom_call.1} parent=79 // pred_region
          %684 = dma.done [#allocation18], 256
        $region124: #{tpu_custom_call.1} parent=79 // pred_fallthru
          _
        // Predicated region
        $region125: #{tpu_custom_call.1} parent=79 // pred_check
          %p685 = pneg %p303
        $region126: #{tpu_custom_call.1} parent=79 // pred_check_branch
          %687 = sbr.rel (%p685) target = $region128
        $region127: #{tpu_custom_call.1} parent=79 // pred_region
          %688 = dma.done [#allocation21], 256
        $region128: #{tpu_custom_call.1} parent=79 // pred_fallthru
          _
        // Predicated region
        $region129: #{tpu_custom_call.1} parent=79 // pred_check
          %p689 = pneg %p324
        $region130: #{tpu_custom_call.1} parent=79 // pred_check_branch
          %691 = sbr.rel (%p689) target = $region132
        $region131: #{tpu_custom_call.1} parent=79 // pred_region
          %692 = dma.done [#allocation21], 16
        $region132: #{tpu_custom_call.1} parent=79 // pred_fallthru
          _
        // Predicated region
        $region133: #{tpu_custom_call.1} parent=79 // pred_check
          %p693 = pneg %p345
        $region134: #{tpu_custom_call.1} parent=79 // pred_check_branch
          %695 = sbr.rel (%p693) target = $region136
        $region135: #{tpu_custom_call.1} parent=79 // pred_region
          %696 = dma.done [#allocation24], 16
        $region136: #{tpu_custom_call.1} parent=79 // pred_fallthru
          _
        // Predicated region
        $region137: #{tpu_custom_call.1} parent=79 // pred_check
          %p697 = pneg %p366
        $region138: #{tpu_custom_call.1} parent=79 // pred_check_branch
          %699 = sbr.rel (%p697) target = $region140
        $region139: #{tpu_custom_call.1} parent=79 // pred_region
          %700 = dma.done [#allocation24], 16
        $region140: #{tpu_custom_call.1} parent=79 // pred_fallthru
          _
        %s701 = sand.u32 %s49, 1
        %s702 = scalar_lea.sflag [#allocation3], %s701
        %s703 = sand.u32 %s49, 1
        %s704 = smul.addr %s703, 8
        %s705 = scalar_lea.vmem [#allocation2], %s704
        %p706 = pneg %p62
        %p707 = pneg %p59
        %s708 = sand.u32 %s41, 1
        %s709 = scalar_lea.sflag [#allocation6], %s708
        %s710 = sand.u32 %s75, 1
        %s711 = smul.addr %s710, 16
        %s712 = scalar_lea.vmem [#allocation5], %s711
        %p713 = pneg %p88
        %p714 = pneg %p85
        %s715 = sand.u32 %s41, 1
        %s716 = scalar_lea.sflag [#allocation6], %s715
        %s717 = sand.u32 %s101, 1
        %s718 = scalar_lea.vmem [#allocation7], %s717
        %p719 = pneg %p114
        %p720 = pneg %p111
        %p721 = pneg %p135
        %p722 = pneg %p132
        %p723 = pneg %p156
        %p724 = pneg %p153
        %p725 = pneg %p177
        %p726 = pneg %p174
        %p727 = pneg %p198
        %p728 = pneg %p195
        %p729 = pneg %p219
        %p730 = pneg %p216
        %p731 = pneg %p240
        %p732 = pneg %p237
        %p733 = pneg %p261
        %p734 = pneg %p258
        %p735 = pneg %p282
        %p736 = pneg %p279
        %p737 = pneg %p303
        %p738 = pneg %p300
        %p739 = pneg %p324
        %p740 = pneg %p321
        %p741 = pneg %p345
        %p742 = pneg %p342
        %p743 = pneg %p366
        %p744 = pneg %p363
        %p745 = pneg %p392
        %p746 = pneg %p389
        %s747 = sand.u32 %s379, 1
        %s748 = scalar_lea.sflag [#allocation4], %s747
        %s749 = sand.u32 %s379, 1
        %s750 = smul.addr %s749, 8
        %s751 = scalar_lea.vmem [#allocation26], %s750
        %v753 = vld [vmem:[%s631] sm:$0xf]
        %v754 = vld [vmem:[%s631 + $0x4] sm:$0xf]
        %v755 = vld [vmem:[%s640] sm:$0xff]
        %v756 = vld [vmem:[%s640 + $0x8] sm:$0xff]
        %v757 = vld [vmem:[%s648] sm:$0x1]
        %v758 = vld [vmem:[#allocation17] sm:$0xff]
        %v759 = vld [vmem:[#allocation17 + $0x8] sm:$0x1]
        %v760 = vpack.c.bf16 %v759, %v758
        %v761 = vld [vmem:[#allocation19] sm:$0xff]
        %v762 = vld [vmem:[#allocation19 + $0x8] sm:$0x1]
        %v763 = vpack.c.bf16 %v762, %v761
        %v764 = vld [vmem:[#allocation11] sm:$0xf]
        %v765 = vld [vmem:[#allocation11 + $0x4] sm:$0xf]
        %v766 = vld [vmem:[#allocation11 + $0x8] sm:$0xf]
        %v767 = vld [vmem:[#allocation11 + $0xc] sm:$0xf]
        %v768 = vld [vmem:[#allocation13] sm:$0x1]
        %v770 = vlaneseq
        %v771 = vshrl.u32 %v770, 7
        %v772 = vsub.s32 0, %v771
        %v773 = vrot.slane %v768, %v772
        %v777 = vunpack.c.l.b16 %v753
        %v778 = vunpack.c.l.b16 %v754
        %v779 = vpack.c.b16 %v778, %v777
        %v784 = vunpack.c.l.b16 %v764
        %v785 = vunpack.c.l.b16 %v765
        %v786 = vunpack.c.l.b16 %v766
        %v787 = vunpack.c.l.b16 %v767
        %v788 = vpack.c.b16 %v785, %v784
        %v789 = vpack.c.b16 %v787, %v786
        %vm792 = vcmask 261120
        %v794 = vsel %vm792, %v779, 0
        %796 = vmatprep.subr.bf16.mxu0 0
        %797 = vmatpush1.bf16.msra.mxu0 %v788
        %798 = vmatprep.subr.bf16.mxu0 0
        %799 = vmatpush1.bf16.msra.mxu0 %v789
        %800 = vmatprep.subr.bf16.mxu0 0
        %801 = vmatpush1.bf16.msra.mxu0 0
        %802 = vmatprep.subr.bf16.mxu0 0
        %803 = vmatpush1.bf16.msra.mxu0 0
        %804 = vmatprep.subr.bf16.mxu0 0
        %805 = vmatpush1.bf16.msra.mxu0 0
        %806 = vmatprep.subr.bf16.mxu0 0
        %807 = vmatpush1.bf16.msra.mxu0 0
        %808 = vmatprep.subr.bf16.mxu0 0
        %809 = vmatpush1.bf16.msra.mxu0 0
        %810 = vmatprep.subr.bf16.mxu0 0
        %811 = vmatpush1.bf16.msra.mxu0 0
        %812 = vmatprep.subr.bf16.mxu0 0
        %813 = vmatpush1.bf16.msra.mxu0 0
        %814 = vmatprep.subr.bf16.mxu0 0
        %815 = vmatpush1.bf16.msra.mxu0 0
        %816 = vmatprep.subr.bf16.mxu0 0
        %817 = vmatpush1.bf16.msra.mxu0 0
        %818 = vmatprep.subr.bf16.mxu0 0
        %819 = vmatpush1.bf16.msra.mxu0 0
        %820 = vmatprep.subr.bf16.mxu0 0
        %821 = vmatpush1.bf16.msra.mxu0 0
        %822 = vmatprep.subr.bf16.mxu0 0
        %823 = vmatpush1.bf16.msra.mxu0 0
        %824 = vmatprep.subr.bf16.mxu0 0
        %825 = vmatpush1.bf16.msra.mxu0 0
        %826 = vmatprep.subr.bf16.mxu0 0
        %827 = vmatpush1.bf16.msra.mxu0 0
        %828 = vmatprep.mubr.bf16.mxu0 0
        %829 = vmatmul.mubr.bf16.gmra.mrb[0].mxu0 %v794
        %v830 = vpop.f32.mrb[0].mxu0
        %v831 = vadd.f32 %v773, %v830
        %v832 = vpop.f32.mrb[0].mxu0
        %v833 = vpop.f32.mrb[0].mxu0
        %v834 = vadd.f32 %v773, %v833
        %v835 = vpop.f32.mrb[0].mxu0
        %836 = vdwg.mxu0
        %v837 = vld [vmem:[#allocation14] sm:$0xf]
        %v838 = vld [vmem:[#allocation14 + $0x4] sm:$0xf]
        %v839 = vld [vmem:[#allocation14 + $0x8] sm:$0xf]
        %v840 = vld [vmem:[#allocation14 + $0xc] sm:$0xf]
        %v841 = vld [vmem:[#allocation16] sm:$0x1]
        %v843 = vlaneseq
        %v844 = vshrl.u32 %v843, 7
        %v845 = vsub.s32 0, %v844
        %v846 = vrot.slane %v841, %v845
        %v852 = vunpack.c.l.b16 %v837
        %v853 = vunpack.c.l.b16 %v838
        %v854 = vunpack.c.l.b16 %v839
        %v855 = vunpack.c.l.b16 %v840
        %v856 = vpack.c.b16 %v853, %v852
        %v857 = vpack.c.b16 %v855, %v854
        %860 = vmatprep.subr.bf16.mxu0 0
        %861 = vmatpush1.bf16.msra.mxu0 %v856
        %862 = vmatprep.subr.bf16.mxu0 0
        %863 = vmatpush1.bf16.msra.mxu0 %v857
        %864 = vmatprep.subr.bf16.mxu0 0
        %865 = vmatpush1.bf16.msra.mxu0 0
        %866 = vmatprep.subr.bf16.mxu0 0
        %867 = vmatpush1.bf16.msra.mxu0 0
        %868 = vmatprep.subr.bf16.mxu0 0
        %869 = vmatpush1.bf16.msra.mxu0 0
        %870 = vmatprep.subr.bf16.mxu0 0
        %871 = vmatpush1.bf16.msra.mxu0 0
        %872 = vmatprep.subr.bf16.mxu0 0
        %873 = vmatpush1.bf16.msra.mxu0 0
        %874 = vmatprep.subr.bf16.mxu0 0
        %875 = vmatpush1.bf16.msra.mxu0 0
        %876 = vmatprep.subr.bf16.mxu0 0
        %877 = vmatpush1.bf16.msra.mxu0 0
        %878 = vmatprep.subr.bf16.mxu0 0
        %879 = vmatpush1.bf16.msra.mxu0 0
        %880 = vmatprep.subr.bf16.mxu0 0
        %881 = vmatpush1.bf16.msra.mxu0 0
        %882 = vmatprep.subr.bf16.mxu0 0
        %883 = vmatpush1.bf16.msra.mxu0 0
        %884 = vmatprep.subr.bf16.mxu0 0
        %885 = vmatpush1.bf16.msra.mxu0 0
        %886 = vmatprep.subr.bf16.mxu0 0
        %887 = vmatpush1.bf16.msra.mxu0 0
        %888 = vmatprep.subr.bf16.mxu0 0
        %889 = vmatpush1.bf16.msra.mxu0 0
        %890 = vmatprep.subr.bf16.mxu0 0
        %891 = vmatpush1.bf16.msra.mxu0 0
        %892 = vmatprep.mubr.bf16.mxu0 0
        %893 = vmatmul.mubr.bf16.gmra.mrb[0].mxu0 %v794
        %v894 = vpop.f32.mrb[0].mxu0
        %v895 = vadd.f32 %v846, %v894
        %v896 = vpop.f32.mrb[0].mxu0
        %v897 = vpop.f32.mrb[0].mxu0
        %v898 = vadd.f32 %v846, %v897
        %v899 = vpop.f32.mrb[0].mxu0
        %900 = vdwg.mxu0
        %v901 = vpack.c.bf16 %v834, %v831
        %v902 = vpack.c.bf16 %v898, %v895
        %s903 = scalar_lea.vmem [#allocation11], 16
        %v904 = vld [vmem:[%s903] sm:$0xf]
        %v905 = vld [vmem:[%s903 + $0x4] sm:$0xf]
        %v906 = vld [vmem:[%s903 + $0x8] sm:$0xf]
        %v907 = vld [vmem:[%s903 + $0xc] sm:$0xf]
        %s908 = scalar_lea.vmem [#allocation13], 1
        %v909 = vld [vmem:[%s908] sm:$0x1]
        %v911 = vlaneseq
        %v912 = vshrl.u32 %v911, 7
        %v913 = vsub.s32 0, %v912
        %v914 = vrot.slane %v909, %v913
        %v920 = vunpack.c.l.b16 %v904
        %v921 = vunpack.c.l.b16 %v905
        %v922 = vunpack.c.l.b16 %v906
        %v923 = vunpack.c.l.b16 %v907
        %v924 = vpack.c.b16 %v921, %v920
        %v925 = vpack.c.b16 %v923, %v922
        %928 = vmatprep.subr.bf16.mxu0 0
        %929 = vmatpush1.bf16.msra.mxu0 %v924
        %930 = vmatprep.subr.bf16.mxu0 0
        %931 = vmatpush1.bf16.msra.mxu0 %v925
        %932 = vmatprep.subr.bf16.mxu0 0
        %933 = vmatpush1.bf16.msra.mxu0 0
        %934 = vmatprep.subr.bf16.mxu0 0
        %935 = vmatpush1.bf16.msra.mxu0 0
        %936 = vmatprep.subr.bf16.mxu0 0
        %937 = vmatpush1.bf16.msra.mxu0 0
        %938 = vmatprep.subr.bf16.mxu0 0
        %939 = vmatpush1.bf16.msra.mxu0 0
        %940 = vmatprep.subr.bf16.mxu0 0
        %941 = vmatpush1.bf16.msra.mxu0 0
        %942 = vmatprep.subr.bf16.mxu0 0
        %943 = vmatpush1.bf16.msra.mxu0 0
        %944 = vmatprep.subr.bf16.mxu0 0
        %945 = vmatpush1.bf16.msra.mxu0 0
        %946 = vmatprep.subr.bf16.mxu0 0
        %947 = vmatpush1.bf16.msra.mxu0 0
        %948 = vmatprep.subr.bf16.mxu0 0
        %949 = vmatpush1.bf16.msra.mxu0 0
        %950 = vmatprep.subr.bf16.mxu0 0
        %951 = vmatpush1.bf16.msra.mxu0 0
        %952 = vmatprep.subr.bf16.mxu0 0
        %953 = vmatpush1.bf16.msra.mxu0 0
        %954 = vmatprep.subr.bf16.mxu0 0
        %955 = vmatpush1.bf16.msra.mxu0 0
        %956 = vmatprep.subr.bf16.mxu0 0
        %957 = vmatpush1.bf16.msra.mxu0 0
        %958 = vmatprep.subr.bf16.mxu0 0
        %959 = vmatpush1.bf16.msra.mxu0 0
        %960 = vmatprep.mubr.bf16.mxu0 0
        %961 = vmatmul.mubr.bf16.gmra.mrb[0].mxu0 %v794
        %v962 = vpop.f32.mrb[0].mxu0
        %v963 = vadd.f32 %v914, %v962
        %v964 = vpop.f32.mrb[0].mxu0
        %v965 = vpop.f32.mrb[0].mxu0
        %v966 = vadd.f32 %v914, %v965
        %v967 = vpop.f32.mrb[0].mxu0
        %968 = vdwg.mxu0
        %s969 = scalar_lea.vmem [#allocation14], 16
        %v970 = vld [vmem:[%s969] sm:$0xf]
        %v971 = vld [vmem:[%s969 + $0x4] sm:$0xf]
        %v972 = vld [vmem:[%s969 + $0x8] sm:$0xf]
        %v973 = vld [vmem:[%s969 + $0xc] sm:$0xf]
        %s974 = scalar_lea.vmem [#allocation16], 1
        %v975 = vld [vmem:[%s974] sm:$0x1]
        %v977 = vlaneseq
        %v978 = vshrl.u32 %v977, 7
        %v979 = vsub.s32 0, %v978
        %v980 = vrot.slane %v975, %v979
        %v986 = vunpack.c.l.b16 %v970
        %v987 = vunpack.c.l.b16 %v971
        %v988 = vunpack.c.l.b16 %v972
        %v989 = vunpack.c.l.b16 %v973
        %v990 = vpack.c.b16 %v987, %v986
        %v991 = vpack.c.b16 %v989, %v988
        %994 = vmatprep.subr.bf16.mxu0 0
        %995 = vmatpush1.bf16.msra.mxu0 %v990
        %996 = vmatprep.subr.bf16.mxu0 0
        %997 = vmatpush1.bf16.msra.mxu0 %v991
        %998 = vmatprep.subr.bf16.mxu0 0
        %999 = vmatpush1.bf16.msra.mxu0 0
        %1000 = vmatprep.subr.bf16.mxu0 0
        %1001 = vmatpush1.bf16.msra.mxu0 0
        %1002 = vmatprep.subr.bf16.mxu0 0
        %1003 = vmatpush1.bf16.msra.mxu0 0
        %1004 = vmatprep.subr.bf16.mxu0 0
        %1005 = vmatpush1.bf16.msra.mxu0 0
        %1006 = vmatprep.subr.bf16.mxu0 0
        %1007 = vmatpush1.bf16.msra.mxu0 0
        %1008 = vmatprep.subr.bf16.mxu0 0
        %1009 = vmatpush1.bf16.msra.mxu0 0
        %1010 = vmatprep.subr.bf16.mxu0 0
        %1011 = vmatpush1.bf16.msra.mxu0 0
        %1012 = vmatprep.subr.bf16.mxu0 0
        %1013 = vmatpush1.bf16.msra.mxu0 0
        %1014 = vmatprep.subr.bf16.mxu0 0
        %1015 = vmatpush1.bf16.msra.mxu0 0
        %1016 = vmatprep.subr.bf16.mxu0 0
        %1017 = vmatpush1.bf16.msra.mxu0 0
        %1018 = vmatprep.subr.bf16.mxu0 0
        %1019 = vmatpush1.bf16.msra.mxu0 0
        %1020 = vmatprep.subr.bf16.mxu0 0
        %1021 = vmatpush1.bf16.msra.mxu0 0
        %1022 = vmatprep.subr.bf16.mxu0 0
        %1023 = vmatpush1.bf16.msra.mxu0 0
        %1024 = vmatprep.subr.bf16.mxu0 0
        %1025 = vmatpush1.bf16.msra.mxu0 0
        %1026 = vmatprep.mubr.bf16.mxu0 0
        %1027 = vmatmul.mubr.bf16.gmra.mrb[0].mxu0 %v794
        %v1028 = vpop.f32.mrb[0].mxu0
        %v1029 = vadd.f32 %v980, %v1028
        %v1030 = vpop.f32.mrb[0].mxu0
        %v1031 = vpop.f32.mrb[0].mxu0
        %v1032 = vadd.f32 %v980, %v1031
        %v1033 = vpop.f32.mrb[0].mxu0
        %1034 = vdwg.mxu0
        %v1035 = vpack.c.bf16 %v966, %v963
        %v1036 = vpack.c.bf16 %v1032, %v1029
        %v1037 = vlaneseq
        %v1038 = vshrl.u32 %v1037, 7
        %v1039 = vadd.s32 %v1038, 8
        %v1040 = vlaneseq
        %v1041 = vand.u32 %v1040, 127
        %v1042 = vsub.s32 %v1041, %v1038
        %v1043 = vsub.s32 %v1041, %v1039
        %vm1044 = vcmp.eq.s32.totalorder %v1042, 4294967292
        %vm1045 = vcmp.eq.s32.totalorder %v1043, 4294967292
        %v1046 = vsel %vm1044, 1, 0
        %v1047 = vsel %vm1045, 1, 0
        %v1048 = vcvt.s32.f32 %v1046
        %v1049 = vcvt.s32.f32 %v1047
        %vm1050 = vcmp.eq.s32.totalorder %v1042, 4294967293
        %vm1051 = vcmp.eq.s32.totalorder %v1043, 4294967293
        %v1052 = vsel %vm1050, 1, 0
        %v1053 = vsel %vm1051, 1, 0
        %v1054 = vcvt.s32.f32 %v1052
        %v1055 = vcvt.s32.f32 %v1053
        %vm1056 = vcmp.eq.s32.totalorder %v1042, 4294967294
        %vm1057 = vcmp.eq.s32.totalorder %v1043, 4294967294
        %v1058 = vsel %vm1056, 1, 0
        %v1059 = vsel %vm1057, 1, 0
        %v1060 = vcvt.s32.f32 %v1058
        %v1061 = vcvt.s32.f32 %v1059
        %vm1062 = vcmp.eq.s32.totalorder %v1042, 4294967295
        %vm1063 = vcmp.eq.s32.totalorder %v1043, 4294967295
        %v1064 = vsel %vm1062, 1, 0
        %v1065 = vsel %vm1063, 1, 0
        %v1066 = vcvt.s32.f32 %v1064
        %v1067 = vcvt.s32.f32 %v1065
        %vm1068 = vcmp.eq.s32.totalorder %v1042, 0
        %vm1069 = vcmp.eq.s32.totalorder %v1043, 0
        %v1070 = vsel %vm1068, 1, 0
        %v1071 = vsel %vm1069, 1, 0
        %v1072 = vcvt.s32.f32 %v1070
        %v1073 = vcvt.s32.f32 %v1071
        %vm1074 = vcmp.eq.s32.totalorder %v1042, 1
        %vm1075 = vcmp.eq.s32.totalorder %v1043, 1
        %v1076 = vsel %vm1074, 1, 0
        %v1077 = vsel %vm1075, 1, 0
        %v1078 = vcvt.s32.f32 %v1076
        %v1079 = vcvt.s32.f32 %v1077
        %vm1080 = vcmp.eq.s32.totalorder %v1042, 2
        %vm1081 = vcmp.eq.s32.totalorder %v1043, 2
        %v1082 = vsel %vm1080, 1, 0
        %v1083 = vsel %vm1081, 1, 0
        %v1084 = vcvt.s32.f32 %v1082
        %v1085 = vcvt.s32.f32 %v1083
        %vm1086 = vcmp.eq.s32.totalorder %v1042, 3
        %vm1087 = vcmp.eq.s32.totalorder %v1043, 3
        %v1088 = vsel %vm1086, 1, 0
        %v1089 = vsel %vm1087, 1, 0
        %v1090 = vcvt.s32.f32 %v1088
        %v1091 = vcvt.s32.f32 %v1089
        %vm1092 = vcmp.eq.s32.totalorder %v1042, 4
        %vm1093 = vcmp.eq.s32.totalorder %v1043, 4
        %v1094 = vsel %vm1092, 1, 0
        %v1095 = vsel %vm1093, 1, 0
        %v1096 = vcvt.s32.f32 %v1094
        %v1097 = vcvt.s32.f32 %v1095
        %1099 = vset.pattern.permute.xlu0 0
        %1100 = vperm.xlu0 %1099, %v755
        %v1101 = vpop.permute.xlu0 %1100
        %1104 = vset.pattern.permute.xlu0 0
        %1105 = vperm.xlu0 %1104, %v756
        %v1106 = vpop.permute.xlu0 %1105
        %v1109 = vlaneseq
        %v1110 = vshrl.u32 %v1109, 7
        %v1111 = vsub.s32 0, %v1110
        %v1112 = vrot.slane %v757, %v1111
        %v1114 = vmul.f32 %v1101, %v1112
        %v1115 = vmul.f32 %v1106, %v1112
        %vm1116 = vcmp.eq.f32.partialorder %v1114, 0.0
        %vm1117 = vcmp.eq.f32.partialorder %v1115, 0.0
        %v1118 = vld [vmem:[#allocation8] sm:$0xf]
        %v1119 = vld [vmem:[#allocation8 + $0x4] sm:$0xf]
        %v1120 = vld [vmem:[#allocation8 + $0x8] sm:$0xf]
        %v1121 = vld [vmem:[#allocation8 + $0xc] sm:$0xf]
        %v1122 = vld [vmem:[#allocation10] sm:$0x1]
        %v1124 = vlaneseq
        %v1125 = vshrl.u32 %v1124, 7
        %v1126 = vsub.s32 0, %v1125
        %v1127 = vrot.slane %v1122, %v1126
        %v1133 = vunpack.c.l.b16 %v1118
        %v1134 = vunpack.c.l.b16 %v1119
        %v1135 = vunpack.c.l.b16 %v1120
        %v1136 = vunpack.c.l.b16 %v1121
        %v1137 = vpack.c.b16 %v1134, %v1133
        %v1138 = vpack.c.b16 %v1136, %v1135
        %1141 = vmatprep.subr.bf16.mxu0 0
        %1142 = vmatpush1.bf16.msra.mxu0 %v1137
        %1143 = vmatprep.subr.bf16.mxu0 0
        %1144 = vmatpush1.bf16.msra.mxu0 %v1138
        %1145 = vmatprep.subr.bf16.mxu0 0
        %1146 = vmatpush1.bf16.msra.mxu0 0
        %1147 = vmatprep.subr.bf16.mxu0 0
        %1148 = vmatpush1.bf16.msra.mxu0 0
        %1149 = vmatprep.subr.bf16.mxu0 0
        %1150 = vmatpush1.bf16.msra.mxu0 0
        %1151 = vmatprep.subr.bf16.mxu0 0
        %1152 = vmatpush1.bf16.msra.mxu0 0
        %1153 = vmatprep.subr.bf16.mxu0 0
        %1154 = vmatpush1.bf16.msra.mxu0 0
        %1155 = vmatprep.subr.bf16.mxu0 0
        %1156 = vmatpush1.bf16.msra.mxu0 0
        %1157 = vmatprep.subr.bf16.mxu0 0
        %1158 = vmatpush1.bf16.msra.mxu0 0
        %1159 = vmatprep.subr.bf16.mxu0 0
        %1160 = vmatpush1.bf16.msra.mxu0 0
        %1161 = vmatprep.subr.bf16.mxu0 0
        %1162 = vmatpush1.bf16.msra.mxu0 0
        %1163 = vmatprep.subr.bf16.mxu0 0
        %1164 = vmatpush1.bf16.msra.mxu0 0
        %1165 = vmatprep.subr.bf16.mxu0 0
        %1166 = vmatpush1.bf16.msra.mxu0 0
        %1167 = vmatprep.subr.bf16.mxu0 0
        %1168 = vmatpush1.bf16.msra.mxu0 0
        %1169 = vmatprep.subr.bf16.mxu0 0
        %1170 = vmatpush1.bf16.msra.mxu0 0
        %1171 = vmatprep.subr.bf16.mxu0 0
        %1172 = vmatpush1.bf16.msra.mxu0 0
        %1173 = vmatprep.mubr.bf16.mxu0 0
        %1174 = vmatmul.mubr.bf16.gmra.mrb[0].mxu0 %v794
        %v1175 = vpop.f32.mrb[0].mxu0
        %v1176 = vadd.f32 %v1127, %v1175
        %v1177 = vpop.f32.mrb[0].mxu0
        %v1178 = vpop.f32.mrb[0].mxu0
        %v1179 = vadd.f32 %v1127, %v1178
        %v1180 = vpop.f32.mrb[0].mxu0
        %1181 = vdwg.mxu0
        %v1182 = vmul.f32 %v1176, 0.25
        %v1183 = vmul.f32 %v1179, 0.25
        %v1184 = vpack.c.bf16 %v1183, %v1182
        %vm1185 = vcmask 130048
        %v1187 = vsel %vm1185, %v1184, 0
        %v1190 = vsel %vm1185, %v760, 0
        %1192 = vmatprep.subr.bf16.mxu0 0
        %1193 = vmatpush1.bf16.xpose.msra.mxu0 %v1190
        %1194 = vmatprep.subr.bf16.mxu0 0
        %1195 = vmatpush1.bf16.xpose.msra.mxu0 0
        %1196 = vmatprep.subr.bf16.mxu0 0
        %1197 = vmatpush1.bf16.xpose.msra.mxu0 0
        %1198 = vmatprep.subr.bf16.mxu0 0
        %1199 = vmatpush1.bf16.xpose.msra.mxu0 0
        %1200 = vmatprep.subr.bf16.mxu0 0
        %1201 = vmatpush1.bf16.xpose.msra.mxu0 0
        %1202 = vmatprep.subr.bf16.mxu0 0
        %1203 = vmatpush1.bf16.xpose.msra.mxu0 0
        %1204 = vmatprep.subr.bf16.mxu0 0
        %1205 = vmatpush1.bf16.xpose.msra.mxu0 0
        %1206 = vmatprep.subr.bf16.mxu0 0
        %1207 = vmatpush1.bf16.xpose.msra.mxu0 0
        %1208 = vmatprep.subr.bf16.mxu0 0
        %1209 = vmatpush1.bf16.xpose.msra.mxu0 0
        %1210 = vmatprep.subr.bf16.mxu0 0
        %1211 = vmatpush1.bf16.xpose.msra.mxu0 0
        %1212 = vmatprep.subr.bf16.mxu0 0
        %1213 = vmatpush1.bf16.xpose.msra.mxu0 0
        %1214 = vmatprep.subr.bf16.mxu0 0
        %1215 = vmatpush1.bf16.xpose.msra.mxu0 0
        %1216 = vmatprep.subr.bf16.mxu0 0
        %1217 = vmatpush1.bf16.xpose.msra.mxu0 0
        %1218 = vmatprep.subr.bf16.mxu0 0
        %1219 = vmatpush1.bf16.xpose.msra.mxu0 0
        %1220 = vmatprep.subr.bf16.mxu0 0
        %1221 = vmatpush1.bf16.xpose.msra.mxu0 0
        %1222 = vmatprep.subr.bf16.mxu0 0
        %1223 = vmatpush1.bf16.xpose.msra.mxu0 0
        %1224 = vmatprep.mubr.bf16.mxu0 0
        %1225 = vmatmul.mubr.bf16.gmra.mrb[0].mxu0 %v1187
        %v1226 = vpop.f32.mrb[0].mxu0
        %v1227 = vadd.f32 0.0, %v1226
        %v1228 = vpop.f32.mrb[0].mxu0
        %v1229 = vpop.f32.mrb[0].mxu0
        %v1230 = vadd.f32 0.0, %v1229
        %v1231 = vpop.f32.mrb[0].mxu0
        %1232 = vdwg.mxu0
        %1234 = vset.pattern.permute.xlu0 0
        %1235 = vperm.xlu0 %1234, %v1227
        %v1236 = vpop.permute.xlu0 %1235
        %1239 = vset.pattern.permute.xlu0 0
        %1240 = vperm.xlu0 %1239, %v1230
        %v1241 = vpop.permute.xlu0 %1240
        %v1243 = vmul.f32 %v1236, %v1048
        %v1244 = vmul.f32 %v1241, %v1049
        %v1245 = vadd.f32 %v1243, 0.0
        %v1246 = vadd.f32 %v1244, 0.0
        %1247 = vset.pattern.permute.xlu0 1
        %1248 = vperm.xlu0 %1247, %v1227
        %v1249 = vpop.permute.xlu0 %1248
        %1251 = vset.pattern.permute.xlu0 1
        %1252 = vperm.xlu0 %1251, %v1230
        %v1253 = vpop.permute.xlu0 %1252
        %v1255 = vmul.f32 %v1249, %v1054
        %v1256 = vmul.f32 %v1253, %v1055
        %v1257 = vadd.f32 %v1245, %v1255
        %v1258 = vadd.f32 %v1246, %v1256
        %1259 = vset.pattern.permute.xlu0 2
        %1260 = vperm.xlu0 %1259, %v1227
        %v1261 = vpop.permute.xlu0 %1260
        %1263 = vset.pattern.permute.xlu0 2
        %1264 = vperm.xlu0 %1263, %v1230
        %v1265 = vpop.permute.xlu0 %1264
        %v1267 = vmul.f32 %v1261, %v1060
        %v1268 = vmul.f32 %v1265, %v1061
        %v1269 = vadd.f32 %v1257, %v1267
        %v1270 = vadd.f32 %v1258, %v1268
        %1271 = vset.pattern.permute.xlu0 3
        %1272 = vperm.xlu0 %1271, %v1227
        %v1273 = vpop.permute.xlu0 %1272
        %1275 = vset.pattern.permute.xlu0 3
        %1276 = vperm.xlu0 %1275, %v1230
        %v1277 = vpop.permute.xlu0 %1276
        %v1279 = vmul.f32 %v1273, %v1066
        %v1280 = vmul.f32 %v1277, %v1067
        %v1281 = vadd.f32 %v1269, %v1279
        %v1282 = vadd.f32 %v1270, %v1280
        %1283 = vset.pattern.permute.xlu0 4
        %1284 = vperm.xlu0 %1283, %v1227
        %v1285 = vpop.permute.xlu0 %1284
        %1287 = vset.pattern.permute.xlu0 4
        %1288 = vperm.xlu0 %1287, %v1230
        %v1289 = vpop.permute.xlu0 %1288
        %v1291 = vmul.f32 %v1285, %v1072
        %v1292 = vmul.f32 %v1289, %v1073
        %v1293 = vadd.f32 %v1281, %v1291
        %v1294 = vadd.f32 %v1282, %v1292
        %1295 = vset.pattern.permute.xlu0 5
        %1296 = vperm.xlu0 %1295, %v1227
        %v1297 = vpop.permute.xlu0 %1296
        %1299 = vset.pattern.permute.xlu0 5
        %1300 = vperm.xlu0 %1299, %v1230
        %v1301 = vpop.permute.xlu0 %1300
        %v1303 = vmul.f32 %v1297, %v1078
        %v1304 = vmul.f32 %v1301, %v1079
        %v1305 = vadd.f32 %v1293, %v1303
        %v1306 = vadd.f32 %v1294, %v1304
        %1307 = vset.pattern.permute.xlu0 6
        %1308 = vperm.xlu0 %1307, %v1227
        %v1309 = vpop.permute.xlu0 %1308
        %1311 = vset.pattern.permute.xlu0 6
        %1312 = vperm.xlu0 %1311, %v1230
        %v1313 = vpop.permute.xlu0 %1312
        %v1315 = vmul.f32 %v1309, %v1084
        %v1316 = vmul.f32 %v1313, %v1085
        %v1317 = vadd.f32 %v1305, %v1315
        %v1318 = vadd.f32 %v1306, %v1316
        %1319 = vset.pattern.permute.xlu0 7
        %1320 = vperm.xlu0 %1319, %v1227
        %v1321 = vpop.permute.xlu0 %1320
        %1323 = vset.pattern.permute.xlu0 7
        %1324 = vperm.xlu0 %1323, %v1230
        %v1325 = vpop.permute.xlu0 %1324
        %v1327 = vmul.f32 %v1321, %v1090
        %v1328 = vmul.f32 %v1325, %v1091
        %v1329 = vadd.f32 %v1317, %v1327
        %v1330 = vadd.f32 %v1318, %v1328
        %1331 = vset.pattern.permute.xlu0 8
        %1332 = vperm.xlu0 %1331, %v1227
        %v1333 = vpop.permute.xlu0 %1332
        %1335 = vset.pattern.permute.xlu0 8
        %1336 = vperm.xlu0 %1335, %v1230
        %v1337 = vpop.permute.xlu0 %1336
        %v1339 = vmul.f32 %v1333, %v1096
        %v1340 = vmul.f32 %v1337, %v1097
        %v1341 = vadd.f32 %v1329, %v1339
        %v1342 = vadd.f32 %v1330, %v1340
        %v1344 = vsel %vm1185, %v901, 0
        %1346 = vmatprep.subr.bf16.mxu0 0
        %1347 = vmatpush1.bf16.xpose.msra.mxu0 %v1344
        %1348 = vmatprep.subr.bf16.mxu0 0
        %1349 = vmatpush1.bf16.xpose.msra.mxu0 0
        %1350 = vmatprep.subr.bf16.mxu0 0
        %1351 = vmatpush1.bf16.xpose.msra.mxu0 0
        %1352 = vmatprep.subr.bf16.mxu0 0
        %1353 = vmatpush1.bf16.xpose.msra.mxu0 0
        %1354 = vmatprep.subr.bf16.mxu0 0
        %1355 = vmatpush1.bf16.xpose.msra.mxu0 0
        %1356 = vmatprep.subr.bf16.mxu0 0
        %1357 = vmatpush1.bf16.xpose.msra.mxu0 0
        %1358 = vmatprep.subr.bf16.mxu0 0
        %1359 = vmatpush1.bf16.xpose.msra.mxu0 0
        %1360 = vmatprep.subr.bf16.mxu0 0
        %1361 = vmatpush1.bf16.xpose.msra.mxu0 0
        %1362 = vmatprep.subr.bf16.mxu0 0
        %1363 = vmatpush1.bf16.xpose.msra.mxu0 0
        %1364 = vmatprep.subr.bf16.mxu0 0
        %1365 = vmatpush1.bf16.xpose.msra.mxu0 0
        %1366 = vmatprep.subr.bf16.mxu0 0
        %1367 = vmatpush1.bf16.xpose.msra.mxu0 0
        %1368 = vmatprep.subr.bf16.mxu0 0
        %1369 = vmatpush1.bf16.xpose.msra.mxu0 0
        %1370 = vmatprep.subr.bf16.mxu0 0
        %1371 = vmatpush1.bf16.xpose.msra.mxu0 0
        %1372 = vmatprep.subr.bf16.mxu0 0
        %1373 = vmatpush1.bf16.xpose.msra.mxu0 0
        %1374 = vmatprep.subr.bf16.mxu0 0
        %1375 = vmatpush1.bf16.xpose.msra.mxu0 0
        %1376 = vmatprep.subr.bf16.mxu0 0
        %1377 = vmatpush1.bf16.xpose.msra.mxu0 0
        %1378 = vmatprep.mubr.bf16.mxu0 0
        %1379 = vmatmul.mubr.bf16.gmra.mrb[0].mxu0 %v1187
        %v1380 = vpop.f32.mrb[0].mxu0
        %v1381 = vadd.f32 %v1341, %v1380
        %v1382 = vpop.f32.mrb[0].mxu0
        %v1383 = vpop.f32.mrb[0].mxu0
        %v1384 = vadd.f32 %v1342, %v1383
        %v1385 = vpop.f32.mrb[0].mxu0
        %1386 = vdwg.mxu0
        %v1387 = vsel %vm1116, -10000.0, %v1381
        %v1388 = vsel %vm1117, -10000.0, %v1384
        %v1389 = vsel %vm1185, %v1387, -inf
        %1390 = vmax.xlane.f32.xlu0 %v1389
        %v1391 = vpop.xlane.xlu0 %1390
        %v1392 = vsel %vm1185, %v1388, -inf
        %1393 = vmax.xlane.f32.xlu0 %v1392
        %v1394 = vpop.xlane.xlu0 %1393
        %v1395 = vsub.f32 %v1387, %v1391
        %v1396 = vsub.f32 %v1388, %v1394
        %v1397 = vmul.f32 %v1395, 1.442695
        %v1398 = vpow.pop %v1397
        %v1399 = vmul.f32 %v1396, 1.442695
        %v1400 = vpow.pop %v1399
        %v1401 = vsel %vm1185, %v1398, 0.0
        %1402 = vadd.xlane.f32.xlu0 %v1401
        %v1403 = vpop.xlane.xlu0 %1402
        %v1404 = vsel %vm1185, %v1400, 0.0
        %1405 = vadd.xlane.f32.xlu0 %v1404
        %v1406 = vpop.xlane.xlu0 %1405
        %v1407 = vrcp.pop %v1403
        %v1408 = vrcp.pop %v1406
        %v1409 = vmul.f32 %v1398, %v1407
        %v1410 = vmul.f32 %v1400, %v1408
        %v1411 = vpack.c.bf16 %v1410, %v1409
        %v1412 = vmul.f32 %v1409, %v1048
        %v1413 = vmul.f32 %v1410, %v1049
        %v1414 = vsel %vm1185, %v1412, 0.0
        %1415 = vadd.xlane.f32.xlu0 %v1414
        %v1416 = vpop.xlane.xlu0 %1415
        %v1417 = vsel %vm1185, %v1413, 0.0
        %1418 = vadd.xlane.f32.xlu0 %v1417
        %v1419 = vpop.xlane.xlu0 %1418
        %v1420 = vmul.f32 %v1409, %v1054
        %v1421 = vmul.f32 %v1410, %v1055
        %v1422 = vsel %vm1185, %v1420, 0.0
        %1423 = vadd.xlane.f32.xlu0 %v1422
        %v1424 = vpop.xlane.xlu0 %1423
        %v1425 = vsel %vm1185, %v1421, 0.0
        %1426 = vadd.xlane.f32.xlu0 %v1425
        %v1427 = vpop.xlane.xlu0 %1426
        %v1428 = vmul.f32 %v1409, %v1060
        %v1429 = vmul.f32 %v1410, %v1061
        %v1430 = vsel %vm1185, %v1428, 0.0
        %1431 = vadd.xlane.f32.xlu0 %v1430
        %v1432 = vpop.xlane.xlu0 %1431
        %v1433 = vsel %vm1185, %v1429, 0.0
        %1434 = vadd.xlane.f32.xlu0 %v1433
        %v1435 = vpop.xlane.xlu0 %1434
        %v1436 = vmul.f32 %v1409, %v1066
        %v1437 = vmul.f32 %v1410, %v1067
        %v1438 = vsel %vm1185, %v1436, 0.0
        %1439 = vadd.xlane.f32.xlu0 %v1438
        %v1440 = vpop.xlane.xlu0 %1439
        %v1441 = vsel %vm1185, %v1437, 0.0
        %1442 = vadd.xlane.f32.xlu0 %v1441
        %v1443 = vpop.xlane.xlu0 %1442
        %v1444 = vmul.f32 %v1409, %v1072
        %v1445 = vmul.f32 %v1410, %v1073
        %v1446 = vsel %vm1185, %v1444, 0.0
        %1447 = vadd.xlane.f32.xlu0 %v1446
        %v1448 = vpop.xlane.xlu0 %1447
        %v1449 = vsel %vm1185, %v1445, 0.0
        %1450 = vadd.xlane.f32.xlu0 %v1449
        %v1451 = vpop.xlane.xlu0 %1450
        %v1452 = vmul.f32 %v1409, %v1078
        %v1453 = vmul.f32 %v1410, %v1079
        %v1454 = vsel %vm1185, %v1452, 0.0
        %1455 = vadd.xlane.f32.xlu0 %v1454
        %v1456 = vpop.xlane.xlu0 %1455
        %v1457 = vsel %vm1185, %v1453, 0.0
        %1458 = vadd.xlane.f32.xlu0 %v1457
        %v1459 = vpop.xlane.xlu0 %1458
        %v1460 = vmul.f32 %v1409, %v1084
        %v1461 = vmul.f32 %v1410, %v1085
        %v1462 = vsel %vm1185, %v1460, 0.0
        %1463 = vadd.xlane.f32.xlu0 %v1462
        %v1464 = vpop.xlane.xlu0 %1463
        %v1465 = vsel %vm1185, %v1461, 0.0
        %1466 = vadd.xlane.f32.xlu0 %v1465
        %v1467 = vpop.xlane.xlu0 %1466
        %v1468 = vmul.f32 %v1409, %v1090
        %v1469 = vmul.f32 %v1410, %v1091
        %v1470 = vsel %vm1185, %v1468, 0.0
        %1471 = vadd.xlane.f32.xlu0 %v1470
        %v1472 = vpop.xlane.xlu0 %1471
        %v1473 = vsel %vm1185, %v1469, 0.0
        %1474 = vadd.xlane.f32.xlu0 %v1473
        %v1475 = vpop.xlane.xlu0 %1474
        %v1476 = vmul.f32 %v1409, %v1096
        %v1477 = vmul.f32 %v1410, %v1097
        %v1478 = vsel %vm1185, %v1476, 0.0
        %1479 = vadd.xlane.f32.xlu0 %v1478
        %v1480 = vpop.xlane.xlu0 %1479
        %v1481 = vsel %vm1185, %v1477, 0.0
        %1482 = vadd.xlane.f32.xlu0 %v1481
        %v1483 = vpop.xlane.xlu0 %1482
        %vm1484 = vcmask 7168
        %v1485 = vsel %vm1484, %v1416, %v1424
        %v1486 = vsel %vm1484, %v1419, %v1427
        %vm1487 = vcmask 15360
        %v1488 = vsel %vm1487, %v1485, %v1432
        %v1489 = vsel %vm1487, %v1486, %v1435
        %vm1490 = vcmask 23552
        %v1491 = vsel %vm1490, %v1488, %v1440
        %v1492 = vsel %vm1490, %v1489, %v1443
        %vm1493 = vcmask 31744
        %v1494 = vsel %vm1493, %v1491, %v1448
        %v1495 = vsel %vm1493, %v1492, %v1451
        %vm1496 = vcmask 39936
        %v1497 = vsel %vm1496, %v1494, %v1456
        %v1498 = vsel %vm1496, %v1495, %v1459
        %vm1499 = vcmask 48128
        %v1500 = vsel %vm1499, %v1497, %v1464
        %v1501 = vsel %vm1499, %v1498, %v1467
        %vm1502 = vcmask 56320
        %v1503 = vsel %vm1502, %v1500, %v1472
        %v1504 = vsel %vm1502, %v1501, %v1475
        %vm1505 = vcmask 64512
        %v1506 = vsel %vm1505, %v1503, %v1480
        %v1507 = vsel %vm1505, %v1504, %v1483
        %v1508 = vpack.c.bf16 %v1507, %v1506
        %vm1509 = vcmask 72704
        %v1511 = vsel %vm1509, %v1508, 0
        %vm1513 = vcmask 1043456
        %vm1514 = vcmask 1044480
        %v1515 = vsel %vm1513, 4294967295, 65535
        %v1516 = vsel %vm1514, %v1515, 0
        %v1518 = vand.u32 %v763, %v1516
        %1520 = vmatprep.subr.bf16.mxu0 0
        %1521 = vmatpush1.bf16.msra.mxu0 %v1518
        %1522 = vmatprep.subr.bf16.mxu0 0
        %1523 = vmatpush1.bf16.msra.mxu0 0
        %1524 = vmatprep.subr.bf16.mxu0 0
        %1525 = vmatpush1.bf16.msra.mxu0 0
        %1526 = vmatprep.subr.bf16.mxu0 0
        %1527 = vmatpush1.bf16.msra.mxu0 0
        %1528 = vmatprep.subr.bf16.mxu0 0
        %1529 = vmatpush1.bf16.msra.mxu0 0
        %1530 = vmatprep.subr.bf16.mxu0 0
        %1531 = vmatpush1.bf16.msra.mxu0 0
        %1532 = vmatprep.subr.bf16.mxu0 0
        %1533 = vmatpush1.bf16.msra.mxu0 0
        %1534 = vmatprep.subr.bf16.mxu0 0
        %1535 = vmatpush1.bf16.msra.mxu0 0
        %1536 = vmatprep.subr.bf16.mxu0 0
        %1537 = vmatpush1.bf16.msra.mxu0 0
        %1538 = vmatprep.subr.bf16.mxu0 0
        %1539 = vmatpush1.bf16.msra.mxu0 0
        %1540 = vmatprep.subr.bf16.mxu0 0
        %1541 = vmatpush1.bf16.msra.mxu0 0
        %1542 = vmatprep.subr.bf16.mxu0 0
        %1543 = vmatpush1.bf16.msra.mxu0 0
        %1544 = vmatprep.subr.bf16.mxu0 0
        %1545 = vmatpush1.bf16.msra.mxu0 0
        %1546 = vmatprep.subr.bf16.mxu0 0
        %1547 = vmatpush1.bf16.msra.mxu0 0
        %1548 = vmatprep.subr.bf16.mxu0 0
        %1549 = vmatpush1.bf16.msra.mxu0 0
        %1550 = vmatprep.subr.bf16.mxu0 0
        %1551 = vmatpush1.bf16.msra.mxu0 0
        %1552 = vmatprep.mubr.bf16.mxu0 0
        %1553 = vmatmul.mubr.bf16.gmra.mrb[0].mxu0 %v1511
        %v1554 = vpop.f32.mrb[0].mxu0
        %v1555 = vadd.f32 0.0, %v1554
        %v1556 = vpop.f32.mrb[0].mxu0
        %v1557 = vpop.f32.mrb[0].mxu0
        %v1558 = vadd.f32 0.0, %v1557
        %v1559 = vpop.f32.mrb[0].mxu0
        %1560 = vdwg.mxu0
        %v1562 = vsel %vm1185, %v1411, 0
        %1564 = vmatprep.subr.bf16.mxu0 0
        %1565 = vmatpush1.bf16.msra.mxu0 %v902
        %1566 = vmatprep.subr.bf16.mxu0 0
        %1567 = vmatpush1.bf16.msra.mxu0 0
        %1568 = vmatprep.subr.bf16.mxu0 0
        %1569 = vmatpush1.bf16.msra.mxu0 0
        %1570 = vmatprep.subr.bf16.mxu0 0
        %1571 = vmatpush1.bf16.msra.mxu0 0
        %1572 = vmatprep.subr.bf16.mxu0 0
        %1573 = vmatpush1.bf16.msra.mxu0 0
        %1574 = vmatprep.subr.bf16.mxu0 0
        %1575 = vmatpush1.bf16.msra.mxu0 0
        %1576 = vmatprep.subr.bf16.mxu0 0
        %1577 = vmatpush1.bf16.msra.mxu0 0
        %1578 = vmatprep.subr.bf16.mxu0 0
        %1579 = vmatpush1.bf16.msra.mxu0 0
        %1580 = vmatprep.subr.bf16.mxu0 0
        %1581 = vmatpush1.bf16.msra.mxu0 0
        %1582 = vmatprep.subr.bf16.mxu0 0
        %1583 = vmatpush1.bf16.msra.mxu0 0
        %1584 = vmatprep.subr.bf16.mxu0 0
        %1585 = vmatpush1.bf16.msra.mxu0 0
        %1586 = vmatprep.subr.bf16.mxu0 0
        %1587 = vmatpush1.bf16.msra.mxu0 0
        %1588 = vmatprep.subr.bf16.mxu0 0
        %1589 = vmatpush1.bf16.msra.mxu0 0
        %1590 = vmatprep.subr.bf16.mxu0 0
        %1591 = vmatpush1.bf16.msra.mxu0 0
        %1592 = vmatprep.subr.bf16.mxu0 0
        %1593 = vmatpush1.bf16.msra.mxu0 0
        %1594 = vmatprep.subr.bf16.mxu0 0
        %1595 = vmatpush1.bf16.msra.mxu0 0
        %1596 = vmatprep.mubr.bf16.mxu0 0
        %1597 = vmatmul.mubr.bf16.gmra.mrb[0].mxu0 %v1562
        %v1598 = vpop.f32.mrb[0].mxu0
        %v1599 = vadd.f32 %v1555, %v1598
        %v1600 = vpop.f32.mrb[0].mxu0
        %v1601 = vpop.f32.mrb[0].mxu0
        %v1602 = vadd.f32 %v1558, %v1601
        %v1603 = vpop.f32.mrb[0].mxu0
        %1604 = vdwg.mxu0
        %v1605 = vpack.c.bf16 %v1602, %v1599
        %v1606 = vld [vmem:[#allocation20] sm:$0xf]
        %v1607 = vld [vmem:[#allocation20 + $0x4] sm:$0xf]
        %s1608 = scalar_lea.vmem [#allocation8], 16
        %v1609 = vld [vmem:[%s1608] sm:$0xf]
        %v1610 = vld [vmem:[%s1608 + $0x4] sm:$0xf]
        %v1611 = vld [vmem:[%s1608 + $0x8] sm:$0xf]
        %v1612 = vld [vmem:[%s1608 + $0xc] sm:$0xf]
        %s1613 = scalar_lea.vmem [#allocation10], 1
        %v1614 = vld [vmem:[%s1613] sm:$0x1]
        %v1616 = vlaneseq
        %v1617 = vshrl.u32 %v1616, 7
        %v1618 = vsub.s32 0, %v1617
        %v1619 = vrot.slane %v1614, %v1618
        %v1625 = vunpack.c.l.b16 %v1609
        %v1626 = vunpack.c.l.b16 %v1610
        %v1627 = vunpack.c.l.b16 %v1611
        %v1628 = vunpack.c.l.b16 %v1612
        %v1629 = vpack.c.b16 %v1626, %v1625
        %v1630 = vpack.c.b16 %v1628, %v1627
        %1633 = vmatprep.subr.bf16.mxu0 0
        %1634 = vmatpush1.bf16.msra.mxu0 %v1629
        %1635 = vmatprep.subr.bf16.mxu0 0
        %1636 = vmatpush1.bf16.msra.mxu0 %v1630
        %1637 = vmatprep.subr.bf16.mxu0 0
        %1638 = vmatpush1.bf16.msra.mxu0 0
        %1639 = vmatprep.subr.bf16.mxu0 0
        %1640 = vmatpush1.bf16.msra.mxu0 0
        %1641 = vmatprep.subr.bf16.mxu0 0
        %1642 = vmatpush1.bf16.msra.mxu0 0
        %1643 = vmatprep.subr.bf16.mxu0 0
        %1644 = vmatpush1.bf16.msra.mxu0 0
        %1645 = vmatprep.subr.bf16.mxu0 0
        %1646 = vmatpush1.bf16.msra.mxu0 0
        %1647 = vmatprep.subr.bf16.mxu0 0
        %1648 = vmatpush1.bf16.msra.mxu0 0
        %1649 = vmatprep.subr.bf16.mxu0 0
        %1650 = vmatpush1.bf16.msra.mxu0 0
        %1651 = vmatprep.subr.bf16.mxu0 0
        %1652 = vmatpush1.bf16.msra.mxu0 0
        %1653 = vmatprep.subr.bf16.mxu0 0
        %1654 = vmatpush1.bf16.msra.mxu0 0
        %1655 = vmatprep.subr.bf16.mxu0 0
        %1656 = vmatpush1.bf16.msra.mxu0 0
        %1657 = vmatprep.subr.bf16.mxu0 0
        %1658 = vmatpush1.bf16.msra.mxu0 0
        %1659 = vmatprep.subr.bf16.mxu0 0
        %1660 = vmatpush1.bf16.msra.mxu0 0
        %1661 = vmatprep.subr.bf16.mxu0 0
        %1662 = vmatpush1.bf16.msra.mxu0 0
        %1663 = vmatprep.subr.bf16.mxu0 0
        %1664 = vmatpush1.bf16.msra.mxu0 0
        %1665 = vmatprep.mubr.bf16.mxu0 0
        %1666 = vmatmul.mubr.bf16.gmra.mrb[0].mxu0 %v794
        %v1667 = vpop.f32.mrb[0].mxu0
        %v1668 = vadd.f32 %v1619, %v1667
        %v1669 = vpop.f32.mrb[0].mxu0
        %v1670 = vpop.f32.mrb[0].mxu0
        %v1671 = vadd.f32 %v1619, %v1670
        %v1672 = vpop.f32.mrb[0].mxu0
        %1673 = vdwg.mxu0
        %v1674 = vmul.f32 %v1668, 0.25
        %v1675 = vmul.f32 %v1671, 0.25
        %v1676 = vpack.c.bf16 %v1675, %v1674
        %v1678 = vsel %vm1185, %v1676, 0
        %1680 = vmatprep.subr.bf16.mxu0 0
        %1681 = vmatpush1.bf16.xpose.msra.mxu0 %v1190
        %1682 = vmatprep.subr.bf16.mxu0 0
        %1683 = vmatpush1.bf16.xpose.msra.mxu0 0
        %1684 = vmatprep.subr.bf16.mxu0 0
        %1685 = vmatpush1.bf16.xpose.msra.mxu0 0
        %1686 = vmatprep.subr.bf16.mxu0 0
        %1687 = vmatpush1.bf16.xpose.msra.mxu0 0
        %1688 = vmatprep.subr.bf16.mxu0 0
        %1689 = vmatpush1.bf16.xpose.msra.mxu0 0
        %1690 = vmatprep.subr.bf16.mxu0 0
        %1691 = vmatpush1.bf16.xpose.msra.mxu0 0
        %1692 = vmatprep.subr.bf16.mxu0 0
        %1693 = vmatpush1.bf16.xpose.msra.mxu0 0
        %1694 = vmatprep.subr.bf16.mxu0 0
        %1695 = vmatpush1.bf16.xpose.msra.mxu0 0
        %1696 = vmatprep.subr.bf16.mxu0 0
        %1697 = vmatpush1.bf16.xpose.msra.mxu0 0
        %1698 = vmatprep.subr.bf16.mxu0 0
        %1699 = vmatpush1.bf16.xpose.msra.mxu0 0
        %1700 = vmatprep.subr.bf16.mxu0 0
        %1701 = vmatpush1.bf16.xpose.msra.mxu0 0
        %1702 = vmatprep.subr.bf16.mxu0 0
        %1703 = vmatpush1.bf16.xpose.msra.mxu0 0
        %1704 = vmatprep.subr.bf16.mxu0 0
        %1705 = vmatpush1.bf16.xpose.msra.mxu0 0
        %1706 = vmatprep.subr.bf16.mxu0 0
        %1707 = vmatpush1.bf16.xpose.msra.mxu0 0
        %1708 = vmatprep.subr.bf16.mxu0 0
        %1709 = vmatpush1.bf16.xpose.msra.mxu0 0
        %1710 = vmatprep.subr.bf16.mxu0 0
        %1711 = vmatpush1.bf16.xpose.msra.mxu0 0
        %1712 = vmatprep.mubr.bf16.mxu0 0
        %1713 = vmatmul.mubr.bf16.gmra.mrb[0].mxu0 %v1678
        %v1714 = vpop.f32.mrb[0].mxu0
        %v1715 = vadd.f32 0.0, %v1714
        %v1716 = vpop.f32.mrb[0].mxu0
        %v1717 = vpop.f32.mrb[0].mxu0
        %v1718 = vadd.f32 0.0, %v1717
        %v1719 = vpop.f32.mrb[0].mxu0
        %1720 = vdwg.mxu0
        %1722 = vset.pattern.permute.xlu0 0
        %1723 = vperm.xlu0 %1722, %v1715
        %v1724 = vpop.permute.xlu0 %1723
        %1727 = vset.pattern.permute.xlu0 0
        %1728 = vperm.xlu0 %1727, %v1718
        %v1729 = vpop.permute.xlu0 %1728
        %v1731 = vmul.f32 %v1724, %v1048
        %v1732 = vmul.f32 %v1729, %v1049
        %v1733 = vadd.f32 %v1731, 0.0
        %v1734 = vadd.f32 %v1732, 0.0
        %1735 = vset.pattern.permute.xlu0 1
        %1736 = vperm.xlu0 %1735, %v1715
        %v1737 = vpop.permute.xlu0 %1736
        %1739 = vset.pattern.permute.xlu0 1
        %1740 = vperm.xlu0 %1739, %v1718
        %v1741 = vpop.permute.xlu0 %1740
        %v1743 = vmul.f32 %v1737, %v1054
        %v1744 = vmul.f32 %v1741, %v1055
        %v1745 = vadd.f32 %v1733, %v1743
        %v1746 = vadd.f32 %v1734, %v1744
        %1747 = vset.pattern.permute.xlu0 2
        %1748 = vperm.xlu0 %1747, %v1715
        %v1749 = vpop.permute.xlu0 %1748
        %1751 = vset.pattern.permute.xlu0 2
        %1752 = vperm.xlu0 %1751, %v1718
        %v1753 = vpop.permute.xlu0 %1752
        %v1755 = vmul.f32 %v1749, %v1060
        %v1756 = vmul.f32 %v1753, %v1061
        %v1757 = vadd.f32 %v1745, %v1755
        %v1758 = vadd.f32 %v1746, %v1756
        %1759 = vset.pattern.permute.xlu0 3
        %1760 = vperm.xlu0 %1759, %v1715
        %v1761 = vpop.permute.xlu0 %1760
        %1763 = vset.pattern.permute.xlu0 3
        %1764 = vperm.xlu0 %1763, %v1718
        %v1765 = vpop.permute.xlu0 %1764
        %v1767 = vmul.f32 %v1761, %v1066
        %v1768 = vmul.f32 %v1765, %v1067
        %v1769 = vadd.f32 %v1757, %v1767
        %v1770 = vadd.f32 %v1758, %v1768
        %1771 = vset.pattern.permute.xlu0 4
        %1772 = vperm.xlu0 %1771, %v1715
        %v1773 = vpop.permute.xlu0 %1772
        %1775 = vset.pattern.permute.xlu0 4
        %1776 = vperm.xlu0 %1775, %v1718
        %v1777 = vpop.permute.xlu0 %1776
        %v1779 = vmul.f32 %v1773, %v1072
        %v1780 = vmul.f32 %v1777, %v1073
        %v1781 = vadd.f32 %v1769, %v1779
        %v1782 = vadd.f32 %v1770, %v1780
        %1783 = vset.pattern.permute.xlu0 5
        %1784 = vperm.xlu0 %1783, %v1715
        %v1785 = vpop.permute.xlu0 %1784
        %1787 = vset.pattern.permute.xlu0 5
        %1788 = vperm.xlu0 %1787, %v1718
        %v1789 = vpop.permute.xlu0 %1788
        %v1791 = vmul.f32 %v1785, %v1078
        %v1792 = vmul.f32 %v1789, %v1079
        %v1793 = vadd.f32 %v1781, %v1791
        %v1794 = vadd.f32 %v1782, %v1792
        %1795 = vset.pattern.permute.xlu0 6
        %1796 = vperm.xlu0 %1795, %v1715
        %v1797 = vpop.permute.xlu0 %1796
        %1799 = vset.pattern.permute.xlu0 6
        %1800 = vperm.xlu0 %1799, %v1718
        %v1801 = vpop.permute.xlu0 %1800
        %v1803 = vmul.f32 %v1797, %v1084
        %v1804 = vmul.f32 %v1801, %v1085
        %v1805 = vadd.f32 %v1793, %v1803
        %v1806 = vadd.f32 %v1794, %v1804
        %1807 = vset.pattern.permute.xlu0 7
        %1808 = vperm.xlu0 %1807, %v1715
        %v1809 = vpop.permute.xlu0 %1808
        %1811 = vset.pattern.permute.xlu0 7
        %1812 = vperm.xlu0 %1811, %v1718
        %v1813 = vpop.permute.xlu0 %1812
        %v1815 = vmul.f32 %v1809, %v1090
        %v1816 = vmul.f32 %v1813, %v1091
        %v1817 = vadd.f32 %v1805, %v1815
        %v1818 = vadd.f32 %v1806, %v1816
        %1819 = vset.pattern.permute.xlu0 8
        %1820 = vperm.xlu0 %1819, %v1715
        %v1821 = vpop.permute.xlu0 %1820
        %1823 = vset.pattern.permute.xlu0 8
        %1824 = vperm.xlu0 %1823, %v1718
        %v1825 = vpop.permute.xlu0 %1824
        %v1827 = vmul.f32 %v1821, %v1096
        %v1828 = vmul.f32 %v1825, %v1097
        %v1829 = vadd.f32 %v1817, %v1827
        %v1830 = vadd.f32 %v1818, %v1828
        %v1832 = vsel %vm1185, %v1035, 0
        %1834 = vmatprep.subr.bf16.mxu0 0
        %1835 = vmatpush1.bf16.xpose.msra.mxu0 %v1832
        %1836 = vmatprep.subr.bf16.mxu0 0
        %1837 = vmatpush1.bf16.xpose.msra.mxu0 0
        %1838 = vmatprep.subr.bf16.mxu0 0
        %1839 = vmatpush1.bf16.xpose.msra.mxu0 0
        %1840 = vmatprep.subr.bf16.mxu0 0
        %1841 = vmatpush1.bf16.xpose.msra.mxu0 0
        %1842 = vmatprep.subr.bf16.mxu0 0
        %1843 = vmatpush1.bf16.xpose.msra.mxu0 0
        %1844 = vmatprep.subr.bf16.mxu0 0
        %1845 = vmatpush1.bf16.xpose.msra.mxu0 0
        %1846 = vmatprep.subr.bf16.mxu0 0
        %1847 = vmatpush1.bf16.xpose.msra.mxu0 0
        %1848 = vmatprep.subr.bf16.mxu0 0
        %1849 = vmatpush1.bf16.xpose.msra.mxu0 0
        %1850 = vmatprep.subr.bf16.mxu0 0
        %1851 = vmatpush1.bf16.xpose.msra.mxu0 0
        %1852 = vmatprep.subr.bf16.mxu0 0
        %1853 = vmatpush1.bf16.xpose.msra.mxu0 0
        %1854 = vmatprep.subr.bf16.mxu0 0
        %1855 = vmatpush1.bf16.xpose.msra.mxu0 0
        %1856 = vmatprep.subr.bf16.mxu0 0
        %1857 = vmatpush1.bf16.xpose.msra.mxu0 0
        %1858 = vmatprep.subr.bf16.mxu0 0
        %1859 = vmatpush1.bf16.xpose.msra.mxu0 0
        %1860 = vmatprep.subr.bf16.mxu0 0
        %1861 = vmatpush1.bf16.xpose.msra.mxu0 0
        %1862 = vmatprep.subr.bf16.mxu0 0
        %1863 = vmatpush1.bf16.xpose.msra.mxu0 0
        %1864 = vmatprep.subr.bf16.mxu0 0
        %1865 = vmatpush1.bf16.xpose.msra.mxu0 0
        %1866 = vmatprep.mubr.bf16.mxu0 0
        %1867 = vmatmul.mubr.bf16.gmra.mrb[0].mxu0 %v1678
        %v1868 = vpop.f32.mrb[0].mxu0
        %v1869 = vadd.f32 %v1829, %v1868
        %v1870 = vpop.f32.mrb[0].mxu0
        %v1871 = vpop.f32.mrb[0].mxu0
        %v1872 = vadd.f32 %v1830, %v1871
        %v1873 = vpop.f32.mrb[0].mxu0
        %1874 = vdwg.mxu0
        %v1875 = vsel %vm1116, -10000.0, %v1869
        %v1876 = vsel %vm1117, -10000.0, %v1872
        %v1877 = vsel %vm1185, %v1875, -inf
        %1878 = vmax.xlane.f32.xlu0 %v1877
        %v1879 = vpop.xlane.xlu0 %1878
        %v1880 = vsel %vm1185, %v1876, -inf
        %1881 = vmax.xlane.f32.xlu0 %v1880
        %v1882 = vpop.xlane.xlu0 %1881
        %v1883 = vsub.f32 %v1875, %v1879
        %v1884 = vsub.f32 %v1876, %v1882
        %v1885 = vmul.f32 %v1883, 1.442695
        %v1886 = vpow.pop %v1885
        %v1887 = vmul.f32 %v1884, 1.442695
        %v1888 = vpow.pop %v1887
        %v1889 = vsel %vm1185, %v1886, 0.0
        %1890 = vadd.xlane.f32.xlu0 %v1889
        %v1891 = vpop.xlane.xlu0 %1890
        %v1892 = vsel %vm1185, %v1888, 0.0
        %1893 = vadd.xlane.f32.xlu0 %v1892
        %v1894 = vpop.xlane.xlu0 %1893
        %v1895 = vrcp.pop %v1891
        %v1896 = vrcp.pop %v1894
        %v1897 = vmul.f32 %v1886, %v1895
        %v1898 = vmul.f32 %v1888, %v1896
        %v1899 = vpack.c.bf16 %v1898, %v1897
        %v1900 = vmul.f32 %v1897, %v1048
        %v1901 = vmul.f32 %v1898, %v1049
        %v1902 = vsel %vm1185, %v1900, 0.0
        %1903 = vadd.xlane.f32.xlu0 %v1902
        %v1904 = vpop.xlane.xlu0 %1903
        %v1905 = vsel %vm1185, %v1901, 0.0
        %1906 = vadd.xlane.f32.xlu0 %v1905
        %v1907 = vpop.xlane.xlu0 %1906
        %v1908 = vmul.f32 %v1897, %v1054
        %v1909 = vmul.f32 %v1898, %v1055
        %v1910 = vsel %vm1185, %v1908, 0.0
        %1911 = vadd.xlane.f32.xlu0 %v1910
        %v1912 = vpop.xlane.xlu0 %1911
        %v1913 = vsel %vm1185, %v1909, 0.0
        %1914 = vadd.xlane.f32.xlu0 %v1913
        %v1915 = vpop.xlane.xlu0 %1914
        %v1916 = vmul.f32 %v1897, %v1060
        %v1917 = vmul.f32 %v1898, %v1061
        %v1918 = vsel %vm1185, %v1916, 0.0
        %1919 = vadd.xlane.f32.xlu0 %v1918
        %v1920 = vpop.xlane.xlu0 %1919
        %v1921 = vsel %vm1185, %v1917, 0.0
        %1922 = vadd.xlane.f32.xlu0 %v1921
        %v1923 = vpop.xlane.xlu0 %1922
        %v1924 = vmul.f32 %v1897, %v1066
        %v1925 = vmul.f32 %v1898, %v1067
        %v1926 = vsel %vm1185, %v1924, 0.0
        %1927 = vadd.xlane.f32.xlu0 %v1926
        %v1928 = vpop.xlane.xlu0 %1927
        %v1929 = vsel %vm1185, %v1925, 0.0
        %1930 = vadd.xlane.f32.xlu0 %v1929
        %v1931 = vpop.xlane.xlu0 %1930
        %v1932 = vmul.f32 %v1897, %v1072
        %v1933 = vmul.f32 %v1898, %v1073
        %v1934 = vsel %vm1185, %v1932, 0.0
        %1935 = vadd.xlane.f32.xlu0 %v1934
        %v1936 = vpop.xlane.xlu0 %1935
        %v1937 = vsel %vm1185, %v1933, 0.0
        %1938 = vadd.xlane.f32.xlu0 %v1937
        %v1939 = vpop.xlane.xlu0 %1938
        %v1940 = vmul.f32 %v1897, %v1078
        %v1941 = vmul.f32 %v1898, %v1079
        %v1942 = vsel %vm1185, %v1940, 0.0
        %1943 = vadd.xlane.f32.xlu0 %v1942
        %v1944 = vpop.xlane.xlu0 %1943
        %v1945 = vsel %vm1185, %v1941, 0.0
        %1946 = vadd.xlane.f32.xlu0 %v1945
        %v1947 = vpop.xlane.xlu0 %1946
        %v1948 = vmul.f32 %v1897, %v1084
        %v1949 = vmul.f32 %v1898, %v1085
        %v1950 = vsel %vm1185, %v1948, 0.0
        %1951 = vadd.xlane.f32.xlu0 %v1950
        %v1952 = vpop.xlane.xlu0 %1951
        %v1953 = vsel %vm1185, %v1949, 0.0
        %1954 = vadd.xlane.f32.xlu0 %v1953
        %v1955 = vpop.xlane.xlu0 %1954
        %v1956 = vmul.f32 %v1897, %v1090
        %v1957 = vmul.f32 %v1898, %v1091
        %v1958 = vsel %vm1185, %v1956, 0.0
        %1959 = vadd.xlane.f32.xlu0 %v1958
        %v1960 = vpop.xlane.xlu0 %1959
        %v1961 = vsel %vm1185, %v1957, 0.0
        %1962 = vadd.xlane.f32.xlu0 %v1961
        %v1963 = vpop.xlane.xlu0 %1962
        %v1964 = vmul.f32 %v1897, %v1096
        %v1965 = vmul.f32 %v1898, %v1097
        %v1966 = vsel %vm1185, %v1964, 0.0
        %1967 = vadd.xlane.f32.xlu0 %v1966
        %v1968 = vpop.xlane.xlu0 %1967
        %v1969 = vsel %vm1185, %v1965, 0.0
        %1970 = vadd.xlane.f32.xlu0 %v1969
        %v1971 = vpop.xlane.xlu0 %1970
        %v1972 = vsel %vm1484, %v1904, %v1912
        %v1973 = vsel %vm1484, %v1907, %v1915
        %v1974 = vsel %vm1487, %v1972, %v1920
        %v1975 = vsel %vm1487, %v1973, %v1923
        %v1976 = vsel %vm1490, %v1974, %v1928
        %v1977 = vsel %vm1490, %v1975, %v1931
        %v1978 = vsel %vm1493, %v1976, %v1936
        %v1979 = vsel %vm1493, %v1977, %v1939
        %v1980 = vsel %vm1496, %v1978, %v1944
        %v1981 = vsel %vm1496, %v1979, %v1947
        %v1982 = vsel %vm1499, %v1980, %v1952
        %v1983 = vsel %vm1499, %v1981, %v1955
        %v1984 = vsel %vm1502, %v1982, %v1960
        %v1985 = vsel %vm1502, %v1983, %v1963
        %v1986 = vsel %vm1505, %v1984, %v1968
        %v1987 = vsel %vm1505, %v1985, %v1971
        %v1988 = vpack.c.bf16 %v1987, %v1986
        %v1990 = vsel %vm1509, %v1988, 0
        %1992 = vmatprep.subr.bf16.mxu0 0
        %1993 = vmatpush1.bf16.msra.mxu0 %v1518
        %1994 = vmatprep.subr.bf16.mxu0 0
        %1995 = vmatpush1.bf16.msra.mxu0 0
        %1996 = vmatprep.subr.bf16.mxu0 0
        %1997 = vmatpush1.bf16.msra.mxu0 0
        %1998 = vmatprep.subr.bf16.mxu0 0
        %1999 = vmatpush1.bf16.msra.mxu0 0
        %2000 = vmatprep.subr.bf16.mxu0 0
        %2001 = vmatpush1.bf16.msra.mxu0 0
        %2002 = vmatprep.subr.bf16.mxu0 0
        %2003 = vmatpush1.bf16.msra.mxu0 0
        %2004 = vmatprep.subr.bf16.mxu0 0
        %2005 = vmatpush1.bf16.msra.mxu0 0
        %2006 = vmatprep.subr.bf16.mxu0 0
        %2007 = vmatpush1.bf16.msra.mxu0 0
        %2008 = vmatprep.subr.bf16.mxu0 0
        %2009 = vmatpush1.bf16.msra.mxu0 0
        %2010 = vmatprep.subr.bf16.mxu0 0
        %2011 = vmatpush1.bf16.msra.mxu0 0
        %2012 = vmatprep.subr.bf16.mxu0 0
        %2013 = vmatpush1.bf16.msra.mxu0 0
        %2014 = vmatprep.subr.bf16.mxu0 0
        %2015 = vmatpush1.bf16.msra.mxu0 0
        %2016 = vmatprep.subr.bf16.mxu0 0
        %2017 = vmatpush1.bf16.msra.mxu0 0
        %2018 = vmatprep.subr.bf16.mxu0 0
        %2019 = vmatpush1.bf16.msra.mxu0 0
        %2020 = vmatprep.subr.bf16.mxu0 0
        %2021 = vmatpush1.bf16.msra.mxu0 0
        %2022 = vmatprep.subr.bf16.mxu0 0
        %2023 = vmatpush1.bf16.msra.mxu0 0
        %2024 = vmatprep.mubr.bf16.mxu0 0
        %2025 = vmatmul.mubr.bf16.gmra.mrb[0].mxu0 %v1990
        %v2026 = vpop.f32.mrb[0].mxu0
        %v2027 = vadd.f32 0.0, %v2026
        %v2028 = vpop.f32.mrb[0].mxu0
        %v2029 = vpop.f32.mrb[0].mxu0
        %v2030 = vadd.f32 0.0, %v2029
        %v2031 = vpop.f32.mrb[0].mxu0
        %2032 = vdwg.mxu0
        %v2034 = vsel %vm1185, %v1899, 0
        %2036 = vmatprep.subr.bf16.mxu0 0
        %2037 = vmatpush1.bf16.msra.mxu0 %v1036
        %2038 = vmatprep.subr.bf16.mxu0 0
        %2039 = vmatpush1.bf16.msra.mxu0 0
        %2040 = vmatprep.subr.bf16.mxu0 0
        %2041 = vmatpush1.bf16.msra.mxu0 0
        %2042 = vmatprep.subr.bf16.mxu0 0
        %2043 = vmatpush1.bf16.msra.mxu0 0
        %2044 = vmatprep.subr.bf16.mxu0 0
        %2045 = vmatpush1.bf16.msra.mxu0 0
        %2046 = vmatprep.subr.bf16.mxu0 0
        %2047 = vmatpush1.bf16.msra.mxu0 0
        %2048 = vmatprep.subr.bf16.mxu0 0
        %2049 = vmatpush1.bf16.msra.mxu0 0
        %2050 = vmatprep.subr.bf16.mxu0 0
        %2051 = vmatpush1.bf16.msra.mxu0 0
        %2052 = vmatprep.subr.bf16.mxu0 0
        %2053 = vmatpush1.bf16.msra.mxu0 0
        %2054 = vmatprep.subr.bf16.mxu0 0
        %2055 = vmatpush1.bf16.msra.mxu0 0
        %2056 = vmatprep.subr.bf16.mxu0 0
        %2057 = vmatpush1.bf16.msra.mxu0 0
        %2058 = vmatprep.subr.bf16.mxu0 0
        %2059 = vmatpush1.bf16.msra.mxu0 0
        %2060 = vmatprep.subr.bf16.mxu0 0
        %2061 = vmatpush1.bf16.msra.mxu0 0
        %2062 = vmatprep.subr.bf16.mxu0 0
        %2063 = vmatpush1.bf16.msra.mxu0 0
        %2064 = vmatprep.subr.bf16.mxu0 0
        %2065 = vmatpush1.bf16.msra.mxu0 0
        %2066 = vmatprep.subr.bf16.mxu0 0
        %2067 = vmatpush1.bf16.msra.mxu0 0
        %2068 = vmatprep.mubr.bf16.mxu0 0
        %2069 = vmatmul.mubr.bf16.gmra.mrb[0].mxu0 %v2034
        %v2070 = vpop.f32.mrb[0].mxu0
        %v2071 = vadd.f32 %v2027, %v2070
        %v2072 = vpop.f32.mrb[0].mxu0
        %v2073 = vpop.f32.mrb[0].mxu0
        %v2074 = vadd.f32 %v2030, %v2073
        %v2075 = vpop.f32.mrb[0].mxu0
        %2076 = vdwg.mxu0
        %v2077 = vpack.c.bf16 %v2074, %v2071
        %s2078 = scalar_lea.vmem [#allocation20], 8
        %v2079 = vld [vmem:[%s2078] sm:$0xf]
        %v2080 = vld [vmem:[%s2078 + $0x4] sm:$0xf]
        %v2083 = vunpack.c.l.b16 %v2079
        %v2084 = vunpack.c.l.b16 %v2080
        %v2085 = vpack.c.b16 %v2084, %v2083
        %v2088 = vsel %vm1185, %v2077, 0
        %2090 = vmatprep.subr.bf16.mxu0 0
        %2091 = vmatpush1.bf16.msra.mxu0 %v2085
        %2092 = vmatprep.subr.bf16.mxu0 0
        %2093 = vmatpush1.bf16.msra.mxu0 0
        %2094 = vmatprep.subr.bf16.mxu0 0
        %2095 = vmatpush1.bf16.msra.mxu0 0
        %2096 = vmatprep.subr.bf16.mxu0 0
        %2097 = vmatpush1.bf16.msra.mxu0 0
        %2098 = vmatprep.subr.bf16.mxu0 0
        %2099 = vmatpush1.bf16.msra.mxu0 0
        %2100 = vmatprep.subr.bf16.mxu0 0
        %2101 = vmatpush1.bf16.msra.mxu0 0
        %2102 = vmatprep.subr.bf16.mxu0 0
        %2103 = vmatpush1.bf16.msra.mxu0 0
        %2104 = vmatprep.subr.bf16.mxu0 0
        %2105 = vmatpush1.bf16.msra.mxu0 0
        %2106 = vmatprep.subr.bf16.mxu0 0
        %2107 = vmatpush1.bf16.msra.mxu0 0
        %2108 = vmatprep.subr.bf16.mxu0 0
        %2109 = vmatpush1.bf16.msra.mxu0 0
        %2110 = vmatprep.subr.bf16.mxu0 0
        %2111 = vmatpush1.bf16.msra.mxu0 0
        %2112 = vmatprep.subr.bf16.mxu0 0
        %2113 = vmatpush1.bf16.msra.mxu0 0
        %2114 = vmatprep.subr.bf16.mxu0 0
        %2115 = vmatpush1.bf16.msra.mxu0 0
        %2116 = vmatprep.subr.bf16.mxu0 0
        %2117 = vmatpush1.bf16.msra.mxu0 0
        %2118 = vmatprep.subr.bf16.mxu0 0
        %2119 = vmatpush1.bf16.msra.mxu0 0
        %2120 = vmatprep.subr.bf16.mxu0 0
        %2121 = vmatpush1.bf16.msra.mxu0 0
        %2122 = vmatprep.mubr.bf16.mxu0 0
        %2123 = vmatmul.mubr.bf16.gmra.mrb[0].mxu0 %v2088
        %v2124 = vpop.f32.mrb[0].mxu0
        %v2125 = vadd.f32 0.0, %v2124
        %v2126 = vpop.f32.mrb[0].mxu0
        %v2127 = vpop.f32.mrb[0].mxu0
        %v2128 = vadd.f32 0.0, %v2127
        %v2129 = vpop.f32.mrb[0].mxu0
        %2130 = vdwg.mxu0
        %v2133 = vunpack.c.l.b16 %v1606
        %v2134 = vunpack.c.l.b16 %v1607
        %v2135 = vpack.c.b16 %v2134, %v2133
        %v2138 = vsel %vm1185, %v1605, 0
        %2140 = vmatprep.subr.bf16.mxu0 0
        %2141 = vmatpush1.bf16.msra.mxu0 %v2135
        %2142 = vmatprep.subr.bf16.mxu0 0
        %2143 = vmatpush1.bf16.msra.mxu0 0
        %2144 = vmatprep.subr.bf16.mxu0 0
        %2145 = vmatpush1.bf16.msra.mxu0 0
        %2146 = vmatprep.subr.bf16.mxu0 0
        %2147 = vmatpush1.bf16.msra.mxu0 0
        %2148 = vmatprep.subr.bf16.mxu0 0
        %2149 = vmatpush1.bf16.msra.mxu0 0
        %2150 = vmatprep.subr.bf16.mxu0 0
        %2151 = vmatpush1.bf16.msra.mxu0 0
        %2152 = vmatprep.subr.bf16.mxu0 0
        %2153 = vmatpush1.bf16.msra.mxu0 0
        %2154 = vmatprep.subr.bf16.mxu0 0
        %2155 = vmatpush1.bf16.msra.mxu0 0
        %2156 = vmatprep.subr.bf16.mxu0 0
        %2157 = vmatpush1.bf16.msra.mxu0 0
        %2158 = vmatprep.subr.bf16.mxu0 0
        %2159 = vmatpush1.bf16.msra.mxu0 0
        %2160 = vmatprep.subr.bf16.mxu0 0
        %2161 = vmatpush1.bf16.msra.mxu0 0
        %2162 = vmatprep.subr.bf16.mxu0 0
        %2163 = vmatpush1.bf16.msra.mxu0 0
        %2164 = vmatprep.subr.bf16.mxu0 0
        %2165 = vmatpush1.bf16.msra.mxu0 0
        %2166 = vmatprep.subr.bf16.mxu0 0
        %2167 = vmatpush1.bf16.msra.mxu0 0
        %2168 = vmatprep.subr.bf16.mxu0 0
        %2169 = vmatpush1.bf16.msra.mxu0 0
        %2170 = vmatprep.subr.bf16.mxu0 0
        %2171 = vmatpush1.bf16.msra.mxu0 0
        %2172 = vmatprep.mubr.bf16.mxu0 0
        %2173 = vmatmul.mubr.bf16.gmra.mrb[0].mxu0 %v2138
        %v2174 = vpop.f32.mrb[0].mxu0
        %v2175 = vadd.f32 %v2125, %v2174
        %v2176 = vpop.f32.mrb[0].mxu0
        %v2177 = vpop.f32.mrb[0].mxu0
        %v2178 = vadd.f32 %v2128, %v2177
        %v2179 = vpop.f32.mrb[0].mxu0
        %2180 = vdwg.mxu0
        %v2181 = vunpack.c.l.bf16 %v753
        %v2182 = vunpack.c.l.bf16 %v754
        %v2183 = vadd.f32 %v2181, %v2175
        %v2184 = vadd.f32 %v2182, %v2178
        %v2185 = vld [vmem:[#allocation22] sm:$0x1]
        %v2187 = vlaneseq
        %v2188 = vshrl.u32 %v2187, 7
        %v2189 = vsub.s32 0, %v2188
        %v2190 = vrot.slane %v2185, %v2189
        %v2192 = vadd.f32 %v2183, %v2190
        %v2193 = vadd.f32 %v2184, %v2190
        %v2194 = vsel %vm792, %v2192, 0.0
        %2195 = vadd.xlane.f32.xlu0 %v2194
        %v2196 = vpop.xlane.xlu0 %2195
        %v2197 = vsel %vm792, %v2193, 0.0
        %2198 = vadd.xlane.f32.xlu0 %v2197
        %v2199 = vpop.xlane.xlu0 %2198
        %v2200 = vrcp.pop 32.0
        %v2201 = vmul.f32 %v2196, %v2200
        %v2202 = vmul.f32 %v2199, %v2200
        %v2203 = vsub.f32 %v2192, %v2201
        %v2204 = vsub.f32 %v2193, %v2202
        %v2205 = vmul.f32 %v2203, %v2203
        %v2206 = vmul.f32 %v2204, %v2204
        %v2207 = vsel %vm792, %v2205, 0.0
        %2208 = vadd.xlane.f32.xlu0 %v2207
        %v2209 = vpop.xlane.xlu0 %2208
        %v2210 = vsel %vm792, %v2206, 0.0
        %2211 = vadd.xlane.f32.xlu0 %v2210
        %v2212 = vpop.xlane.xlu0 %2211
        %v2213 = vmul.f32 %v2209, %v2200
        %v2214 = vmul.f32 %v2212, %v2200
        %v2215 = vadd.f32 %v2213, 1e-05
        %v2216 = vadd.f32 %v2214, 1e-05
        %v2217 = vrsqrt.pop %v2215
        %v2218 = vrsqrt.pop %v2216
        %v2219 = vmul.f32 %v2203, %v2217
        %v2220 = vmul.f32 %v2204, %v2218
        %v2221 = vld [vmem:[#allocation23] sm:$0x1]
        %v2223 = vlaneseq
        %v2224 = vshrl.u32 %v2223, 7
        %v2225 = vsub.s32 0, %v2224
        %v2226 = vrot.slane %v2221, %v2225
        %v2228 = vmul.f32 %v2219, %v2226
        %v2229 = vmul.f32 %v2220, %v2226
        %v2230 = vld [vmem:[#allocation25] sm:$0x1]
        %v2232 = vlaneseq
        %v2233 = vshrl.u32 %v2232, 7
        %v2234 = vsub.s32 0, %v2233
        %v2235 = vrot.slane %v2230, %v2234
        %v2237 = vadd.f32 %v2228, %v2235
        %v2238 = vadd.f32 %v2229, %v2235
        %v2239 = vpack.c.bf16 %v2238, %v2237
        %v2241 = vunpack.c.l.b16 %v2239
        %v2242 = vunpack.c.h.b16 %v2239
        %v2243 = vpack.c.b16 %v2241, %v2241
        %v2244 = vpack.c.b16 %v2242, %v2242
        %vm2247 = vcmask 257024
        %2248 = vst.msk [vmem:[%s751] sm:$0xf] %vm2247, %v2243
        %2249 = vst.msk [vmem:[%s751 + $0x4] sm:$0xf] %vm2247, %v2244
        %s2250 = sand.u32 %s379, 1
        %s2251 = scalar_lea.sflag [#allocation4], %s2250
        %s2252 = sand.u32 %s379, 1
        %s2253 = smul.addr %s2252, 8
        %s2254 = scalar_lea.vmem [#allocation26], %s2253
        // Predicated region
        $region141: #{tpu_custom_call.1} parent=79 // pred_check
          %p2255 = pneg %p389
        $region142: #{tpu_custom_call.1} parent=79 // pred_check_branch
          %2257 = sbr.rel (%p2255) target = $region144
        $region143: #{tpu_custom_call.1} parent=79 // pred_region
          %s2259 = ssub.s32 128, 128
          %2260 = vsyncadd %s2251, %s2259
          %s2261 = smul.addr %s41, 2
          %s2262 = smul.addr %s2261, 64
          %s2263 = scalar_lea.hbm %s15, %s2262
          %s2264 = sshll.u32 %s2254, 4
          %s2265 = int_to_ptr.vmem [resolvable:$true] %s2264
          %2270 = dma.vmem_to_hbm [thread:$0]  %s2265, 128, %s2263, %s2251, 64, 64, 4
        $region144: #{tpu_custom_call.1} parent=79 // pred_fallthru
          _
      $region80: #{tpu_custom_call.1} parent=5 // pred_fallthru
        _
      %p2271 = scmp.le.s32.totalorder 2, %s36
      // Predicated region
      $region145: #{tpu_custom_call.1} parent=5 // pred_check
        %p2272 = pneg %p2271
      $region146: #{tpu_custom_call.1} parent=5 // pred_check_branch
        %2274 = sbr.rel (%p2272) target = $region148
      $region147: #{tpu_custom_call.1} parent=5 // pred_region
        %s2275 = ssub.s32 %s36, 2
        // Predicated region
        $region149: #{tpu_custom_call.1} parent=147 // pred_check
          %p2276 = pneg %p395
        $region150: #{tpu_custom_call.1} parent=147 // pred_check_branch
          %2278 = sbr.rel (%p2276) target = $region152
        $region151: #{tpu_custom_call.1} parent=147 // pred_region
          %s2279 = sand.u32 %s380, 1
          %s2280 = scalar_lea.sflag [#allocation4], %s2279
          %s2281 = sand.u32 %s380, 1
          %s2282 = smul.addr %s2281, 8
          %s2283 = scalar_lea.vmem [#allocation26], %s2282
          %2284 = dma.done %s2280, 128
        $region152: #{tpu_custom_call.1} parent=147 // pred_fallthru
          _
      $region148: #{tpu_custom_call.1} parent=5 // pred_fallthru
        _
    $region6: #{tpu_custom_call.1} parent=1 // loop_footer
      %s40 = sadd.s32 1, %s36
    $region7: #{tpu_custom_call.1} parent=1 // loop_footer_branch
      %35 = sbr.rel target = $region3
    $region8: #{tpu_custom_call.1} parent=1 // loop_exit
      _
    %2285 = vsyncpa [#allocation3], 1
    %s2286 = scalar_lea.sflag [#allocation3], 1
    %2287 = vsyncpa %s2286, 1
    %2288 = vsyncpa [#allocation6], 1
    %s2289 = scalar_lea.sflag [#allocation6], 1
    %2290 = vsyncpa %s2289, 1
    %2291 = vsyncpa [#allocation9], 1
    %2292 = vsyncpa [#allocation12], 1
    %2293 = vsyncpa [#allocation15], 1
    %2294 = vsyncpa [#allocation18], 1
    %2295 = vsyncpa [#allocation21], 1
    %2296 = vsyncpa [#allocation24], 1
    %2297 = vsyncpa [#allocation4], 1
    %s2298 = scalar_lea.sflag [#allocation4], 1
    %2299 = vsyncpa %s2298, 1

</llo_original>
